<compile_context>
chip_gen: v7x
topology: tpu7x:2x2x1
jax: 0.10.0
libtpu: 0.0.40
codegen_flags: <defaults>
</compile_context>

<pallas_src>
import functools

import jax
import jax.numpy as jnp
from jax.experimental import pallas as pl
from jax.experimental.pallas import tpu as pltpu

# ----------------------------------------------------------------------------
# Embedded mini YOLOv3-style cfg (replaces parse_cfg('config/yolov3.cfg')).
# ----------------------------------------------------------------------------
CFG = """
[net]
height=16
width=16
channels=3

# 0: 3->8, 3x3/1, bn+leaky -> 16x16
[convolutional]
batch_normalize=1
filters=8
size=3
stride=1
pad=1
activation=leaky

# 1: 8->16, 3x3/2, bn+leaky -> 8x8
[convolutional]
batch_normalize=1
filters=16
size=3
stride=2
pad=1
activation=leaky

# 2: 16->8, 1x1/1, bn+leaky
[convolutional]
batch_normalize=1
filters=8
size=1
stride=1
pad=1
activation=leaky

# 3: 8->16, 3x3/1, bn+leaky
[convolutional]
batch_normalize=1
filters=16
size=3
stride=1
pad=1
activation=leaky

# 4: residual add with layer 1
[shortcut]
from=-3
activation=linear

# 5: 16->32, 3x3/2, bn+leaky -> 4x4
[convolutional]
batch_normalize=1
filters=32
size=3
stride=2
pad=1
activation=leaky

# 6: detection head 1: 32->21, 1x1, linear, bias
[convolutional]
filters=21
size=1
stride=1
pad=1
activation=linear

# 7
[yolo]
mask=3,4,5
anchors=10,13, 16,30, 33,23, 30,61, 62,45, 59,119
classes=2
num=6

# 8: route back to layer 5
[route]
layers=-3

# 9: 32->8, 1x1, bn+leaky
[convolutional]
batch_normalize=1
filters=8
size=1
stride=1
pad=1
activation=leaky

# 10: bilinear x2 -> 8x8
[upsample]
stride=2

# 11: concat with layer 4 (8 + 16 = 24 ch)
[route]
layers=-1, 4

# 12: 24->16, 3x3, bn+leaky
[convolutional]
batch_normalize=1
filters=16
size=3
stride=1
pad=1
activation=leaky

# 13: detection head 2: 16->21, 1x1, linear, bias
[convolutional]
filters=21
size=1
stride=1
pad=1
activation=linear

# 14
[yolo]
mask=0,1,2
anchors=10,13, 16,30, 33,23, 30,61, 62,45, 59,119
classes=2
num=6
"""


def parse_cfg_text(text):
    lines = [l.strip() for l in text.split("\n")]
    lines = [l for l in lines if len(l) > 0 and l[0] != "#"]
    block, blocks = {}, []
    for line in lines:
        if line[0] == "[":
            if block:
                blocks.append(block)
                block = {}
            block["type"] = line[1:-1].rstrip()
        else:
            k, v = line.split("=")
            block[k.rstrip()] = v.lstrip()
    blocks.append(block)
    return blocks


def _round_up(x, m):
    return ((x + m - 1) // m) * m


# ----------------------------------------------------------------------------
# Pallas kernels
# ----------------------------------------------------------------------------
def conv_gemm_kernel(*refs, leaky, has_res, has_yolo, yolo_stride):
    """Tiled im2col GEMM with K-axis accumulation.

    Epilogue (at the last K step): folded-BN scale/shift, optional LeakyReLU,
    optional fused residual add (shortcut), optional fused YOLO transform.
    """
    a_ref, w_ref, scale_ref, shift_ref = refs[:4]
    pos = 4
    if has_res:
        res_ref = refs[pos]
        pos += 1
    if has_yolo:
        off_ref, anc_ref, ct_ref = refs[pos:pos + 3]
        pos += 3
    o_ref = refs[pos]
    acc_ref = refs[pos + 1]

    k = pl.program_id(2)

    @pl.when(k == 0)
    def _init():
        acc_ref[...] = jnp.zeros_like(acc_ref)

    # bf16 x bf16 -> f32 on the MXU.
    acc_ref[...] += jnp.dot(a_ref[...], w_ref[...],
                            preferred_element_type=jnp.float32)

    @pl.when(k == pl.num_programs(2) - 1)
    def _finalize():
        y = acc_ref[...] * scale_ref[...] + shift_ref[...]
        if leaky:
            y = jnp.where(y > 0, y, 0.1 * y)
        if has_res:
            y = y + res_ref[...]
        if has_yolo:
            ct = ct_ref[...]                       # 1.0 = xy, 2.0 = wh, 0 = sigmoid
            sig = jax.nn.sigmoid(y)
            box_xy = (sig + off_ref[...]) * yolo_stride
            box_wh = jnp.exp(y) * anc_ref[...] * yolo_stride
            y = jnp.where(ct == 1.0, box_xy,
                          jnp.where(ct == 2.0, box_wh, sig))
        o_ref[...] = y


def upsample2x_kernel(x_ref, ee_ref, eo_ref, oe_ref, oo_ref):
    """x2 bilinear (align_corners=False): emit the 4 output parities from one read."""
    x = x_ref[...]                                   # (N, H, W, C)
    # clamped neighbours along H (axis 1)
    x_up = jnp.concatenate([x[:, :1], x[:, :-1]], axis=1)
    x_dn = jnp.concatenate([x[:, 1:], x[:, -1:]], axis=1)
    row_e = 0.25 * x_up + 0.75 * x                   # output rows 2h
    row_o = 0.75 * x + 0.25 * x_dn                   # output rows 2h+1

    def _wblend(t):
        t_lt = jnp.concatenate([t[:, :, :1], t[:, :, :-1]], axis=2)
        t_rt = jnp.concatenate([t[:, :, 1:], t[:, :, -1:]], axis=2)
        return 0.25 * t_lt + 0.75 * t, 0.75 * t + 0.25 * t_rt

    ee, eo = _wblend(row_e)
    oe, oo = _wblend(row_o)
    ee_ref[...] = ee
    eo_ref[...] = eo
    oe_ref[...] = oe
    oo_ref[...] = oo


# ----------------------------------------------------------------------------
# Layer wrappers (glue + pallas_call)
# ----------------------------------------------------------------------------
def conv_layer(x, p, stride, pad, leaky, residual=None, yolo=None):
    """x: NHWC f32. Returns NHWC conv output, or (N, G*G*A, 5+nc) if `yolo`."""
    N, H, W, Cin = x.shape
    w = p["w"]                                       # (Cout, Cin, K, K)
    Cout, _, K, _ = w.shape
    Ho = (H + 2 * pad - K) // stride + 1
    Wo = (W + 2 * pad - K) // stride + 1
    M = N * Ho * Wo

    # im2col (XLA glue; NHWC so no transposes). 1x1 convs are a pure reshape.
    # TODO(synk): in-kernel im2col via a (kh,kw) grid axis would avoid this
    # K^2 activation blow-up in HBM at real resolutions.
    if K == 1 and stride == 1 and pad == 0:
        a = x.reshape(M, Cin)
    else:
        xp = jnp.pad(x, ((0, 0), (pad, pad), (pad, pad), (0, 0)))
        taps = [xp[:, kh:kh + stride * Ho:stride, kw:kw + stride * Wo:stride, :]
                for kh in range(K) for kw in range(K)]
        a = jnp.concatenate(taps, axis=-1).reshape(M, K * K * Cin)
    wmat = w.transpose(2, 3, 1, 0).reshape(K * K * Cin, Cout)

    Kd = a.shape[1]
    Cp = _round_up(Cout, 128)                        # lane-dense output columns
    Kp = _round_up(Kd, 128)
    tn = 128
    tk = 512 if Kp % 512 == 0 else (256 if Kp % 256 == 0 else 128)
    tm = min(256, _round_up(M, 16))
    Mp = _round_up(M, tm)

    a_p = jnp.pad(a, ((0, Mp - M), (0, Kp - Kd))).astype(jnp.bfloat16)
    w_p = jnp.pad(wmat, ((0, Kp - Kd), (0, Cp - Cout))).astype(jnp.bfloat16)
    scale_p = jnp.pad(p["scale"], (0, Cp - Cout)).reshape(1, Cp)
    shift_p = jnp.pad(p["shift"], (0, Cp - Cout)).reshape(1, Cp)

    inputs = [a_p, w_p, scale_p, shift_p]
    in_specs = [
        pl.BlockSpec((tm, tk), lambda i, j, k: (i, k)),
        pl.BlockSpec((tk, tn), lambda i, j, k: (k, j)),
        pl.BlockSpec((1, tn), lambda i, j, k: (0, j)),
        pl.BlockSpec((1, tn), lambda i, j, k: (0, j)),
    ]

    has_res = residual is not None
    if has_res:
        r_p = jnp.pad(residual.reshape(M, Cout), ((0, Mp - M), (0, Cp - Cout)))
        inputs.append(r_p)
        in_specs.append(pl.BlockSpec((tm, tn), lambda i, j, k: (i, j)))

    has_yolo = yolo is not None
    yolo_stride = 1.0
    if has_yolo:
        anchors = yolo["anchors"]
        A = len(anchors)
        B = 5 + yolo["num_classes"]
        G = Ho
        det_stride = yolo["inp_dim"] // G
        yolo_stride = float(det_stride)

        gy, gx = jnp.meshgrid(jnp.arange(G, dtype=jnp.float32),
                              jnp.arange(G, dtype=jnp.float32), indexing="ij")
        off_cell = jnp.zeros((G * G, A, B), jnp.float32)
        off_cell = off_cell.at[:, :, 0].set(gx.reshape(-1)[:, None])
        off_cell = off_cell.at[:, :, 1].set(gy.reshape(-1)[:, None])
        off = jnp.tile(off_cell.reshape(G * G, A * B), (N, 1))
        off_p = jnp.pad(off, ((0, Mp - M), (0, Cp - A * B)))

        aw = jnp.asarray([a0 for a0, _ in anchors], jnp.float32) / det_stride
        ah = jnp.asarray([a1 for _, a1 in anchors], jnp.float32) / det_stride
        anc_cell = jnp.zeros((A, B), jnp.float32).at[:, 2].set(aw).at[:, 3].set(ah)
        anc_p = jnp.pad(anc_cell.reshape(1, A * B), ((0, 0), (0, Cp - A * B)))

        ct_cell = jnp.zeros((A, B), jnp.float32)
        ct_cell = ct_cell.at[:, 0:2].set(1.0).at[:, 2:4].set(2.0)
        ct_p = jnp.pad(ct_cell.reshape(1, A * B), ((0, 0), (0, Cp - A * B)))

        inputs += [off_p, anc_p, ct_p]
        in_specs += [
            pl.BlockSpec((tm, tn), lambda i, j, k: (i, j)),
            pl.BlockSpec((1, tn), lambda i, j, k: (0, j)),
            pl.BlockSpec((1, tn), lambda i, j, k: (0, j)),
        ]

    grid = (Mp // tm, Cp // tn, Kp // tk)
    out = pl.pallas_call(
        functools.partial(conv_gemm_kernel, leaky=leaky, has_res=has_res,
                          has_yolo=has_yolo, yolo_stride=yolo_stride),
        out_shape=jax.ShapeDtypeStruct((Mp, Cp), jnp.float32),
        grid=grid,
        in_specs=in_specs,
        out_specs=pl.BlockSpec((tm, tn), lambda i, j, k: (i, j)),
        scratch_shapes=[pltpu.VMEM((tm, tn), jnp.float32)],
        compiler_params=pltpu.CompilerParams(
            dimension_semantics=("parallel", "parallel", "arbitrary")),
        cost_estimate=pl.CostEstimate(
            flops=2 * Mp * Kp * Cp,
            transcendentals=Mp * Cp if has_yolo else 0,
            bytes_accessed=a_p.size * 2 + w_p.size * 2 + Mp * Cp * 4),
    )(*inputs)

    if has_yolo:
        A = len(yolo["anchors"])
        B = 5 + yolo["num_classes"]
        return out[:M, :A * B].reshape(N, Ho * Wo * A, B)
    return out[:M, :Cout].reshape(N, Ho, Wo, Cout)


def upsample_bilinear_x2(x):
    """nn.Upsample(scale_factor=2, mode='bilinear', align_corners=False), NHWC."""
    N, H, W, C = x.shape
    full = (N, H, W, C)
    ee, eo, oe, oo = pl.pallas_call(
        upsample2x_kernel,
        out_shape=tuple(jax.ShapeDtypeStruct(full, x.dtype) for _ in range(4)),
        grid=(1,),
        in_specs=[pl.BlockSpec(full, lambda i: (0, 0, 0, 0))],
        out_specs=tuple(pl.BlockSpec(full, lambda i: (0, 0, 0, 0))
                        for _ in range(4)),
    )(x)
    # Interleave the parities; this reshape is row-major-preserving (free).
    top = jnp.stack([ee, eo], axis=3)                # (N,H,W,2,C)
    bot = jnp.stack([oe, oo], axis=3)
    return jnp.stack([top, bot], axis=2).reshape(N, 2 * H, 2 * W, C)


def predict_transform_jax(pred, inp_dim, anchors, num_classes):
    """Pure-JAX fallback, only used when the YOLO transform cannot be fused
    into the preceding conv's Pallas epilogue (not hit by the embedded cfg)."""
    N, G, _, _ = pred.shape
    A = len(anchors)
    B = 5 + num_classes
    stride = inp_dim // G
    p = pred.reshape(N, G * G * A, B)
    gy, gx = jnp.meshgrid(jnp.arange(G, dtype=jnp.float32),
                          jnp.arange(G, dtype=jnp.float32), indexing="ij")
    xo = jnp.repeat(gx.reshape(-1), A)
    yo = jnp.repeat(gy.reshape(-1), A)
    anc = jnp.asarray(anchors, jnp.float32) / stride
    aw = jnp.tile(anc[:, 0], G * G)
    ah = jnp.tile(anc[:, 1], G * G)
    sig = jax.nn.sigmoid(p)
    bx = (sig[..., 0] + xo) * stride
    by = (sig[..., 1] + yo) * stride
    bw = jnp.exp(p[..., 2]) * aw * stride
    bh = jnp.exp(p[..., 3]) * ah * stride
    return jnp.concatenate([jnp.stack([bx, by, bw, bh], axis=-1), sig[..., 4:]],
                           axis=-1)


# ----------------------------------------------------------------------------
# Parameter init (mirrors create_modules bookkeeping) and forward pass
# ----------------------------------------------------------------------------
def init_params(blocks, key):
    prev_filters = 3
    output_filters = []
    filters = 0
    params = []
    for index, b in enumerate(blocks[1:]):
        if b["type"] == "convolutional":
            bn = int(b["batch_normalize"]) if "batch_normalize" in b else 0
            filters = int(b["filters"])
            k = int(b["size"])
            key, k1, k2, k3, k4, k5 = jax.random.split(key, 6)
            fan_in = prev_filters * k * k
            w = jax.random.normal(k1, (filters, prev_filters, k, k),
                                  jnp.float32) / jnp.sqrt(fan_in)
            if bn:
                # eval-mode BatchNorm folded into per-channel scale/shift
                gamma = jax.random.uniform(k2, (filters,), jnp.float32, 0.5, 1.5)
                beta = 0.1 * jax.random.normal(k3, (filters,), jnp.float32)
                rmean = 0.1 * jax.random.normal(k4, (filters,), jnp.float32)
                rvar = jax.random.uniform(k5, (filters,), jnp.float32, 0.5, 1.5)
                scale = gamma / jnp.sqrt(rvar + 1e-5)
                shift = beta - rmean * scale
            else:
                bias = 0.1 * jax.random.normal(k2, (filters,), jnp.float32)
                scale = jnp.ones((filters,), jnp.float32)
                shift = bias
            params.append({"w": w, "scale": scale, "shift": shift})
        elif b["type"] == "route":
            layers = [int(a) for a in b["layers"].split(",")]
            start = layers[0]
            end = layers[1] if len(layers) > 1 else 0
            if start > 0:
                start -= index
            if end > 0:
                end -= index
            if end < 0:
                filters = output_filters[index + start] + output_filters[index + end]
            else:
                filters = output_filters[index + start]
            params.append(None)
        else:
            params.append(None)
        prev_filters = filters
        output_filters.append(filters)
    return params


def _consumer_map(layers):
    consumers = {i: set() for i in range(len(layers))}
    for i, b in enumerate(layers):
        t = b["type"]
        if t == "route":
            for l in [int(a) for a in b["layers"].split(",")]:
                consumers[i + l if l < 0 else l].add(i)
        elif t == "shortcut":
            consumers[i - 1].add(i)
            consumers[i + int(b["from"])].add(i)
        elif i > 0:
            consumers[i - 1].add(i)
    return consumers


def darknet_forward(blocks, params, x_nchw):
    """Reproduces Darknet.forward(x, CUDA) -> detections (N, n_boxes, 5+nc)."""
    inp_dim = int(blocks[0]["height"])
    layers = blocks[1:]
    n = len(layers)
    consumers = _consumer_map(layers)

    x = jnp.transpose(x_nchw, (0, 2, 3, 1))          # NCHW -> NHWC once
    outputs = {}
    detections = None
    fused = set()   # layers whose work got fused into the preceding conv

    for i, b in enumerate(layers):
        t = b["type"]
        if t == "convolutional":
            p = params[i]
            ksz = int(b["size"])
            stride = int(b["stride"])
            pad = (ksz - 1) // 2 if int(b["pad"]) else 0
            leaky = b["activation"] == "leaky"
            residual = None
            yolo = None
            # Fuse a following shortcut / yolo into this conv's epilogue when
            # this conv's raw output has no other consumers.
            if i + 1 < n and consumers[i] == {i + 1}:
                nb = layers[i + 1]
                if nb["type"] == "shortcut":
                    residual = outputs[i + 1 + int(nb["from"])]
                    fused.add(i + 1)
                elif nb["type"] == "yolo":
                    mask = [int(m) for m in nb["mask"].split(",")]
                    af = [int(a) for a in nb["anchors"].split(",")]
                    anchors = [(af[2 * m], af[2 * m + 1]) for m in mask]
                    yolo = {"anchors": anchors,
                            "num_classes": int(nb["classes"]),
                            "inp_dim": inp_dim}
                    fused.add(i + 1)
            x = conv_layer(x, p, stride, pad, leaky, residual=residual, yolo=yolo)
        elif t == "upsample":
            x = upsample_bilinear_x2(x)
        elif t == "route":
            ls = [int(a) for a in b["layers"].split(",")]
            if len(ls) == 1:
                x = outputs[i + ls[0] if ls[0] < 0 else ls[0]]
            else:
                l0 = i + ls[0] if ls[0] < 0 else ls[0]
                l1 = i + ls[1] if ls[1] < 0 else ls[1]
                x = jnp.concatenate([outputs[l0], outputs[l1]], axis=-1)
        elif t == "shortcut":
            if i in fused:
                x = outputs[i - 1]          # sum already produced in conv epilogue
            else:
                x = outputs[i - 1] + outputs[i + int(b["from"])]
        elif t == "yolo":
            if i in fused:
                x = outputs[i - 1]          # detections produced in conv epilogue
            else:
                mask = [int(m) for m in b["mask"].split(",")]
                af = [int(a) for a in b["anchors"].split(",")]
                anchors = [(af[2 * m], af[2 * m + 1]) for m in mask]
                x = predict_transform_jax(x, inp_dim, anchors, int(b["classes"]))
            detections = x if detections is None else jnp.concatenate(
                [detections, x], axis=1)
        outputs[i] = x
    return detections


# TODO(synk): load_weights (reading a .weights binary) has no in-script
# equivalent; weights are deterministically random-initialized instead.

if __name__ == "__main__":
    blocks = parse_cfg_text(CFG)
    key = jax.random.PRNGKey(0)
    key, pkey, xkey = jax.random.split(key, 3)
    params = init_params(blocks, pkey)

    # input matches [net]: channels=3, height=width=16, batch=2 (NCHW like torch)
    x = jax.random.normal(xkey, (2, 3, 16, 16), jnp.float32)

    fwd = jax.jit(lambda inp: darknet_forward(blocks, params, inp))
    det = jax.block_until_ready(fwd(x))

    # head1: 4x4 grid * 3 anchors = 48 boxes; head2: 8x8 * 3 = 192; total 240
    assert det.shape == (2, 240, 7), det.shape
    assert bool(jnp.all(jnp.isfinite(det)))
    print("KERNEL_OK")
</pallas_src>

<mosaic_0001>
module attributes {stable_mosaic.version = 11 : i64} {
  func.func @conv_gemm_kernel(%arg0: i32, %arg1: i32, %arg2: i32, %arg3: memref<256x128xbf16, #tpu.memory_space<vmem>>, %arg4: memref<128x128xbf16, #tpu.memory_space<vmem>>, %arg5: memref<1x128xf32, #tpu.memory_space<vmem>>, %arg6: memref<1x128xf32, #tpu.memory_space<vmem>>, %arg7: memref<256x128xf32, #tpu.memory_space<vmem>>, %arg8: memref<256x128xf32, #tpu.memory_space<vmem>>) attributes {dimension_semantics = [#tpu.dimension_semantics<parallel>, #tpu.dimension_semantics<parallel>, #tpu.dimension_semantics<arbitrary>], iteration_bounds = array<i64: 2, 1, 1>, scalar_prefetch = 0 : i64, scratch_operands = 1 : i64, tpu.core_type = #tpu.core_type<tc>, window_params = [{transform_indices = @transform_0, window_bounds = array<i64: 256, 128>}, {transform_indices = @transform_1, window_bounds = array<i64: 128, 128>}, {transform_indices = @transform_2, window_bounds = array<i64: 1, 128>}, {transform_indices = @transform_3, window_bounds = array<i64: 1, 128>}, {transform_indices = @transform_4, window_bounds = array<i64: 256, 128>}]} {
    %c0_i32 = arith.constant 0 : i32
    %0 = arith.cmpi eq, %arg2, %c0_i32 : i32
    %1 = arith.extui %0 : i1 to i32
    %c0_i32_0 = arith.constant 0 : i32
    %2 = arith.cmpi ne, %1, %c0_i32_0 : i32
    scf.if %2 {
      %cst_10 = arith.constant 0.000000e+00 : f32
      %12 = vector.broadcast %cst_10 : f32 to vector<256x128xf32>
      %c0_11 = arith.constant 0 : index
      %c0_12 = arith.constant 0 : index
      %13 = vector.load %arg8[%c0_11, %c0_12] : memref<256x128xf32, #tpu.memory_space<vmem>>, vector<256x128xf32>
      tpu.vector_store %arg8[%c0_11, %c0_12], %12 {strides = array<i32>} : memref<256x128xf32, #tpu.memory_space<vmem>>, vector<256x128xf32>,
    } else {
    }
    %c0 = arith.constant 0 : index
    %c0_1 = arith.constant 0 : index
    %3 = vector.load %arg8[%c0, %c0_1] : memref<256x128xf32, #tpu.memory_space<vmem>>, vector<256x128xf32>
    %c0_2 = arith.constant 0 : index
    %c0_3 = arith.constant 0 : index
    %4 = vector.load %arg3[%c0_2, %c0_3] : memref<256x128xbf16, #tpu.memory_space<vmem>>, vector<256x128xbf16>
    %c0_4 = arith.constant 0 : index
    %c0_5 = arith.constant 0 : index
    %5 = vector.load %arg4[%c0_4, %c0_5] : memref<128x128xbf16, #tpu.memory_space<vmem>>, vector<128x128xbf16>
    %cst = arith.constant dense<0.000000e+00> : vector<256x128xf32>
    %6 = tpu.matmul %4, %5, %cst {dimension_numbers = #tpu.dot_dimension_numbers<[1], [0], [0], [1], [0, 0, 1, 1], [], []>} : vector<256x128xbf16>, vector<128x128xbf16>, vector<256x128xf32> -> vector<256x128xf32>
    %7 = arith.addf %3, %6 : vector<256x128xf32>
    %c0_6 = arith.constant 0 : index
    %c0_7 = arith.constant 0 : index
    %8 = vector.load %arg8[%c0_6, %c0_7] : memref<256x128xf32, #tpu.memory_space<vmem>>, vector<256x128xf32>
    tpu.vector_store %arg8[%c0_6, %c0_7], %7 {strides = array<i32>} : memref<256x128xf32, #tpu.memory_space<vmem>>, vector<256x128xf32>,
    %c0_i32_8 = arith.constant 0 : i32
    %9 = arith.cmpi eq, %arg2, %c0_i32_8 : i32
    %10 = arith.extui %9 : i1 to i32
    %c0_i32_9 = arith.constant 0 : i32
    %11 = arith.cmpi ne, %10, %c0_i32_9 : i32
    scf.if %11 {
      %c0_10 = arith.constant 0 : index
      %c0_11 = arith.constant 0 : index
      %12 = vector.load %arg8[%c0_10, %c0_11] : memref<256x128xf32, #tpu.memory_space<vmem>>, vector<256x128xf32>
      %c0_12 = arith.constant 0 : index
      %c0_13 = arith.constant 0 : index
      %13 = vector.load %arg5[%c0_12, %c0_13] : memref<1x128xf32, #tpu.memory_space<vmem>>, vector<1x128xf32>
      %14 = vector.broadcast %13 : vector<1x128xf32> to vector<256x128xf32>
      %15 = arith.mulf %12, %14 : vector<256x128xf32>
      %c0_14 = arith.constant 0 : index
      %c0_15 = arith.constant 0 : index
      %16 = vector.load %arg6[%c0_14, %c0_15] : memref<1x128xf32, #tpu.memory_space<vmem>>, vector<1x128xf32>
      %17 = vector.broadcast %16 : vector<1x128xf32> to vector<256x128xf32>
      %18 = arith.addf %15, %17 : vector<256x128xf32>
      %cst_16 = arith.constant 0.000000e+00 : f32
      %19 = vector.broadcast %cst_16 : f32 to vector<256x128xf32>
      %20 = arith.cmpf ogt, %18, %19 : vector<256x128xf32>
      %cst_17 = arith.constant 1.000000e-01 : f32
      %21 = vector.broadcast %cst_17 : f32 to vector<256x128xf32>
      %22 = arith.mulf %21, %18 : vector<256x128xf32>
      %23 = arith.select %20, %18, %22 : vector<256x128xi1>, vector<256x128xf32>
      %c0_18 = arith.constant 0 : index
      %c0_19 = arith.constant 0 : index
      %24 = vector.load %arg7[%c0_18, %c0_19] : memref<256x128xf32, #tpu.memory_space<vmem>>, vector<256x128xf32>
      tpu.vector_store %arg7[%c0_18, %c0_19], %23 {strides = array<i32>} : memref<256x128xf32, #tpu.memory_space<vmem>>, vector<256x128xf32>,
    } else {
    }
    return
  }
  func.func @transform_0(%arg0: i32, %arg1: i32, %arg2: i32) -> (i32, i32) {
    %c0_i32 = arith.constant 0 : i32
    return %arg0, %arg2 : i32, i32
  }
  func.func @transform_1(%arg0: i32, %arg1: i32, %arg2: i32) -> (i32, i32) {
    %c0_i32 = arith.constant 0 : i32
    return %arg2, %arg1 : i32, i32
  }
  func.func @transform_2(%arg0: i32, %arg1: i32, %arg2: i32) -> (i32, i32) {
    %c0_i32 = arith.constant 0 : i32
    %c0_i32_0 = arith.constant 0 : i32
    return %c0_i32, %arg1 : i32, i32
  }
  func.func @transform_3(%arg0: i32, %arg1: i32, %arg2: i32) -> (i32, i32) {
    %c0_i32 = arith.constant 0 : i32
    %c0_i32_0 = arith.constant 0 : i32
    return %c0_i32, %arg1 : i32, i32
  }
  func.func @transform_4(%arg0: i32, %arg1: i32, %arg2: i32) -> (i32, i32) {
    %c0_i32 = arith.constant 0 : i32
    return %arg0, %arg1 : i32, i32
  }
}

module attributes {stable_mosaic.version = 11 : i64} {
  func.func @conv_gemm_kernel(%arg0: i32, %arg1: i32, %arg2: i32, %arg3: memref<128x128xbf16, #tpu.memory_space<vmem>>, %arg4: memref<128x128xbf16, #tpu.memory_space<vmem>>, %arg5: memref<1x128xf32, #tpu.memory_space<vmem>>, %arg6: memref<1x128xf32, #tpu.memory_space<vmem>>, %arg7: memref<128x128xf32, #tpu.memory_space<vmem>>, %arg8: memref<128x128xf32, #tpu.memory_space<vmem>>) attributes {dimension_semantics = [#tpu.dimension_semantics<parallel>, #tpu.dimension_semantics<parallel>, #tpu.dimension_semantics<arbitrary>], iteration_bounds = array<i64: 1, 1, 1>, scalar_prefetch = 0 : i64, scratch_operands = 1 : i64, tpu.core_type = #tpu.core_type<tc>, window_params = [{transform_indices = @transform_0, window_bounds = array<i64: 128, 128>}, {transform_indices = @transform_1, window_bounds = array<i64: 128, 128>}, {transform_indices = @transform_2, window_bounds = array<i64: 1, 128>}, {transform_indices = @transform_3, window_bounds = array<i64: 1, 128>}, {transform_indices = @transform_4, window_bounds = array<i64: 128, 128>}]} {
    %c0_i32 = arith.constant 0 : i32
    %0 = arith.cmpi eq, %arg2, %c0_i32 : i32
    %1 = arith.extui %0 : i1 to i32
    %c0_i32_0 = arith.constant 0 : i32
    %2 = arith.cmpi ne, %1, %c0_i32_0 : i32
    scf.if %2 {
      %cst_10 = arith.constant 0.000000e+00 : f32
      %12 = vector.broadcast %cst_10 : f32 to vector<128x128xf32>
      %c0_11 = arith.constant 0 : index
      %c0_12 = arith.constant 0 : index
      %13 = vector.load %arg8[%c0_11, %c0_12] : memref<128x128xf32, #tpu.memory_space<vmem>>, vector<128x128xf32>
      tpu.vector_store %arg8[%c0_11, %c0_12], %12 {strides = array<i32>} : memref<128x128xf32, #tpu.memory_space<vmem>>, vector<128x128xf32>,
    } else {
    }
    %c0 = arith.constant 0 : index
    %c0_1 = arith.constant 0 : index
    %3 = vector.load %arg8[%c0, %c0_1] : memref<128x128xf32, #tpu.memory_space<vmem>>, vector<128x128xf32>
    %c0_2 = arith.constant 0 : index
    %c0_3 = arith.constant 0 : index
    %4 = vector.load %arg3[%c0_2, %c0_3] : memref<128x128xbf16, #tpu.memory_space<vmem>>, vector<128x128xbf16>
    %c0_4 = arith.constant 0 : index
    %c0_5 = arith.constant 0 : index
    %5 = vector.load %arg4[%c0_4, %c0_5] : memref<128x128xbf16, #tpu.memory_space<vmem>>, vector<128x128xbf16>
    %cst = arith.constant dense<0.000000e+00> : vector<128x128xf32>
    %6 = tpu.matmul %4, %5, %cst {dimension_numbers = #tpu.dot_dimension_numbers<[1], [0], [0], [1], [0, 0, 1, 1], [], []>} : vector<128x128xbf16>, vector<128x128xbf16>, vector<128x128xf32> -> vector<128x128xf32>
    %7 = arith.addf %3, %6 : vector<128x128xf32>
    %c0_6 = arith.constant 0 : index
    %c0_7 = arith.constant 0 : index
    %8 = vector.load %arg8[%c0_6, %c0_7] : memref<128x128xf32, #tpu.memory_space<vmem>>, vector<128x128xf32>
    tpu.vector_store %arg8[%c0_6, %c0_7], %7 {strides = array<i32>} : memref<128x128xf32, #tpu.memory_space<vmem>>, vector<128x128xf32>,
    %c0_i32_8 = arith.constant 0 : i32
    %9 = arith.cmpi eq, %arg2, %c0_i32_8 : i32
    %10 = arith.extui %9 : i1 to i32
    %c0_i32_9 = arith.constant 0 : i32
    %11 = arith.cmpi ne, %10, %c0_i32_9 : i32
    scf.if %11 {
      %c0_10 = arith.constant 0 : index
      %c0_11 = arith.constant 0 : index
      %12 = vector.load %arg8[%c0_10, %c0_11] : memref<128x128xf32, #tpu.memory_space<vmem>>, vector<128x128xf32>
      %c0_12 = arith.constant 0 : index
      %c0_13 = arith.constant 0 : index
      %13 = vector.load %arg5[%c0_12, %c0_13] : memref<1x128xf32, #tpu.memory_space<vmem>>, vector<1x128xf32>
      %14 = vector.broadcast %13 : vector<1x128xf32> to vector<128x128xf32>
      %15 = arith.mulf %12, %14 : vector<128x128xf32>
      %c0_14 = arith.constant 0 : index
      %c0_15 = arith.constant 0 : index
      %16 = vector.load %arg6[%c0_14, %c0_15] : memref<1x128xf32, #tpu.memory_space<vmem>>, vector<1x128xf32>
      %17 = vector.broadcast %16 : vector<1x128xf32> to vector<128x128xf32>
      %18 = arith.addf %15, %17 : vector<128x128xf32>
      %cst_16 = arith.constant 0.000000e+00 : f32
      %19 = vector.broadcast %cst_16 : f32 to vector<128x128xf32>
      %20 = arith.cmpf ogt, %18, %19 : vector<128x128xf32>
      %cst_17 = arith.constant 1.000000e-01 : f32
      %21 = vector.broadcast %cst_17 : f32 to vector<128x128xf32>
      %22 = arith.mulf %21, %18 : vector<128x128xf32>
      %23 = arith.select %20, %18, %22 : vector<128x128xi1>, vector<128x128xf32>
      %c0_18 = arith.constant 0 : index
      %c0_19 = arith.constant 0 : index
      %24 = vector.load %arg7[%c0_18, %c0_19] : memref<128x128xf32, #tpu.memory_space<vmem>>, vector<128x128xf32>
      tpu.vector_store %arg7[%c0_18, %c0_19], %23 {strides = array<i32>} : memref<128x128xf32, #tpu.memory_space<vmem>>, vector<128x128xf32>,
    } else {
    }
    return
  }
  func.func @transform_0(%arg0: i32, %arg1: i32, %arg2: i32) -> (i32, i32) {
    %c0_i32 = arith.constant 0 : i32
    return %arg0, %arg2 : i32, i32
  }
  func.func @transform_1(%arg0: i32, %arg1: i32, %arg2: i32) -> (i32, i32) {
    %c0_i32 = arith.constant 0 : i32
    return %arg2, %arg1 : i32, i32
  }
  func.func @transform_2(%arg0: i32, %arg1: i32, %arg2: i32) -> (i32, i32) {
    %c0_i32 = arith.constant 0 : i32
    %c0_i32_0 = arith.constant 0 : i32
    return %c0_i32, %arg1 : i32, i32
  }
  func.func @transform_3(%arg0: i32, %arg1: i32, %arg2: i32) -> (i32, i32) {
    %c0_i32 = arith.constant 0 : i32
    %c0_i32_0 = arith.constant 0 : i32
    return %c0_i32, %arg1 : i32, i32
  }
  func.func @transform_4(%arg0: i32, %arg1: i32, %arg2: i32) -> (i32, i32) {
    %c0_i32 = arith.constant 0 : i32
    return %arg0, %arg1 : i32, i32
  }
}

module attributes {stable_mosaic.version = 11 : i64} {
  func.func @conv_gemm_kernel(%arg0: i32, %arg1: i32, %arg2: i32, %arg3: memref<128x128xbf16, #tpu.memory_space<vmem>>, %arg4: memref<128x128xbf16, #tpu.memory_space<vmem>>, %arg5: memref<1x128xf32, #tpu.memory_space<vmem>>, %arg6: memref<1x128xf32, #tpu.memory_space<vmem>>, %arg7: memref<128x128xf32, #tpu.memory_space<vmem>>, %arg8: memref<128x128xf32, #tpu.memory_space<vmem>>, %arg9: memref<128x128xf32, #tpu.memory_space<vmem>>) attributes {dimension_semantics = [#tpu.dimension_semantics<parallel>, #tpu.dimension_semantics<parallel>, #tpu.dimension_semantics<arbitrary>], iteration_bounds = array<i64: 1, 1, 1>, scalar_prefetch = 0 : i64, scratch_operands = 1 : i64, tpu.core_type = #tpu.core_type<tc>, window_params = [{transform_indices = @transform_0, window_bounds = array<i64: 128, 128>}, {transform_indices = @transform_1, window_bounds = array<i64: 128, 128>}, {transform_indices = @transform_2, window_bounds = array<i64: 1, 128>}, {transform_indices = @transform_3, window_bounds = array<i64: 1, 128>}, {transform_indices = @transform_4, window_bounds = array<i64: 128, 128>}, {transform_indices = @transform_5, window_bounds = array<i64: 128, 128>}]} {
    %c0_i32 = arith.constant 0 : i32
    %0 = arith.cmpi eq, %arg2, %c0_i32 : i32
    %1 = arith.extui %0 : i1 to i32
    %c0_i32_0 = arith.constant 0 : i32
    %2 = arith.cmpi ne, %1, %c0_i32_0 : i32
    scf.if %2 {
      %cst_10 = arith.constant 0.000000e+00 : f32
      %12 = vector.broadcast %cst_10 : f32 to vector<128x128xf32>
      %c0_11 = arith.constant 0 : index
      %c0_12 = arith.constant 0 : index
      %13 = vector.load %arg9[%c0_11, %c0_12] : memref<128x128xf32, #tpu.memory_space<vmem>>, vector<128x128xf32>
      tpu.vector_store %arg9[%c0_11, %c0_12], %12 {strides = array<i32>} : memref<128x128xf32, #tpu.memory_space<vmem>>, vector<128x128xf32>,
    } else {
    }
    %c0 = arith.constant 0 : index
    %c0_1 = arith.constant 0 : index
    %3 = vector.load %arg9[%c0, %c0_1] : memref<128x128xf32, #tpu.memory_space<vmem>>, vector<128x128xf32>
    %c0_2 = arith.constant 0 : index
    %c0_3 = arith.constant 0 : index
    %4 = vector.load %arg3[%c0_2, %c0_3] : memref<128x128xbf16, #tpu.memory_space<vmem>>, vector<128x128xbf16>
    %c0_4 = arith.constant 0 : index
    %c0_5 = arith.constant 0 : index
    %5 = vector.load %arg4[%c0_4, %c0_5] : memref<128x128xbf16, #tpu.memory_space<vmem>>, vector<128x128xbf16>
    %cst = arith.constant dense<0.000000e+00> : vector<128x128xf32>
    %6 = tpu.matmul %4, %5, %cst {dimension_numbers = #tpu.dot_dimension_numbers<[1], [0], [0], [1], [0, 0, 1, 1], [], []>} : vector<128x128xbf16>, vector<128x128xbf16>, vector<128x128xf32> -> vector<128x128xf32>
    %7 = arith.addf %3, %6 : vector<128x128xf32>
    %c0_6 = arith.constant 0 : index
    %c0_7 = arith.constant 0 : index
    %8 = vector.load %arg9[%c0_6, %c0_7] : memref<128x128xf32, #tpu.memory_space<vmem>>, vector<128x128xf32>
    tpu.vector_store %arg9[%c0_6, %c0_7], %7 {strides = array<i32>} : memref<128x128xf32, #tpu.memory_space<vmem>>, vector<128x128xf32>,
    %c0_i32_8 = arith.constant 0 : i32
    %9 = arith.cmpi eq, %arg2, %c0_i32_8 : i32
    %10 = arith.extui %9 : i1 to i32
    %c0_i32_9 = arith.constant 0 : i32
    %11 = arith.cmpi ne, %10, %c0_i32_9 : i32
    scf.if %11 {
      %c0_10 = arith.constant 0 : index
      %c0_11 = arith.constant 0 : index
      %12 = vector.load %arg9[%c0_10, %c0_11] : memref<128x128xf32, #tpu.memory_space<vmem>>, vector<128x128xf32>
      %c0_12 = arith.constant 0 : index
      %c0_13 = arith.constant 0 : index
      %13 = vector.load %arg5[%c0_12, %c0_13] : memref<1x128xf32, #tpu.memory_space<vmem>>, vector<1x128xf32>
      %14 = vector.broadcast %13 : vector<1x128xf32> to vector<128x128xf32>
      %15 = arith.mulf %12, %14 : vector<128x128xf32>
      %c0_14 = arith.constant 0 : index
      %c0_15 = arith.constant 0 : index
      %16 = vector.load %arg6[%c0_14, %c0_15] : memref<1x128xf32, #tpu.memory_space<vmem>>, vector<1x128xf32>
      %17 = vector.broadcast %16 : vector<1x128xf32> to vector<128x128xf32>
      %18 = arith.addf %15, %17 : vector<128x128xf32>
      %cst_16 = arith.constant 0.000000e+00 : f32
      %19 = vector.broadcast %cst_16 : f32 to vector<128x128xf32>
      %20 = arith.cmpf ogt, %18, %19 : vector<128x128xf32>
      %cst_17 = arith.constant 1.000000e-01 : f32
      %21 = vector.broadcast %cst_17 : f32 to vector<128x128xf32>
      %22 = arith.mulf %21, %18 : vector<128x128xf32>
      %23 = arith.select %20, %18, %22 : vector<128x128xi1>, vector<128x128xf32>
      %c0_18 = arith.constant 0 : index
      %c0_19 = arith.constant 0 : index
      %24 = vector.load %arg7[%c0_18, %c0_19] : memref<128x128xf32, #tpu.memory_space<vmem>>, vector<128x128xf32>
      %25 = arith.addf %23, %24 : vector<128x128xf32>
      %c0_20 = arith.constant 0 : index
      %c0_21 = arith.constant 0 : index
      %26 = vector.load %arg8[%c0_20, %c0_21] : memref<128x128xf32, #tpu.memory_space<vmem>>, vector<128x128xf32>
      tpu.vector_store %arg8[%c0_20, %c0_21], %25 {strides = array<i32>} : memref<128x128xf32, #tpu.memory_space<vmem>>, vector<128x128xf32>,
    } else {
    }
    return
  }
  func.func @transform_0(%arg0: i32, %arg1: i32, %arg2: i32) -> (i32, i32) {
    %c0_i32 = arith.constant 0 : i32
    return %arg0, %arg2 : i32, i32
  }
  func.func @transform_1(%arg0: i32, %arg1: i32, %arg2: i32) -> (i32, i32) {
    %c0_i32 = arith.constant 0 : i32
    return %arg2, %arg1 : i32, i32
  }
  func.func @transform_2(%arg0: i32, %arg1: i32, %arg2: i32) -> (i32, i32) {
    %c0_i32 = arith.constant 0 : i32
    %c0_i32_0 = arith.constant 0 : i32
    return %c0_i32, %arg1 : i32, i32
  }
  func.func @transform_3(%arg0: i32, %arg1: i32, %arg2: i32) -> (i32, i32) {
    %c0_i32 = arith.constant 0 : i32
    %c0_i32_0 = arith.constant 0 : i32
    return %c0_i32, %arg1 : i32, i32
  }
  func.func @transform_4(%arg0: i32, %arg1: i32, %arg2: i32) -> (i32, i32) {
    %c0_i32 = arith.constant 0 : i32
    return %arg0, %arg1 : i32, i32
  }
  func.func @transform_5(%arg0: i32, %arg1: i32, %arg2: i32) -> (i32, i32) {
    %c0_i32 = arith.constant 0 : i32
    return %arg0, %arg1 : i32, i32
  }
}

module attributes {stable_mosaic.version = 11 : i64} {
  func.func @conv_gemm_kernel(%arg0: i32, %arg1: i32, %arg2: i32, %arg3: memref<32x128xbf16, #tpu.memory_space<vmem>>, %arg4: memref<128x128xbf16, #tpu.memory_space<vmem>>, %arg5: memref<1x128xf32, #tpu.memory_space<vmem>>, %arg6: memref<1x128xf32, #tpu.memory_space<vmem>>, %arg7: memref<32x128xf32, #tpu.memory_space<vmem>>, %arg8: memref<32x128xf32, #tpu.memory_space<vmem>>) attributes {dimension_semantics = [#tpu.dimension_semantics<parallel>, #tpu.dimension_semantics<parallel>, #tpu.dimension_semantics<arbitrary>], iteration_bounds = array<i64: 1, 1, 1>, scalar_prefetch = 0 : i64, scratch_operands = 1 : i64, tpu.core_type = #tpu.core_type<tc>, window_params = [{transform_indices = @transform_0, window_bounds = array<i64: 32, 128>}, {transform_indices = @transform_1, window_bounds = array<i64: 128, 128>}, {transform_indices = @transform_2, window_bounds = array<i64: 1, 128>}, {transform_indices = @transform_3, window_bounds = array<i64: 1, 128>}, {transform_indices = @transform_4, window_bounds = array<i64: 32, 128>}]} {
    %c0_i32 = arith.constant 0 : i32
    %0 = arith.cmpi eq, %arg2, %c0_i32 : i32
    %1 = arith.extui %0 : i1 to i32
    %c0_i32_0 = arith.constant 0 : i32
    %2 = arith.cmpi ne, %1, %c0_i32_0 : i32
    scf.if %2 {
      %cst_10 = arith.constant 0.000000e+00 : f32
      %12 = vector.broadcast %cst_10 : f32 to vector<32x128xf32>
      %c0_11 = arith.constant 0 : index
      %c0_12 = arith.constant 0 : index
      %13 = vector.load %arg8[%c0_11, %c0_12] : memref<32x128xf32, #tpu.memory_space<vmem>>, vector<32x128xf32>
      tpu.vector_store %arg8[%c0_11, %c0_12], %12 {strides = array<i32>} : memref<32x128xf32, #tpu.memory_space<vmem>>, vector<32x128xf32>,
    } else {
    }
    %c0 = arith.constant 0 : index
    %c0_1 = arith.constant 0 : index
    %3 = vector.load %arg8[%c0, %c0_1] : memref<32x128xf32, #tpu.memory_space<vmem>>, vector<32x128xf32>
    %c0_2 = arith.constant 0 : index
    %c0_3 = arith.constant 0 : index
    %4 = vector.load %arg3[%c0_2, %c0_3] : memref<32x128xbf16, #tpu.memory_space<vmem>>, vector<32x128xbf16>
    %c0_4 = arith.constant 0 : index
    %c0_5 = arith.constant 0 : index
    %5 = vector.load %arg4[%c0_4, %c0_5] : memref<128x128xbf16, #tpu.memory_space<vmem>>, vector<128x128xbf16>
    %cst = arith.constant dense<0.000000e+00> : vector<32x128xf32>
    %6 = tpu.matmul %4, %5, %cst {dimension_numbers = #tpu.dot_dimension_numbers<[1], [0], [0], [1], [0, 0, 1, 1], [], []>} : vector<32x128xbf16>, vector<128x128xbf16>, vector<32x128xf32> -> vector<32x128xf32>
    %7 = arith.addf %3, %6 : vector<32x128xf32>
    %c0_6 = arith.constant 0 : index
    %c0_7 = arith.constant 0 : index
    %8 = vector.load %arg8[%c0_6, %c0_7] : memref<32x128xf32, #tpu.memory_space<vmem>>, vector<32x128xf32>
    tpu.vector_store %arg8[%c0_6, %c0_7], %7 {strides = array<i32>} : memref<32x128xf32, #tpu.memory_space<vmem>>, vector<32x128xf32>,
    %c0_i32_8 = arith.constant 0 : i32
    %9 = arith.cmpi eq, %arg2, %c0_i32_8 : i32
    %10 = arith.extui %9 : i1 to i32
    %c0_i32_9 = arith.constant 0 : i32
    %11 = arith.cmpi ne, %10, %c0_i32_9 : i32
    scf.if %11 {
      %c0_10 = arith.constant 0 : index
      %c0_11 = arith.constant 0 : index
      %12 = vector.load %arg8[%c0_10, %c0_11] : memref<32x128xf32, #tpu.memory_space<vmem>>, vector<32x128xf32>
      %c0_12 = arith.constant 0 : index
      %c0_13 = arith.constant 0 : index
      %13 = vector.load %arg5[%c0_12, %c0_13] : memref<1x128xf32, #tpu.memory_space<vmem>>, vector<1x128xf32>
      %14 = vector.broadcast %13 : vector<1x128xf32> to vector<32x128xf32>
      %15 = arith.mulf %12, %14 : vector<32x128xf32>
      %c0_14 = arith.constant 0 : index
      %c0_15 = arith.constant 0 : index
      %16 = vector.load %arg6[%c0_14, %c0_15] : memref<1x128xf32, #tpu.memory_space<vmem>>, vector<1x128xf32>
      %17 = vector.broadcast %16 : vector<1x128xf32> to vector<32x128xf32>
      %18 = arith.addf %15, %17 : vector<32x128xf32>
      %cst_16 = arith.constant 0.000000e+00 : f32
      %19 = vector.broadcast %cst_16 : f32 to vector<32x128xf32>
      %20 = arith.cmpf ogt, %18, %19 : vector<32x128xf32>
      %cst_17 = arith.constant 1.000000e-01 : f32
      %21 = vector.broadcast %cst_17 : f32 to vector<32x128xf32>
      %22 = arith.mulf %21, %18 : vector<32x128xf32>
      %23 = arith.select %20, %18, %22 : vector<32x128xi1>, vector<32x128xf32>
      %c0_18 = arith.constant 0 : index
      %c0_19 = arith.constant 0 : index
      %24 = vector.load %arg7[%c0_18, %c0_19] : memref<32x128xf32, #tpu.memory_space<vmem>>, vector<32x128xf32>
      tpu.vector_store %arg7[%c0_18, %c0_19], %23 {strides = array<i32>} : memref<32x128xf32, #tpu.memory_space<vmem>>, vector<32x128xf32>,
    } else {
    }
    return
  }
  func.func @transform_0(%arg0: i32, %arg1: i32, %arg2: i32) -> (i32, i32) {
    %c0_i32 = arith.constant 0 : i32
    return %arg0, %arg2 : i32, i32
  }
  func.func @transform_1(%arg0: i32, %arg1: i32, %arg2: i32) -> (i32, i32) {
    %c0_i32 = arith.constant 0 : i32
    return %arg2, %arg1 : i32, i32
  }
  func.func @transform_2(%arg0: i32, %arg1: i32, %arg2: i32) -> (i32, i32) {
    %c0_i32 = arith.constant 0 : i32
    %c0_i32_0 = arith.constant 0 : i32
    return %c0_i32, %arg1 : i32, i32
  }
  func.func @transform_3(%arg0: i32, %arg1: i32, %arg2: i32) -> (i32, i32) {
    %c0_i32 = arith.constant 0 : i32
    %c0_i32_0 = arith.constant 0 : i32
    return %c0_i32, %arg1 : i32, i32
  }
  func.func @transform_4(%arg0: i32, %arg1: i32, %arg2: i32) -> (i32, i32) {
    %c0_i32 = arith.constant 0 : i32
    return %arg0, %arg1 : i32, i32
  }
}

module attributes {stable_mosaic.version = 11 : i64} {
  func.func @upsample2x_kernel(%arg0: i32, %arg1: memref<2x4x4x8xf32, #tpu.memory_space<vmem>>, %arg2: memref<2x4x4x8xf32, #tpu.memory_space<vmem>>, %arg3: memref<2x4x4x8xf32, #tpu.memory_space<vmem>>, %arg4: memref<2x4x4x8xf32, #tpu.memory_space<vmem>>, %arg5: memref<2x4x4x8xf32, #tpu.memory_space<vmem>>) attributes {dimension_semantics = [#tpu.dimension_semantics<arbitrary>], iteration_bounds = array<i64: 1>, scalar_prefetch = 0 : i64, scratch_operands = 0 : i64, tpu.core_type = #tpu.core_type<tc>, window_params = [{pipeline_mode = #tpu.pipeline_mode<synchronous>, transform_indices = @transform_0, window_bounds = array<i64: 2, 4, 4, 8>}, {pipeline_mode = #tpu.pipeline_mode<synchronous>, transform_indices = @transform_1, window_bounds = array<i64: 2, 4, 4, 8>}, {pipeline_mode = #tpu.pipeline_mode<synchronous>, transform_indices = @transform_2, window_bounds = array<i64: 2, 4, 4, 8>}, {pipeline_mode = #tpu.pipeline_mode<synchronous>, transform_indices = @transform_3, window_bounds = array<i64: 2, 4, 4, 8>}, {pipeline_mode = #tpu.pipeline_mode<synchronous>, transform_indices = @transform_4, window_bounds = array<i64: 2, 4, 4, 8>}]} {
    %c0 = arith.constant 0 : index
    %c0_0 = arith.constant 0 : index
    %c0_1 = arith.constant 0 : index
    %c0_2 = arith.constant 0 : index
    %0 = vector.load %arg1[%c0, %c0_0, %c0_1, %c0_2] : memref<2x4x4x8xf32, #tpu.memory_space<vmem>>, vector<2x4x4x8xf32>
    %1 = vector.extract_strided_slice %0 {offsets = [0, 0, 0, 0], sizes = [2, 1, 4, 8], strides = [1, 1, 1, 1]} : vector<2x4x4x8xf32> to vector<2x1x4x8xf32>
    %2 = vector.extract_strided_slice %0 {offsets = [0, 0, 0, 0], sizes = [2, 3, 4, 8], strides = [1, 1, 1, 1]} : vector<2x4x4x8xf32> to vector<2x3x4x8xf32>
    %3 = tpu.concatenate %1, %2 in 1 : vector<2x1x4x8xf32>, vector<2x3x4x8xf32> -> vector<2x4x4x8xf32>
    %4 = vector.extract_strided_slice %0 {offsets = [0, 1, 0, 0], sizes = [2, 3, 4, 8], strides = [1, 1, 1, 1]} : vector<2x4x4x8xf32> to vector<2x3x4x8xf32>
    %5 = vector.extract_strided_slice %0 {offsets = [0, 3, 0, 0], sizes = [2, 1, 4, 8], strides = [1, 1, 1, 1]} : vector<2x4x4x8xf32> to vector<2x1x4x8xf32>
    %6 = tpu.concatenate %4, %5 in 1 : vector<2x3x4x8xf32>, vector<2x1x4x8xf32> -> vector<2x4x4x8xf32>
    %cst = arith.constant 2.500000e-01 : f32
    %7 = vector.broadcast %cst : f32 to vector<2x4x4x8xf32>
    %8 = arith.mulf %7, %3 : vector<2x4x4x8xf32>
    %cst_3 = arith.constant 7.500000e-01 : f32
    %9 = vector.broadcast %cst_3 : f32 to vector<2x4x4x8xf32>
    %10 = arith.mulf %9, %0 : vector<2x4x4x8xf32>
    %11 = arith.addf %8, %10 : vector<2x4x4x8xf32>
    %cst_4 = arith.constant 7.500000e-01 : f32
    %12 = vector.broadcast %cst_4 : f32 to vector<2x4x4x8xf32>
    %13 = arith.mulf %12, %0 : vector<2x4x4x8xf32>
    %cst_5 = arith.constant 2.500000e-01 : f32
    %14 = vector.broadcast %cst_5 : f32 to vector<2x4x4x8xf32>
    %15 = arith.mulf %14, %6 : vector<2x4x4x8xf32>
    %16 = arith.addf %13, %15 : vector<2x4x4x8xf32>
    %17 = vector.extract_strided_slice %11 {offsets = [0, 0, 0, 0], sizes = [2, 4, 1, 8], strides = [1, 1, 1, 1]} : vector<2x4x4x8xf32> to vector<2x4x1x8xf32>
    %18 = vector.extract_strided_slice %11 {offsets = [0, 0, 0, 0], sizes = [2, 4, 3, 8], strides = [1, 1, 1, 1]} : vector<2x4x4x8xf32> to vector<2x4x3x8xf32>
    %19 = tpu.concatenate %17, %18 in 2 : vector<2x4x1x8xf32>, vector<2x4x3x8xf32> -> vector<2x4x4x8xf32>
    %20 = vector.extract_strided_slice %11 {offsets = [0, 0, 1, 0], sizes = [2, 4, 3, 8], strides = [1, 1, 1, 1]} : vector<2x4x4x8xf32> to vector<2x4x3x8xf32>
    %21 = vector.extract_strided_slice %11 {offsets = [0, 0, 3, 0], sizes = [2, 4, 1, 8], strides = [1, 1, 1, 1]} : vector<2x4x4x8xf32> to vector<2x4x1x8xf32>
    %22 = tpu.concatenate %20, %21 in 2 : vector<2x4x3x8xf32>, vector<2x4x1x8xf32> -> vector<2x4x4x8xf32>
    %cst_6 = arith.constant 2.500000e-01 : f32
    %23 = vector.broadcast %cst_6 : f32 to vector<2x4x4x8xf32>
    %24 = arith.mulf %23, %19 : vector<2x4x4x8xf32>
    %cst_7 = arith.constant 7.500000e-01 : f32
    %25 = vector.broadcast %cst_7 : f32 to vector<2x4x4x8xf32>
    %26 = arith.mulf %25, %11 : vector<2x4x4x8xf32>
    %27 = arith.addf %24, %26 : vector<2x4x4x8xf32>
    %cst_8 = arith.constant 7.500000e-01 : f32
    %28 = vector.broadcast %cst_8 : f32 to vector<2x4x4x8xf32>
    %29 = arith.mulf %28, %11 : vector<2x4x4x8xf32>
    %cst_9 = arith.constant 2.500000e-01 : f32
    %30 = vector.broadcast %cst_9 : f32 to vector<2x4x4x8xf32>
    %31 = arith.mulf %30, %22 : vector<2x4x4x8xf32>
    %32 = arith.addf %29, %31 : vector<2x4x4x8xf32>
    %33 = vector.extract_strided_slice %16 {offsets = [0, 0, 0, 0], sizes = [2, 4, 1, 8], strides = [1, 1, 1, 1]} : vector<2x4x4x8xf32> to vector<2x4x1x8xf32>
    %34 = vector.extract_strided_slice %16 {offsets = [0, 0, 0, 0], sizes = [2, 4, 3, 8], strides = [1, 1, 1, 1]} : vector<2x4x4x8xf32> to vector<2x4x3x8xf32>
    %35 = tpu.concatenate %33, %34 in 2 : vector<2x4x1x8xf32>, vector<2x4x3x8xf32> -> vector<2x4x4x8xf32>
    %36 = vector.extract_strided_slice %16 {offsets = [0, 0, 1, 0], sizes = [2, 4, 3, 8], strides = [1, 1, 1, 1]} : vector<2x4x4x8xf32> to vector<2x4x3x8xf32>
    %37 = vector.extract_strided_slice %16 {offsets = [0, 0, 3, 0], sizes = [2, 4, 1, 8], strides = [1, 1, 1, 1]} : vector<2x4x4x8xf32> to vector<2x4x1x8xf32>
    %38 = tpu.concatenate %36, %37 in 2 : vector<2x4x3x8xf32>, vector<2x4x1x8xf32> -> vector<2x4x4x8xf32>
    %cst_10 = arith.constant 2.500000e-01 : f32
    %39 = vector.broadcast %cst_10 : f32 to vector<2x4x4x8xf32>
    %40 = arith.mulf %39, %35 : vector<2x4x4x8xf32>
    %cst_11 = arith.constant 7.500000e-01 : f32
    %41 = vector.broadcast %cst_11 : f32 to vector<2x4x4x8xf32>
    %42 = arith.mulf %41, %16 : vector<2x4x4x8xf32>
    %43 = arith.addf %40, %42 : vector<2x4x4x8xf32>
    %cst_12 = arith.constant 7.500000e-01 : f32
    %44 = vector.broadcast %cst_12 : f32 to vector<2x4x4x8xf32>
    %45 = arith.mulf %44, %16 : vector<2x4x4x8xf32>
    %cst_13 = arith.constant 2.500000e-01 : f32
    %46 = vector.broadcast %cst_13 : f32 to vector<2x4x4x8xf32>
    %47 = arith.mulf %46, %38 : vector<2x4x4x8xf32>
    %48 = arith.addf %45, %47 : vector<2x4x4x8xf32>
    %c0_14 = arith.constant 0 : index
    %c0_15 = arith.constant 0 : index
    %c0_16 = arith.constant 0 : index
    %c0_17 = arith.constant 0 : index
    %49 = vector.load %arg2[%c0_14, %c0_15, %c0_16, %c0_17] : memref<2x4x4x8xf32, #tpu.memory_space<vmem>>, vector<2x4x4x8xf32>
    tpu.vector_store %arg2[%c0_14, %c0_15, %c0_16, %c0_17], %27 {strides = array<i32>} : memref<2x4x4x8xf32, #tpu.memory_space<vmem>>, vector<2x4x4x8xf32>,
    %c0_18 = arith.constant 0 : index
    %c0_19 = arith.constant 0 : index
    %c0_20 = arith.constant 0 : index
    %c0_21 = arith.constant 0 : index
    %50 = vector.load %arg3[%c0_18, %c0_19, %c0_20, %c0_21] : memref<2x4x4x8xf32, #tpu.memory_space<vmem>>, vector<2x4x4x8xf32>
    tpu.vector_store %arg3[%c0_18, %c0_19, %c0_20, %c0_21], %32 {strides = array<i32>} : memref<2x4x4x8xf32, #tpu.memory_space<vmem>>, vector<2x4x4x8xf32>,
    %c0_22 = arith.constant 0 : index
    %c0_23 = arith.constant 0 : index
    %c0_24 = arith.constant 0 : index
    %c0_25 = arith.constant 0 : index
    %51 = vector.load %arg4[%c0_22, %c0_23, %c0_24, %c0_25] : memref<2x4x4x8xf32, #tpu.memory_space<vmem>>, vector<2x4x4x8xf32>
    tpu.vector_store %arg4[%c0_22, %c0_23, %c0_24, %c0_25], %43 {strides = array<i32>} : memref<2x4x4x8xf32, #tpu.memory_space<vmem>>, vector<2x4x4x8xf32>,
    %c0_26 = arith.constant 0 : index
    %c0_27 = arith.constant 0 : index
    %c0_28 = arith.constant 0 : index
    %c0_29 = arith.constant 0 : index
    %52 = vector.load %arg5[%c0_26, %c0_27, %c0_28, %c0_29] : memref<2x4x4x8xf32, #tpu.memory_space<vmem>>, vector<2x4x4x8xf32>
    tpu.vector_store %arg5[%c0_26, %c0_27, %c0_28, %c0_29], %48 {strides = array<i32>} : memref<2x4x4x8xf32, #tpu.memory_space<vmem>>, vector<2x4x4x8xf32>,
    return
  }
  func.func @transform_0(%arg0: i32) -> (i32, i32, i32, i32) {
    %c0_i32 = arith.constant 0 : i32
    %c0_i32_0 = arith.constant 0 : i32
    %c0_i32_1 = arith.constant 0 : i32
    %c0_i32_2 = arith.constant 0 : i32
    %c0_i32_3 = arith.constant 0 : i32
    return %c0_i32, %c0_i32_0, %c0_i32_1, %c0_i32_2 : i32, i32, i32, i32
  }
  func.func @transform_1(%arg0: i32) -> (i32, i32, i32, i32) {
    %c0_i32 = arith.constant 0 : i32
    %c0_i32_0 = arith.constant 0 : i32
    %c0_i32_1 = arith.constant 0 : i32
    %c0_i32_2 = arith.constant 0 : i32
    %c0_i32_3 = arith.constant 0 : i32
    return %c0_i32, %c0_i32_0, %c0_i32_1, %c0_i32_2 : i32, i32, i32, i32
  }
  func.func @transform_2(%arg0: i32) -> (i32, i32, i32, i32) {
    %c0_i32 = arith.constant 0 : i32
    %c0_i32_0 = arith.constant 0 : i32
    %c0_i32_1 = arith.constant 0 : i32
    %c0_i32_2 = arith.constant 0 : i32
    %c0_i32_3 = arith.constant 0 : i32
    return %c0_i32, %c0_i32_0, %c0_i32_1, %c0_i32_2 : i32, i32, i32, i32
  }
  func.func @transform_3(%arg0: i32) -> (i32, i32, i32, i32) {
    %c0_i32 = arith.constant 0 : i32
    %c0_i32_0 = arith.constant 0 : i32
    %c0_i32_1 = arith.constant 0 : i32
    %c0_i32_2 = arith.constant 0 : i32
    %c0_i32_3 = arith.constant 0 : i32
    return %c0_i32, %c0_i32_0, %c0_i32_1, %c0_i32_2 : i32, i32, i32, i32
  }
  func.func @transform_4(%arg0: i32) -> (i32, i32, i32, i32) {
    %c0_i32 = arith.constant 0 : i32
    %c0_i32_0 = arith.constant 0 : i32
    %c0_i32_1 = arith.constant 0 : i32
    %c0_i32_2 = arith.constant 0 : i32
    %c0_i32_3 = arith.constant 0 : i32
    return %c0_i32, %c0_i32_0, %c0_i32_1, %c0_i32_2 : i32, i32, i32, i32
  }
}

module attributes {stable_mosaic.version = 11 : i64} {
  func.func @conv_gemm_kernel(%arg0: i32, %arg1: i32, %arg2: i32, %arg3: memref<32x256xbf16, #tpu.memory_space<vmem>>, %arg4: memref<256x128xbf16, #tpu.memory_space<vmem>>, %arg5: memref<1x128xf32, #tpu.memory_space<vmem>>, %arg6: memref<1x128xf32, #tpu.memory_space<vmem>>, %arg7: memref<32x128xf32, #tpu.memory_space<vmem>>, %arg8: memref<32x128xf32, #tpu.memory_space<vmem>>) attributes {dimension_semantics = [#tpu.dimension_semantics<parallel>, #tpu.dimension_semantics<parallel>, #tpu.dimension_semantics<arbitrary>], iteration_bounds = array<i64: 1, 1, 1>, scalar_prefetch = 0 : i64, scratch_operands = 1 : i64, tpu.core_type = #tpu.core_type<tc>, window_params = [{transform_indices = @transform_0, window_bounds = array<i64: 32, 256>}, {transform_indices = @transform_1, window_bounds = array<i64: 256, 128>}, {transform_indices = @transform_2, window_bounds = array<i64: 1, 128>}, {transform_indices = @transform_3, window_bounds = array<i64: 1, 128>}, {transform_indices = @transform_4, window_bounds = array<i64: 32, 128>}]} {
    %c0_i32 = arith.constant 0 : i32
    %0 = arith.cmpi eq, %arg2, %c0_i32 : i32
    %1 = arith.extui %0 : i1 to i32
    %c0_i32_0 = arith.constant 0 : i32
    %2 = arith.cmpi ne, %1, %c0_i32_0 : i32
    scf.if %2 {
      %cst_10 = arith.constant 0.000000e+00 : f32
      %12 = vector.broadcast %cst_10 : f32 to vector<32x128xf32>
      %c0_11 = arith.constant 0 : index
      %c0_12 = arith.constant 0 : index
      %13 = vector.load %arg8[%c0_11, %c0_12] : memref<32x128xf32, #tpu.memory_space<vmem>>, vector<32x128xf32>
      tpu.vector_store %arg8[%c0_11, %c0_12], %12 {strides = array<i32>} : memref<32x128xf32, #tpu.memory_space<vmem>>, vector<32x128xf32>,
    } else {
    }
    %c0 = arith.constant 0 : index
    %c0_1 = arith.constant 0 : index
    %3 = vector.load %arg8[%c0, %c0_1] : memref<32x128xf32, #tpu.memory_space<vmem>>, vector<32x128xf32>
    %c0_2 = arith.constant 0 : index
    %c0_3 = arith.constant 0 : index
    %4 = vector.load %arg3[%c0_2, %c0_3] : memref<32x256xbf16, #tpu.memory_space<vmem>>, vector<32x256xbf16>
    %c0_4 = arith.constant 0 : index
    %c0_5 = arith.constant 0 : index
    %5 = vector.load %arg4[%c0_4, %c0_5] : memref<256x128xbf16, #tpu.memory_space<vmem>>, vector<256x128xbf16>
    %cst = arith.constant dense<0.000000e+00> : vector<32x128xf32>
    %6 = tpu.matmul %4, %5, %cst {dimension_numbers = #tpu.dot_dimension_numbers<[1], [0], [0], [1], [0, 0, 1, 1], [], []>} : vector<32x256xbf16>, vector<256x128xbf16>, vector<32x128xf32> -> vector<32x128xf32>
    %7 = arith.addf %3, %6 : vector<32x128xf32>
    %c0_6 = arith.constant 0 : index
    %c0_7 = arith.constant 0 : index
    %8 = vector.load %arg8[%c0_6, %c0_7] : memref<32x128xf32, #tpu.memory_space<vmem>>, vector<32x128xf32>
    tpu.vector_store %arg8[%c0_6, %c0_7], %7 {strides = array<i32>} : memref<32x128xf32, #tpu.memory_space<vmem>>, vector<32x128xf32>,
    %c0_i32_8 = arith.constant 0 : i32
    %9 = arith.cmpi eq, %arg2, %c0_i32_8 : i32
    %10 = arith.extui %9 : i1 to i32
    %c0_i32_9 = arith.constant 0 : i32
    %11 = arith.cmpi ne, %10, %c0_i32_9 : i32
    scf.if %11 {
      %c0_10 = arith.constant 0 : index
      %c0_11 = arith.constant 0 : index
      %12 = vector.load %arg8[%c0_10, %c0_11] : memref<32x128xf32, #tpu.memory_space<vmem>>, vector<32x128xf32>
      %c0_12 = arith.constant 0 : index
      %c0_13 = arith.constant 0 : index
      %13 = vector.load %arg5[%c0_12, %c0_13] : memref<1x128xf32, #tpu.memory_space<vmem>>, vector<1x128xf32>
      %14 = vector.broadcast %13 : vector<1x128xf32> to vector<32x128xf32>
      %15 = arith.mulf %12, %14 : vector<32x128xf32>
      %c0_14 = arith.constant 0 : index
      %c0_15 = arith.constant 0 : index
      %16 = vector.load %arg6[%c0_14, %c0_15] : memref<1x128xf32, #tpu.memory_space<vmem>>, vector<1x128xf32>
      %17 = vector.broadcast %16 : vector<1x128xf32> to vector<32x128xf32>
      %18 = arith.addf %15, %17 : vector<32x128xf32>
      %cst_16 = arith.constant 0.000000e+00 : f32
      %19 = vector.broadcast %cst_16 : f32 to vector<32x128xf32>
      %20 = arith.cmpf ogt, %18, %19 : vector<32x128xf32>
      %cst_17 = arith.constant 1.000000e-01 : f32
      %21 = vector.broadcast %cst_17 : f32 to vector<32x128xf32>
      %22 = arith.mulf %21, %18 : vector<32x128xf32>
      %23 = arith.select %20, %18, %22 : vector<32x128xi1>, vector<32x128xf32>
      %c0_18 = arith.constant 0 : index
      %c0_19 = arith.constant 0 : index
      %24 = vector.load %arg7[%c0_18, %c0_19] : memref<32x128xf32, #tpu.memory_space<vmem>>, vector<32x128xf32>
      tpu.vector_store %arg7[%c0_18, %c0_19], %23 {strides = array<i32>} : memref<32x128xf32, #tpu.memory_space<vmem>>, vector<32x128xf32>,
    } else {
    }
    return
  }
  func.func @transform_0(%arg0: i32, %arg1: i32, %arg2: i32) -> (i32, i32) {
    %c0_i32 = arith.constant 0 : i32
    return %arg0, %arg2 : i32, i32
  }
  func.func @transform_1(%arg0: i32, %arg1: i32, %arg2: i32) -> (i32, i32) {
    %c0_i32 = arith.constant 0 : i32
    return %arg2, %arg1 : i32, i32
  }
  func.func @transform_2(%arg0: i32, %arg1: i32, %arg2: i32) -> (i32, i32) {
    %c0_i32 = arith.constant 0 : i32
    %c0_i32_0 = arith.constant 0 : i32
    return %c0_i32, %arg1 : i32, i32
  }
  func.func @transform_3(%arg0: i32, %arg1: i32, %arg2: i32) -> (i32, i32) {
    %c0_i32 = arith.constant 0 : i32
    %c0_i32_0 = arith.constant 0 : i32
    return %c0_i32, %arg1 : i32, i32
  }
  func.func @transform_4(%arg0: i32, %arg1: i32, %arg2: i32) -> (i32, i32) {
    %c0_i32 = arith.constant 0 : i32
    return %arg0, %arg1 : i32, i32
  }
}

module attributes {stable_mosaic.version = 11 : i64} {
  func.func @conv_gemm_kernel(%arg0: i32, %arg1: i32, %arg2: i32, %arg3: memref<128x256xbf16, #tpu.memory_space<vmem>>, %arg4: memref<256x128xbf16, #tpu.memory_space<vmem>>, %arg5: memref<1x128xf32, #tpu.memory_space<vmem>>, %arg6: memref<1x128xf32, #tpu.memory_space<vmem>>, %arg7: memref<128x128xf32, #tpu.memory_space<vmem>>, %arg8: memref<128x128xf32, #tpu.memory_space<vmem>>) attributes {dimension_semantics = [#tpu.dimension_semantics<parallel>, #tpu.dimension_semantics<parallel>, #tpu.dimension_semantics<arbitrary>], iteration_bounds = array<i64: 1, 1, 1>, scalar_prefetch = 0 : i64, scratch_operands = 1 : i64, tpu.core_type = #tpu.core_type<tc>, window_params = [{transform_indices = @transform_0, window_bounds = array<i64: 128, 256>}, {transform_indices = @transform_1, window_bounds = array<i64: 256, 128>}, {transform_indices = @transform_2, window_bounds = array<i64: 1, 128>}, {transform_indices = @transform_3, window_bounds = array<i64: 1, 128>}, {transform_indices = @transform_4, window_bounds = array<i64: 128, 128>}]} {
    %c0_i32 = arith.constant 0 : i32
    %0 = arith.cmpi eq, %arg2, %c0_i32 : i32
    %1 = arith.extui %0 : i1 to i32
    %c0_i32_0 = arith.constant 0 : i32
    %2 = arith.cmpi ne, %1, %c0_i32_0 : i32
    scf.if %2 {
      %cst_10 = arith.constant 0.000000e+00 : f32
      %12 = vector.broadcast %cst_10 : f32 to vector<128x128xf32>
      %c0_11 = arith.constant 0 : index
      %c0_12 = arith.constant 0 : index
      %13 = vector.load %arg8[%c0_11, %c0_12] : memref<128x128xf32, #tpu.memory_space<vmem>>, vector<128x128xf32>
      tpu.vector_store %arg8[%c0_11, %c0_12], %12 {strides = array<i32>} : memref<128x128xf32, #tpu.memory_space<vmem>>, vector<128x128xf32>,
    } else {
    }
    %c0 = arith.constant 0 : index
    %c0_1 = arith.constant 0 : index
    %3 = vector.load %arg8[%c0, %c0_1] : memref<128x128xf32, #tpu.memory_space<vmem>>, vector<128x128xf32>
    %c0_2 = arith.constant 0 : index
    %c0_3 = arith.constant 0 : index
    %4 = vector.load %arg3[%c0_2, %c0_3] : memref<128x256xbf16, #tpu.memory_space<vmem>>, vector<128x256xbf16>
    %c0_4 = arith.constant 0 : index
    %c0_5 = arith.constant 0 : index
    %5 = vector.load %arg4[%c0_4, %c0_5] : memref<256x128xbf16, #tpu.memory_space<vmem>>, vector<256x128xbf16>
    %cst = arith.constant dense<0.000000e+00> : vector<128x128xf32>
    %6 = tpu.matmul %4, %5, %cst {dimension_numbers = #tpu.dot_dimension_numbers<[1], [0], [0], [1], [0, 0, 1, 1], [], []>} : vector<128x256xbf16>, vector<256x128xbf16>, vector<128x128xf32> -> vector<128x128xf32>
    %7 = arith.addf %3, %6 : vector<128x128xf32>
    %c0_6 = arith.constant 0 : index
    %c0_7 = arith.constant 0 : index
    %8 = vector.load %arg8[%c0_6, %c0_7] : memref<128x128xf32, #tpu.memory_space<vmem>>, vector<128x128xf32>
    tpu.vector_store %arg8[%c0_6, %c0_7], %7 {strides = array<i32>} : memref<128x128xf32, #tpu.memory_space<vmem>>, vector<128x128xf32>,
    %c0_i32_8 = arith.constant 0 : i32
    %9 = arith.cmpi eq, %arg2, %c0_i32_8 : i32
    %10 = arith.extui %9 : i1 to i32
    %c0_i32_9 = arith.constant 0 : i32
    %11 = arith.cmpi ne, %10, %c0_i32_9 : i32
    scf.if %11 {
      %c0_10 = arith.constant 0 : index
      %c0_11 = arith.constant 0 : index
      %12 = vector.load %arg8[%c0_10, %c0_11] : memref<128x128xf32, #tpu.memory_space<vmem>>, vector<128x128xf32>
      %c0_12 = arith.constant 0 : index
      %c0_13 = arith.constant 0 : index
      %13 = vector.load %arg5[%c0_12, %c0_13] : memref<1x128xf32, #tpu.memory_space<vmem>>, vector<1x128xf32>
      %14 = vector.broadcast %13 : vector<1x128xf32> to vector<128x128xf32>
      %15 = arith.mulf %12, %14 : vector<128x128xf32>
      %c0_14 = arith.constant 0 : index
      %c0_15 = arith.constant 0 : index
      %16 = vector.load %arg6[%c0_14, %c0_15] : memref<1x128xf32, #tpu.memory_space<vmem>>, vector<1x128xf32>
      %17 = vector.broadcast %16 : vector<1x128xf32> to vector<128x128xf32>
      %18 = arith.addf %15, %17 : vector<128x128xf32>
      %cst_16 = arith.constant 0.000000e+00 : f32
      %19 = vector.broadcast %cst_16 : f32 to vector<128x128xf32>
      %20 = arith.cmpf ogt, %18, %19 : vector<128x128xf32>
      %cst_17 = arith.constant 1.000000e-01 : f32
      %21 = vector.broadcast %cst_17 : f32 to vector<128x128xf32>
      %22 = arith.mulf %21, %18 : vector<128x128xf32>
      %23 = arith.select %20, %18, %22 : vector<128x128xi1>, vector<128x128xf32>
      %c0_18 = arith.constant 0 : index
      %c0_19 = arith.constant 0 : index
      %24 = vector.load %arg7[%c0_18, %c0_19] : memref<128x128xf32, #tpu.memory_space<vmem>>, vector<128x128xf32>
      tpu.vector_store %arg7[%c0_18, %c0_19], %23 {strides = array<i32>} : memref<128x128xf32, #tpu.memory_space<vmem>>, vector<128x128xf32>,
    } else {
    }
    return
  }
  func.func @transform_0(%arg0: i32, %arg1: i32, %arg2: i32) -> (i32, i32) {
    %c0_i32 = arith.constant 0 : i32
    return %arg0, %arg2 : i32, i32
  }
  func.func @transform_1(%arg0: i32, %arg1: i32, %arg2: i32) -> (i32, i32) {
    %c0_i32 = arith.constant 0 : i32
    return %arg2, %arg1 : i32, i32
  }
  func.func @transform_2(%arg0: i32, %arg1: i32, %arg2: i32) -> (i32, i32) {
    %c0_i32 = arith.constant 0 : i32
    %c0_i32_0 = arith.constant 0 : i32
    return %c0_i32, %arg1 : i32, i32
  }
  func.func @transform_3(%arg0: i32, %arg1: i32, %arg2: i32) -> (i32, i32) {
    %c0_i32 = arith.constant 0 : i32
    %c0_i32_0 = arith.constant 0 : i32
    return %c0_i32, %arg1 : i32, i32
  }
  func.func @transform_4(%arg0: i32, %arg1: i32, %arg2: i32) -> (i32, i32) {
    %c0_i32 = arith.constant 0 : i32
    return %arg0, %arg1 : i32, i32
  }
}

module attributes {stable_mosaic.version = 11 : i64} {
  func.func @conv_gemm_kernel(%arg0: i32, %arg1: i32, %arg2: i32, %arg3: memref<128x128xbf16, #tpu.memory_space<vmem>>, %arg4: memref<128x128xbf16, #tpu.memory_space<vmem>>, %arg5: memref<1x128xf32, #tpu.memory_space<vmem>>, %arg6: memref<1x128xf32, #tpu.memory_space<vmem>>, %arg7: memref<128x128xf32, #tpu.memory_space<vmem>>, %arg8: memref<1x128xf32, #tpu.memory_space<vmem>>, %arg9: memref<1x128xf32, #tpu.memory_space<vmem>>, %arg10: memref<128x128xf32, #tpu.memory_space<vmem>>, %arg11: memref<128x128xf32, #tpu.memory_space<vmem>>) attributes {dimension_semantics = [#tpu.dimension_semantics<parallel>, #tpu.dimension_semantics<parallel>, #tpu.dimension_semantics<arbitrary>], iteration_bounds = array<i64: 1, 1, 1>, scalar_prefetch = 0 : i64, scratch_operands = 1 : i64, tpu.core_type = #tpu.core_type<tc>, window_params = [{transform_indices = @transform_0, window_bounds = array<i64: 128, 128>}, {transform_indices = @transform_1, window_bounds = array<i64: 128, 128>}, {transform_indices = @transform_2, window_bounds = array<i64: 1, 128>}, {transform_indices = @transform_3, window_bounds = array<i64: 1, 128>}, {transform_indices = @transform_4, window_bounds = array<i64: 128, 128>}, {transform_indices = @transform_5, window_bounds = array<i64: 1, 128>}, {transform_indices = @transform_6, window_bounds = array<i64: 1, 128>}, {transform_indices = @transform_7, window_bounds = array<i64: 128, 128>}]} {
    %c0_i32 = arith.constant 0 : i32
    %0 = arith.cmpi eq, %arg2, %c0_i32 : i32
    %1 = arith.extui %0 : i1 to i32
    %c0_i32_0 = arith.constant 0 : i32
    %2 = arith.cmpi ne, %1, %c0_i32_0 : i32
    scf.if %2 {
      %cst_10 = arith.constant 0.000000e+00 : f32
      %12 = vector.broadcast %cst_10 : f32 to vector<128x128xf32>
      %c0_11 = arith.constant 0 : index
      %c0_12 = arith.constant 0 : index
      %13 = vector.load %arg11[%c0_11, %c0_12] : memref<128x128xf32, #tpu.memory_space<vmem>>, vector<128x128xf32>
      tpu.vector_store %arg11[%c0_11, %c0_12], %12 {strides = array<i32>} : memref<128x128xf32, #tpu.memory_space<vmem>>, vector<128x128xf32>,
    } else {
    }
    %c0 = arith.constant 0 : index
    %c0_1 = arith.constant 0 : index
    %3 = vector.load %arg11[%c0, %c0_1] : memref<128x128xf32, #tpu.memory_space<vmem>>, vector<128x128xf32>
    %c0_2 = arith.constant 0 : index
    %c0_3 = arith.constant 0 : index
    %4 = vector.load %arg3[%c0_2, %c0_3] : memref<128x128xbf16, #tpu.memory_space<vmem>>, vector<128x128xbf16>
    %c0_4 = arith.constant 0 : index
    %c0_5 = arith.constant 0 : index
    %5 = vector.load %arg4[%c0_4, %c0_5] : memref<128x128xbf16, #tpu.memory_space<vmem>>, vector<128x128xbf16>
    %cst = arith.constant dense<0.000000e+00> : vector<128x128xf32>
    %6 = tpu.matmul %4, %5, %cst {dimension_numbers = #tpu.dot_dimension_numbers<[1], [0], [0], [1], [0, 0, 1, 1], [], []>} : vector<128x128xbf16>, vector<128x128xbf16>, vector<128x128xf32> -> vector<128x128xf32>
    %7 = arith.addf %3, %6 : vector<128x128xf32>
    %c0_6 = arith.constant 0 : index
    %c0_7 = arith.constant 0 : index
    %8 = vector.load %arg11[%c0_6, %c0_7] : memref<128x128xf32, #tpu.memory_space<vmem>>, vector<128x128xf32>
    tpu.vector_store %arg11[%c0_6, %c0_7], %7 {strides = array<i32>} : memref<128x128xf32, #tpu.memory_space<vmem>>, vector<128x128xf32>,
    %c0_i32_8 = arith.constant 0 : i32
    %9 = arith.cmpi eq, %arg2, %c0_i32_8 : i32
    %10 = arith.extui %9 : i1 to i32
    %c0_i32_9 = arith.constant 0 : i32
    %11 = arith.cmpi ne, %10, %c0_i32_9 : i32
    scf.if %11 {
      %c0_10 = arith.constant 0 : index
      %c0_11 = arith.constant 0 : index
      %12 = vector.load %arg11[%c0_10, %c0_11] : memref<128x128xf32, #tpu.memory_space<vmem>>, vector<128x128xf32>
      %c0_12 = arith.constant 0 : index
      %c0_13 = arith.constant 0 : index
      %13 = vector.load %arg5[%c0_12, %c0_13] : memref<1x128xf32, #tpu.memory_space<vmem>>, vector<1x128xf32>
      %14 = vector.broadcast %13 : vector<1x128xf32> to vector<128x128xf32>
      %15 = arith.mulf %12, %14 : vector<128x128xf32>
      %c0_14 = arith.constant 0 : index
      %c0_15 = arith.constant 0 : index
      %16 = vector.load %arg6[%c0_14, %c0_15] : memref<1x128xf32, #tpu.memory_space<vmem>>, vector<1x128xf32>
      %17 = vector.broadcast %16 : vector<1x128xf32> to vector<128x128xf32>
      %18 = arith.addf %15, %17 : vector<128x128xf32>
      %c0_16 = arith.constant 0 : index
      %c0_17 = arith.constant 0 : index
      %19 = vector.load %arg9[%c0_16, %c0_17] : memref<1x128xf32, #tpu.memory_space<vmem>>, vector<1x128xf32>
      %20 = arith.negf %18 : vector<128x128xf32>
      %21 = math.exp %20 : vector<128x128xf32>
      %cst_18 = arith.constant 1.000000e+00 : f32
      %22 = vector.broadcast %cst_18 : f32 to vector<128x128xf32>
      %23 = arith.addf %22, %21 : vector<128x128xf32>
      %24 = arith.divf %22, %23 : vector<128x128xf32>
      %c0_19 = arith.constant 0 : index
      %c0_20 = arith.constant 0 : index
      %25 = vector.load %arg7[%c0_19, %c0_20] : memref<128x128xf32, #tpu.memory_space<vmem>>, vector<128x128xf32>
      %26 = arith.addf %24, %25 : vector<128x128xf32>
      %cst_21 = arith.constant 2.000000e+00 : f32
      %27 = vector.broadcast %cst_21 : f32 to vector<128x128xf32>
      %28 = arith.mulf %26, %27 : vector<128x128xf32>
      %29 = math.exp %18 : vector<128x128xf32>
      %c0_22 = arith.constant 0 : index
      %c0_23 = arith.constant 0 : index
      %30 = vector.load %arg8[%c0_22, %c0_23] : memref<1x128xf32, #tpu.memory_space<vmem>>, vector<1x128xf32>
      %31 = vector.broadcast %30 : vector<1x128xf32> to vector<128x128xf32>
      %32 = arith.mulf %29, %31 : vector<128x128xf32>
      %cst_24 = arith.constant 2.000000e+00 : f32
      %33 = vector.broadcast %cst_24 : f32 to vector<128x128xf32>
      %34 = arith.mulf %32, %33 : vector<128x128xf32>
      %cst_25 = arith.constant 1.000000e+00 : f32
      %35 = vector.broadcast %cst_25 : f32 to vector<1x128xf32>
      %36 = arith.cmpf oeq, %19, %35 : vector<1x128xf32>
      %cst_26 = arith.constant 2.000000e+00 : f32
      %37 = vector.broadcast %cst_26 : f32 to vector<1x128xf32>
      %38 = arith.cmpf oeq, %19, %37 : vector<1x128xf32>
      %39 = vector.shape_cast %38 : vector<1x128xi1> to vector<1x128xi1>
      %40 = vector.broadcast %39 : vector<1x128xi1> to vector<128x128xi1>
      %41 = arith.select %40, %34, %24 : vector<128x128xi1>, vector<128x128xf32>
      %42 = vector.shape_cast %36 : vector<1x128xi1> to vector<1x128xi1>
      %43 = vector.broadcast %42 : vector<1x128xi1> to vector<128x128xi1>
      %44 = arith.select %43, %28, %41 : vector<128x128xi1>, vector<128x128xf32>
      %c0_27 = arith.constant 0 : index
      %c0_28 = arith.constant 0 : index
      %45 = vector.load %arg10[%c0_27, %c0_28] : memref<128x128xf32, #tpu.memory_space<vmem>>, vector<128x128xf32>
      tpu.vector_store %arg10[%c0_27, %c0_28], %44 {strides = array<i32>} : memref<128x128xf32, #tpu.memory_space<vmem>>, vector<128x128xf32>,
    } else {
    }
    return
  }
  func.func @transform_0(%arg0: i32, %arg1: i32, %arg2: i32) -> (i32, i32) {
    %c0_i32 = arith.constant 0 : i32
    return %arg0, %arg2 : i32, i32
  }
  func.func @transform_1(%arg0: i32, %arg1: i32, %arg2: i32) -> (i32, i32) {
    %c0_i32 = arith.constant 0 : i32
    return %arg2, %arg1 : i32, i32
  }
  func.func @transform_2(%arg0: i32, %arg1: i32, %arg2: i32) -> (i32, i32) {
    %c0_i32 = arith.constant 0 : i32
    %c0_i32_0 = arith.constant 0 : i32
    return %c0_i32, %arg1 : i32, i32
  }
  func.func @transform_3(%arg0: i32, %arg1: i32, %arg2: i32) -> (i32, i32) {
    %c0_i32 = arith.constant 0 : i32
    %c0_i32_0 = arith.constant 0 : i32
    return %c0_i32, %arg1 : i32, i32
  }
  func.func @transform_4(%arg0: i32, %arg1: i32, %arg2: i32) -> (i32, i32) {
    %c0_i32 = arith.constant 0 : i32
    return %arg0, %arg1 : i32, i32
  }
  func.func @transform_5(%arg0: i32, %arg1: i32, %arg2: i32) -> (i32, i32) {
    %c0_i32 = arith.constant 0 : i32
    %c0_i32_0 = arith.constant 0 : i32
    return %c0_i32, %arg1 : i32, i32
  }
  func.func @transform_6(%arg0: i32, %arg1: i32, %arg2: i32) -> (i32, i32) {
    %c0_i32 = arith.constant 0 : i32
    %c0_i32_0 = arith.constant 0 : i32
    return %c0_i32, %arg1 : i32, i32
  }
  func.func @transform_7(%arg0: i32, %arg1: i32, %arg2: i32) -> (i32, i32) {
    %c0_i32 = arith.constant 0 : i32
    return %arg0, %arg1 : i32, i32
  }
}

module attributes {stable_mosaic.version = 11 : i64} {
  func.func @conv_gemm_kernel(%arg0: i32, %arg1: i32, %arg2: i32, %arg3: memref<32x128xbf16, #tpu.memory_space<vmem>>, %arg4: memref<128x128xbf16, #tpu.memory_space<vmem>>, %arg5: memref<1x128xf32, #tpu.memory_space<vmem>>, %arg6: memref<1x128xf32, #tpu.memory_space<vmem>>, %arg7: memref<32x128xf32, #tpu.memory_space<vmem>>, %arg8: memref<1x128xf32, #tpu.memory_space<vmem>>, %arg9: memref<1x128xf32, #tpu.memory_space<vmem>>, %arg10: memref<32x128xf32, #tpu.memory_space<vmem>>, %arg11: memref<32x128xf32, #tpu.memory_space<vmem>>) attributes {dimension_semantics = [#tpu.dimension_semantics<parallel>, #tpu.dimension_semantics<parallel>, #tpu.dimension_semantics<arbitrary>], iteration_bounds = array<i64: 1, 1, 1>, scalar_prefetch = 0 : i64, scratch_operands = 1 : i64, tpu.core_type = #tpu.core_type<tc>, window_params = [{transform_indices = @transform_0, window_bounds = array<i64: 32, 128>}, {transform_indices = @transform_1, window_bounds = array<i64: 128, 128>}, {transform_indices = @transform_2, window_bounds = array<i64: 1, 128>}, {transform_indices = @transform_3, window_bounds = array<i64: 1, 128>}, {transform_indices = @transform_4, window_bounds = array<i64: 32, 128>}, {transform_indices = @transform_5, window_bounds = array<i64: 1, 128>}, {transform_indices = @transform_6, window_bounds = array<i64: 1, 128>}, {transform_indices = @transform_7, window_bounds = array<i64: 32, 128>}]} {
    %c0_i32 = arith.constant 0 : i32
    %0 = arith.cmpi eq, %arg2, %c0_i32 : i32
    %1 = arith.extui %0 : i1 to i32
    %c0_i32_0 = arith.constant 0 : i32
    %2 = arith.cmpi ne, %1, %c0_i32_0 : i32
    scf.if %2 {
      %cst_10 = arith.constant 0.000000e+00 : f32
      %12 = vector.broadcast %cst_10 : f32 to vector<32x128xf32>
      %c0_11 = arith.constant 0 : index
      %c0_12 = arith.constant 0 : index
      %13 = vector.load %arg11[%c0_11, %c0_12] : memref<32x128xf32, #tpu.memory_space<vmem>>, vector<32x128xf32>
      tpu.vector_store %arg11[%c0_11, %c0_12], %12 {strides = array<i32>} : memref<32x128xf32, #tpu.memory_space<vmem>>, vector<32x128xf32>,
    } else {
    }
    %c0 = arith.constant 0 : index
    %c0_1 = arith.constant 0 : index
    %3 = vector.load %arg11[%c0, %c0_1] : memref<32x128xf32, #tpu.memory_space<vmem>>, vector<32x128xf32>
    %c0_2 = arith.constant 0 : index
    %c0_3 = arith.constant 0 : index
    %4 = vector.load %arg3[%c0_2, %c0_3] : memref<32x128xbf16, #tpu.memory_space<vmem>>, vector<32x128xbf16>
    %c0_4 = arith.constant 0 : index
    %c0_5 = arith.constant 0 : index
    %5 = vector.load %arg4[%c0_4, %c0_5] : memref<128x128xbf16, #tpu.memory_space<vmem>>, vector<128x128xbf16>
    %cst = arith.constant dense<0.000000e+00> : vector<32x128xf32>
    %6 = tpu.matmul %4, %5, %cst {dimension_numbers = #tpu.dot_dimension_numbers<[1], [0], [0], [1], [0, 0, 1, 1], [], []>} : vector<32x128xbf16>, vector<128x128xbf16>, vector<32x128xf32> -> vector<32x128xf32>
    %7 = arith.addf %3, %6 : vector<32x128xf32>
    %c0_6 = arith.constant 0 : index
    %c0_7 = arith.constant 0 : index
    %8 = vector.load %arg11[%c0_6, %c0_7] : memref<32x128xf32, #tpu.memory_space<vmem>>, vector<32x128xf32>
    tpu.vector_store %arg11[%c0_6, %c0_7], %7 {strides = array<i32>} : memref<32x128xf32, #tpu.memory_space<vmem>>, vector<32x128xf32>,
    %c0_i32_8 = arith.constant 0 : i32
    %9 = arith.cmpi eq, %arg2, %c0_i32_8 : i32
    %10 = arith.extui %9 : i1 to i32
    %c0_i32_9 = arith.constant 0 : i32
    %11 = arith.cmpi ne, %10, %c0_i32_9 : i32
    scf.if %11 {
      %c0_10 = arith.constant 0 : index
      %c0_11 = arith.constant 0 : index
      %12 = vector.load %arg11[%c0_10, %c0_11] : memref<32x128xf32, #tpu.memory_space<vmem>>, vector<32x128xf32>
      %c0_12 = arith.constant 0 : index
      %c0_13 = arith.constant 0 : index
      %13 = vector.load %arg5[%c0_12, %c0_13] : memref<1x128xf32, #tpu.memory_space<vmem>>, vector<1x128xf32>
      %14 = vector.broadcast %13 : vector<1x128xf32> to vector<32x128xf32>
      %15 = arith.mulf %12, %14 : vector<32x128xf32>
      %c0_14 = arith.constant 0 : index
      %c0_15 = arith.constant 0 : index
      %16 = vector.load %arg6[%c0_14, %c0_15] : memref<1x128xf32, #tpu.memory_space<vmem>>, vector<1x128xf32>
      %17 = vector.broadcast %16 : vector<1x128xf32> to vector<32x128xf32>
      %18 = arith.addf %15, %17 : vector<32x128xf32>
      %c0_16 = arith.constant 0 : index
      %c0_17 = arith.constant 0 : index
      %19 = vector.load %arg9[%c0_16, %c0_17] : memref<1x128xf32, #tpu.memory_space<vmem>>, vector<1x128xf32>
      %20 = arith.negf %18 : vector<32x128xf32>
      %21 = math.exp %20 : vector<32x128xf32>
      %cst_18 = arith.constant 1.000000e+00 : f32
      %22 = vector.broadcast %cst_18 : f32 to vector<32x128xf32>
      %23 = arith.addf %22, %21 : vector<32x128xf32>
      %24 = arith.divf %22, %23 : vector<32x128xf32>
      %c0_19 = arith.constant 0 : index
      %c0_20 = arith.constant 0 : index
      %25 = vector.load %arg7[%c0_19, %c0_20] : memref<32x128xf32, #tpu.memory_space<vmem>>, vector<32x128xf32>
      %26 = arith.addf %24, %25 : vector<32x128xf32>
      %cst_21 = arith.constant 4.000000e+00 : f32
      %27 = vector.broadcast %cst_21 : f32 to vector<32x128xf32>
      %28 = arith.mulf %26, %27 : vector<32x128xf32>
      %29 = math.exp %18 : vector<32x128xf32>
      %c0_22 = arith.constant 0 : index
      %c0_23 = arith.constant 0 : index
      %30 = vector.load %arg8[%c0_22, %c0_23] : memref<1x128xf32, #tpu.memory_space<vmem>>, vector<1x128xf32>
      %31 = vector.broadcast %30 : vector<1x128xf32> to vector<32x128xf32>
      %32 = arith.mulf %29, %31 : vector<32x128xf32>
      %cst_24 = arith.constant 4.000000e+00 : f32
      %33 = vector.broadcast %cst_24 : f32 to vector<32x128xf32>
      %34 = arith.mulf %32, %33 : vector<32x128xf32>
      %cst_25 = arith.constant 1.000000e+00 : f32
      %35 = vector.broadcast %cst_25 : f32 to vector<1x128xf32>
      %36 = arith.cmpf oeq, %19, %35 : vector<1x128xf32>
      %cst_26 = arith.constant 2.000000e+00 : f32
      %37 = vector.broadcast %cst_26 : f32 to vector<1x128xf32>
      %38 = arith.cmpf oeq, %19, %37 : vector<1x128xf32>
      %39 = vector.shape_cast %38 : vector<1x128xi1> to vector<1x128xi1>
      %40 = vector.broadcast %39 : vector<1x128xi1> to vector<32x128xi1>
      %41 = arith.select %40, %34, %24 : vector<32x128xi1>, vector<32x128xf32>
      %42 = vector.shape_cast %36 : vector<1x128xi1> to vector<1x128xi1>
      %43 = vector.broadcast %42 : vector<1x128xi1> to vector<32x128xi1>
      %44 = arith.select %43, %28, %41 : vector<32x128xi1>, vector<32x128xf32>
      %c0_27 = arith.constant 0 : index
      %c0_28 = arith.constant 0 : index
      %45 = vector.load %arg10[%c0_27, %c0_28] : memref<32x128xf32, #tpu.memory_space<vmem>>, vector<32x128xf32>
      tpu.vector_store %arg10[%c0_27, %c0_28], %44 {strides = array<i32>} : memref<32x128xf32, #tpu.memory_space<vmem>>, vector<32x128xf32>,
    } else {
    }
    return
  }
  func.func @transform_0(%arg0: i32, %arg1: i32, %arg2: i32) -> (i32, i32) {
    %c0_i32 = arith.constant 0 : i32
    return %arg0, %arg2 : i32, i32
  }
  func.func @transform_1(%arg0: i32, %arg1: i32, %arg2: i32) -> (i32, i32) {
    %c0_i32 = arith.constant 0 : i32
    return %arg2, %arg1 : i32, i32
  }
  func.func @transform_2(%arg0: i32, %arg1: i32, %arg2: i32) -> (i32, i32) {
    %c0_i32 = arith.constant 0 : i32
    %c0_i32_0 = arith.constant 0 : i32
    return %c0_i32, %arg1 : i32, i32
  }
  func.func @transform_3(%arg0: i32, %arg1: i32, %arg2: i32) -> (i32, i32) {
    %c0_i32 = arith.constant 0 : i32
    %c0_i32_0 = arith.constant 0 : i32
    return %c0_i32, %arg1 : i32, i32
  }
  func.func @transform_4(%arg0: i32, %arg1: i32, %arg2: i32) -> (i32, i32) {
    %c0_i32 = arith.constant 0 : i32
    return %arg0, %arg1 : i32, i32
  }
  func.func @transform_5(%arg0: i32, %arg1: i32, %arg2: i32) -> (i32, i32) {
    %c0_i32 = arith.constant 0 : i32
    %c0_i32_0 = arith.constant 0 : i32
    return %c0_i32, %arg1 : i32, i32
  }
  func.func @transform_6(%arg0: i32, %arg1: i32, %arg2: i32) -> (i32, i32) {
    %c0_i32 = arith.constant 0 : i32
    %c0_i32_0 = arith.constant 0 : i32
    return %c0_i32, %arg1 : i32, i32
  }
  func.func @transform_7(%arg0: i32, %arg1: i32, %arg2: i32) -> (i32, i32) {
    %c0_i32 = arith.constant 0 : i32
    return %arg0, %arg1 : i32, i32
  }
}

</mosaic_0001>

<llo_original>
// kernel: _lambda_.10
$region0: #{_lambda_.10}
  #allocation0 [shape = 'u32[]', space=smem, size = 0x4, offset = 0x4, fixed_abs, tag = 'smem constant byte address 0x4 - core index']
  #allocation1 [shape = 'u32[144,128]{1,0:T(1,128)}', space=vmem, size = 0x12000, scoped, tag = 'internal scratch']
  #allocation2 [shape = 'f32[256,128]{1,0:T(8,128)}', space=vmem, size = 0x20000, scoped, tag = 'scratch operand']
  %s0 = inlined_call_operand.vmem [shape: bf16[512,128], index: 0, kind: input, shape index: {}]
  %s1 = inlined_call_operand.vmem [shape: bf16[128,128], index: 1, kind: input, shape index: {}]
  %s2 = inlined_call_operand.vmem [shape: f32[1,128], index: 2, kind: input, shape index: {}]
  %s3 = inlined_call_operand.vmem [shape: f32[1,128], index: 3, kind: input, shape index: {}]
  %s4 = inlined_call_operand.vmem [shape: f32[512,128], index: 4, kind: output, shape index: {}]
  %s5 = sld [smem:[#allocation0]]
  $region57: #{_lambda_.10} parent=0
    _
  %s7 = ssub.s32 1, %s5
  %s8 = scalar_select 0, %s7, %s5
  loop: start=0, step=1, limit=4
  $region2: #{_lambda_.10} parent=0 // loop_pre_header
    _
  $region3: #{_lambda_.10} parent=0 // loop_header
    %s10 = sphi 0, %s14
    %p11 = scmp.ge.s32.totalorder %s10, 4
    %s17 = sphi 0, %s36
    %s18 = sphi 0, %s32
    %s19 = sphi 0, %s28
    %s20 = sphi 0, %s17
    %s21 = sphi 0, %s18
    %s22 = sphi 0, %s19
    %s23 = sphi 0, %s20
    %s24 = sphi 0, %s21
    %s25 = sphi 0, %s22
    %s41 = sphi 0, %s43
    %s44 = sphi 0, %s41
    %s45 = sphi 0, %s44
    %s61 = sphi 0, %s45
    %s69 = sphi 0, %s71
    %s72 = sphi 0, %s69
    %s73 = sphi 0, %s72
    %s89 = sphi 0, %s73
    %s95 = sphi 0, %s97
    %s98 = sphi 0, %s95
    %s99 = sphi 0, %s98
    %s115 = sphi 0, %s99
    %s121 = sphi 0, %s123
    %s124 = sphi 0, %s121
    %s125 = sphi 0, %s124
    %s141 = sphi 0, %s125
    %s149 = sphi 0, %s151
    %s152 = sphi 0, %s149
    %s153 = sphi 0, %s152
    %s169 = sphi 0, %s153
  $region4: #{_lambda_.10} parent=0 // loop_header_branch
    %13 = sbr.rel (%p11) target = $region8
  $region5: #{_lambda_.10} parent=0 // loop_body
    %s15 = ssub.s32 %s10, 1
    %s16 = ssub.s32 %s10, 2
    %s26 = sadd.s32 1, %s19
    %p27 = scmp.ge.s32.totalorder %s26, 1
    %s28 = scalar_select %p27, 0, %s26
    %s29 = sadd.s32 1, %s18
    %s30 = scalar_select %p27, %s29, %s18
    %p31 = scmp.ge.s32.totalorder %s30, 1
    %s32 = scalar_select %p31, 0, %s30
    %s33 = sadd.s32 1, %s17
    %s34 = scalar_select %p31, %s33, %s17
    %p35 = scmp.ge.s32.totalorder %s34, 2
    %s36 = scalar_select %p35, 0, %s34
    %s37 = ssub.s32 %s17, %s36
    %s38 = ssub.s32 %s19, %s28
    %s39 = sor.u32 %s37, %s38
    %p40 = scmp.eq.s32.totalorder %s39, 0
    %s42 = sadd.s32 %s41, 1
    %s43 = scalar_select %p40, %s41, %s42
    %p46 = pneg %p40
    %p47 = scmp.eq.s32.totalorder %s10, 1
    %p48 = por %p46, %p47
    %p49 = scmp.ne.s32.totalorder %s41, %s44
    %p50 = scmp.eq.s32.totalorder %s10, 0
    %p51 = por %p49, %p50
    %p52 = scmp.ne.s32.totalorder %s41, %s44
    %p53 = scmp.eq.s32.totalorder %s15, 1
    %p54 = por %p52, %p53
    %p55 = scmp.ne.s32.totalorder %s44, %s45
    %p56 = scmp.eq.s32.totalorder %s15, 0
    %p57 = por %p55, %p56
    %p58 = scmp.ne.s32.totalorder %s44, %s45
    %p59 = scmp.eq.s32.totalorder %s16, 1
    %p60 = por %p58, %p59
    %p62 = scmp.ne.s32.totalorder %s45, %s61
    %p63 = scmp.eq.s32.totalorder %s16, 0
    %p64 = por %p62, %p63
    %s65 = ssub.s32 %s19, %s28
    %s66 = ssub.s32 %s18, %s32
    %s67 = sor.u32 %s65, %s66
    %p68 = scmp.eq.s32.totalorder %s67, 0
    %s70 = sadd.s32 %s69, 1
    %s71 = scalar_select %p68, %s69, %s70
    %p74 = pneg %p68
    %p75 = scmp.eq.s32.totalorder %s10, 1
    %p76 = por %p74, %p75
    %p77 = scmp.ne.s32.totalorder %s69, %s72
    %p78 = scmp.eq.s32.totalorder %s10, 0
    %p79 = por %p77, %p78
    %p80 = scmp.ne.s32.totalorder %s69, %s72
    %p81 = scmp.eq.s32.totalorder %s15, 1
    %p82 = por %p80, %p81
    %p83 = scmp.ne.s32.totalorder %s72, %s73
    %p84 = scmp.eq.s32.totalorder %s15, 0
    %p85 = por %p83, %p84
    %p86 = scmp.ne.s32.totalorder %s72, %s73
    %p87 = scmp.eq.s32.totalorder %s16, 1
    %p88 = por %p86, %p87
    %p90 = scmp.ne.s32.totalorder %s73, %s89
    %p91 = scmp.eq.s32.totalorder %s16, 0
    %p92 = por %p90, %p91
    %s93 = ssub.s32 %s18, %s32
    %p94 = scmp.eq.s32.totalorder %s93, 0
    %s96 = sadd.s32 %s95, 1
    %s97 = scalar_select %p94, %s95, %s96
    %p100 = pneg %p94
    %p101 = scmp.eq.s32.totalorder %s10, 1
    %p102 = por %p100, %p101
    %p103 = scmp.ne.s32.totalorder %s95, %s98
    %p104 = scmp.eq.s32.totalorder %s10, 0
    %p105 = por %p103, %p104
    %p106 = scmp.ne.s32.totalorder %s95, %s98
    %p107 = scmp.eq.s32.totalorder %s15, 1
    %p108 = por %p106, %p107
    %p109 = scmp.ne.s32.totalorder %s98, %s99
    %p110 = scmp.eq.s32.totalorder %s15, 0
    %p111 = por %p109, %p110
    %p112 = scmp.ne.s32.totalorder %s98, %s99
    %p113 = scmp.eq.s32.totalorder %s16, 1
    %p114 = por %p112, %p113
    %p116 = scmp.ne.s32.totalorder %s99, %s115
    %p117 = scmp.eq.s32.totalorder %s16, 0
    %p118 = por %p116, %p117
    %s119 = ssub.s32 %s18, %s32
    %p120 = scmp.eq.s32.totalorder %s119, 0
    %s122 = sadd.s32 %s121, 1
    %s123 = scalar_select %p120, %s121, %s122
    %p126 = pneg %p120
    %p127 = scmp.eq.s32.totalorder %s10, 1
    %p128 = por %p126, %p127
    %p129 = scmp.ne.s32.totalorder %s121, %s124
    %p130 = scmp.eq.s32.totalorder %s10, 0
    %p131 = por %p129, %p130
    %p132 = scmp.ne.s32.totalorder %s121, %s124
    %p133 = scmp.eq.s32.totalorder %s15, 1
    %p134 = por %p132, %p133
    %p135 = scmp.ne.s32.totalorder %s124, %s125
    %p136 = scmp.eq.s32.totalorder %s15, 0
    %p137 = por %p135, %p136
    %p138 = scmp.ne.s32.totalorder %s124, %s125
    %p139 = scmp.eq.s32.totalorder %s16, 1
    %p140 = por %p138, %p139
    %p142 = scmp.ne.s32.totalorder %s125, %s141
    %p143 = scmp.eq.s32.totalorder %s16, 0
    %p144 = por %p142, %p143
    %s145 = ssub.s32 %s17, %s36
    %s146 = ssub.s32 %s18, %s32
    %s147 = sor.u32 %s145, %s146
    %p148 = scmp.eq.s32.totalorder %s147, 0
    %s150 = sadd.s32 %s149, 1
    %s151 = scalar_select %p148, %s149, %s150
    %p154 = pneg %p148
    %p155 = scmp.eq.s32.totalorder %s10, 1
    %p156 = por %p154, %p155
    %p157 = scmp.ne.s32.totalorder %s149, %s152
    %p158 = scmp.eq.s32.totalorder %s10, 0
    %p159 = por %p157, %p158
    %p160 = scmp.ne.s32.totalorder %s149, %s152
    %p161 = scmp.eq.s32.totalorder %s15, 1
    %p162 = por %p160, %p161
    %p163 = scmp.ne.s32.totalorder %s152, %s153
    %p164 = scmp.eq.s32.totalorder %s15, 0
    %p165 = por %p163, %p164
    %p166 = scmp.ne.s32.totalorder %s152, %s153
    %p167 = scmp.eq.s32.totalorder %s16, 1
    %p168 = por %p166, %p167
    %p170 = scmp.ne.s32.totalorder %s153, %s169
    %p171 = scmp.eq.s32.totalorder %s16, 0
    %p172 = por %p170, %p171
    %p173 = scmp.le.s32.totalorder 1, %s10
    %p174 = scmp.lt.s32.totalorder %s10, 3
    %p175 = pnand %p173, %p174
    %p176 = pneg %p175
    // Predicated region
    $region9: #{_lambda_.10} parent=5 // pred_check
      _
    $region10: #{_lambda_.10} parent=5 // pred_check_branch
      %178 = sbr.rel (%p175) target = $region12
    $region11: #{_lambda_.10} parent=5 // pred_region
      %s179 = ssub.s32 %s10, 1
      // Predicated region
      $region13: #{_lambda_.10} parent=11 // pred_check
        %p180 = pneg %p85
      $region14: #{_lambda_.10} parent=11 // pred_check_branch
        %182 = sbr.rel (%p180) target = $region16
      $region15: #{_lambda_.10} parent=11 // pred_region
        %s183 = smul.u32 16, %s22
        %p184 = scmp.lt.s32.totalorder %s183, 15
        %s185 = scalar_select %p184, %s183, 15
        %p186 = scmp.lt.s32.totalorder %s21, 0
        %s187 = scalar_select %p186, %s21, 0
        %s188 = sadd.s32 %s187, %s185
        %s189 = smul.addr %s188, 4
        %s190 = scalar_lea.vmem %s1, %s189
        %s191 = smul.u32 16, %s22
      $region16: #{_lambda_.10} parent=11 // pred_fallthru
        _
      // Predicated region
      $region17: #{_lambda_.10} parent=11 // pred_check
        %p192 = pneg %p111
      $region18: #{_lambda_.10} parent=11 // pred_check_branch
        %194 = sbr.rel (%p192) target = $region20
      $region19: #{_lambda_.10} parent=11 // pred_region
        %p195 = scmp.lt.s32.totalorder %s21, 0
        %s196 = scalar_select %p195, %s21, 0
        %s197 = scalar_lea.vmem %s2, %s196
      $region20: #{_lambda_.10} parent=11 // pred_fallthru
        _
      // Predicated region
      $region21: #{_lambda_.10} parent=11 // pred_check
        %p198 = pneg %p137
      $region22: #{_lambda_.10} parent=11 // pred_check_branch
        %200 = sbr.rel (%p198) target = $region24
      $region23: #{_lambda_.10} parent=11 // pred_region
        %p201 = scmp.lt.s32.totalorder %s21, 0
        %s202 = scalar_select %p201, %s21, 0
        %s203 = scalar_lea.vmem %s3, %s202
      $region24: #{_lambda_.10} parent=11 // pred_fallthru
        _
    $region12: #{_lambda_.10} parent=5 // pred_fallthru
      _
    %p204 = scmp.lt.s32.totalorder %s10, 2
    // Predicated region
    $region25: #{_lambda_.10} parent=5 // pred_check
      %p205 = pneg %p204
    $region26: #{_lambda_.10} parent=5 // pred_check_branch
      %207 = sbr.rel (%p205) target = $region28
    $region27: #{_lambda_.10} parent=5 // pred_region
      // Predicated region
      $region29: #{_lambda_.10} parent=27 // pred_check
        %p208 = pneg %p51
      $region30: #{_lambda_.10} parent=27 // pred_check_branch
        %210 = sbr.rel (%p208) target = $region32
      $region31: #{_lambda_.10} parent=27 // pred_region
        %s211 = smul.u32 32, %s17
        %p212 = scmp.lt.s32.totalorder %s211, 63
        %s213 = scalar_select %p212, %s211, 63
        %p214 = scmp.lt.s32.totalorder %s19, 0
        %s215 = scalar_select %p214, %s19, 0
        %s216 = sadd.s32 %s215, %s213
        %s217 = smul.addr %s216, 4
        %s218 = scalar_lea.vmem %s0, %s217
        %s219 = smul.u32 32, %s17
      $region32: #{_lambda_.10} parent=27 // pred_fallthru
        _
    $region28: #{_lambda_.10} parent=5 // pred_fallthru
      _
    %p220 = scmp.le.s32.totalorder 1, %s10
    %p221 = scmp.lt.s32.totalorder %s10, 3
    %p222 = pnand %p220, %p221
    %p223 = pneg %p222
    // Predicated region
    $region33: #{_lambda_.10} parent=5 // pred_check
      _
    $region34: #{_lambda_.10} parent=5 // pred_check_branch
      %225 = sbr.rel (%p222) target = $region36
    $region35: #{_lambda_.10} parent=5 // pred_region
      %s226 = ssub.s32 %s10, 1
      %s227 = smul.u32 32, %s20
      %p228 = scmp.lt.s32.totalorder %s227, 63
      %s229 = scalar_select %p228, %s227, 63
      %p230 = scmp.lt.s32.totalorder %s22, 0
      %s231 = scalar_select %p230, %s22, 0
      %s232 = sadd.s32 %s231, %s229
      %s233 = smul.addr %s232, 4
      %s234 = scalar_lea.vmem %s0, %s233
      %p235 = pneg %p57
      %p236 = pneg %p54
      %s237 = smul.u32 16, %s22
      %p238 = scmp.lt.s32.totalorder %s237, 15
      %s239 = scalar_select %p238, %s237, 15
      %p240 = scmp.lt.s32.totalorder %s21, 0
      %s241 = scalar_select %p240, %s21, 0
      %s242 = sadd.s32 %s241, %s239
      %s243 = smul.addr %s242, 4
      %s244 = scalar_lea.vmem %s1, %s243
      %p245 = pneg %p85
      %p246 = pneg %p82
      %p247 = scmp.lt.s32.totalorder %s21, 0
      %s248 = scalar_select %p247, %s21, 0
      %s249 = scalar_lea.vmem %s2, %s248
      %p250 = pneg %p111
      %p251 = pneg %p108
      %p252 = scmp.lt.s32.totalorder %s21, 0
      %s253 = scalar_select %p252, %s21, 0
      %s254 = scalar_lea.vmem %s3, %s253
      %p255 = pneg %p137
      %p256 = pneg %p134
      %p257 = pneg %p165
      %p258 = pneg %p162
      %s259 = smul.u32 32, %s20
      %p260 = scmp.lt.s32.totalorder %s259, 63
      %s261 = scalar_select %p260, %s259, 63
      %p262 = scmp.lt.s32.totalorder %s21, 0
      %s263 = scalar_select %p262, %s21, 0
      %s264 = sadd.s32 %s263, %s261
      %s265 = smul.addr %s264, 8
      %s266 = scalar_lea.vmem %s4, %s265
      %s267 = smul.u32 32, %s20
      %p268 = scmp.lt.s32.totalorder %s267, 63
      %s269 = scalar_select %p268, %s267, 63
      %p270 = scmp.lt.s32.totalorder %s22, 0
      %s271 = scalar_select %p270, %s22, 0
      %s272 = sadd.s32 %s271, %s269
      %s273 = smul.addr %s272, 4
      %s274 = scalar_lea.vmem %s0, %s273
      %s275 = smul.u32 32, %s20
      %s276 = smul.u32 16, %s22
      %p277 = scmp.lt.s32.totalorder %s276, 15
      %s278 = scalar_select %p277, %s276, 15
      %p279 = scmp.lt.s32.totalorder %s21, 0
      %s280 = scalar_select %p279, %s21, 0
      %s281 = sadd.s32 %s280, %s278
      %s282 = smul.addr %s281, 4
      %s283 = scalar_lea.vmem %s1, %s282
      %s284 = smul.u32 16, %s22
      %p285 = scmp.lt.s32.totalorder %s21, 0
      %s286 = scalar_select %p285, %s21, 0
      %s287 = scalar_lea.vmem %s2, %s286
      %p288 = scmp.lt.s32.totalorder %s21, 0
      %s289 = scalar_select %p288, %s21, 0
      %s290 = scalar_lea.vmem %s3, %s289
      %s291 = smul.u32 32, %s20
      %p292 = scmp.lt.s32.totalorder %s291, 63
      %s293 = scalar_select %p292, %s291, 63
      %p294 = scmp.lt.s32.totalorder %s21, 0
      %s295 = scalar_select %p294, %s21, 0
      %s296 = sadd.s32 %s295, %s293
      %s297 = smul.addr %s296, 8
      %s298 = scalar_lea.vmem %s4, %s297
      %s299 = smul.u32 32, %s20
      %p301 = scmp.eq.s32.totalorder %s22, 0
      // Predicated region
      $region37: #{_lambda_.10} parent=35 // pred_check
        %p302 = pneg %p301
      $region38: #{_lambda_.10} parent=35 // pred_check_branch
        %304 = sbr.rel (%p302) target = $region40
      $region39: #{_lambda_.10} parent=35 // pred_region
        %305 = vst [vmem:[#allocation2] sm:$0xff] 0.0
        %306 = vst [vmem:[#allocation2 + $0x8] sm:$0xff] 0.0
        %307 = vst [vmem:[#allocation2 + $0x10] sm:$0xff] 0.0
        %308 = vst [vmem:[#allocation2 + $0x18] sm:$0xff] 0.0
        %309 = vst [vmem:[#allocation2 + $0x20] sm:$0xff] 0.0
        %310 = vst [vmem:[#allocation2 + $0x28] sm:$0xff] 0.0
        %311 = vst [vmem:[#allocation2 + $0x30] sm:$0xff] 0.0
        %312 = vst [vmem:[#allocation2 + $0x38] sm:$0xff] 0.0
        %313 = vst [vmem:[#allocation2 + $0x40] sm:$0xff] 0.0
        %314 = vst [vmem:[#allocation2 + $0x48] sm:$0xff] 0.0
        %315 = vst [vmem:[#allocation2 + $0x50] sm:$0xff] 0.0
        %316 = vst [vmem:[#allocation2 + $0x58] sm:$0xff] 0.0
        %317 = vst [vmem:[#allocation2 + $0x60] sm:$0xff] 0.0
        %318 = vst [vmem:[#allocation2 + $0x68] sm:$0xff] 0.0
        %319 = vst [vmem:[#allocation2 + $0x70] sm:$0xff] 0.0
        %320 = vst [vmem:[#allocation2 + $0x78] sm:$0xff] 0.0
        %321 = vst [vmem:[#allocation2 + $0x80] sm:$0xff] 0.0
        %322 = vst [vmem:[#allocation2 + $0x88] sm:$0xff] 0.0
        %323 = vst [vmem:[#allocation2 + $0x90] sm:$0xff] 0.0
        %324 = vst [vmem:[#allocation2 + $0x98] sm:$0xff] 0.0
        %325 = vst [vmem:[#allocation2 + $0xa0] sm:$0xff] 0.0
        %326 = vst [vmem:[#allocation2 + $0xa8] sm:$0xff] 0.0
        %327 = vst [vmem:[#allocation2 + $0xb0] sm:$0xff] 0.0
        %328 = vst [vmem:[#allocation2 + $0xb8] sm:$0xff] 0.0
        %329 = vst [vmem:[#allocation2 + $0xc0] sm:$0xff] 0.0
        %330 = vst [vmem:[#allocation2 + $0xc8] sm:$0xff] 0.0
        %331 = vst [vmem:[#allocation2 + $0xd0] sm:$0xff] 0.0
        %332 = vst [vmem:[#allocation2 + $0xd8] sm:$0xff] 0.0
        %333 = vst [vmem:[#allocation2 + $0xe0] sm:$0xff] 0.0
        %334 = vst [vmem:[#allocation2 + $0xe8] sm:$0xff] 0.0
        %335 = vst [vmem:[#allocation2 + $0xf0] sm:$0xff] 0.0
        %336 = vst [vmem:[#allocation2 + $0xf8] sm:$0xff] 0.0
      $region40: #{_lambda_.10} parent=35 // pred_fallthru
        _
      %v337 = vld [vmem:[#allocation2] sm:$0xff]
      %v338 = vld [vmem:[#allocation2 + $0x8] sm:$0xff]
      %v339 = vld [vmem:[#allocation2 + $0x10] sm:$0xff]
      %v340 = vld [vmem:[#allocation2 + $0x18] sm:$0xff]
      %v341 = vld [vmem:[#allocation2 + $0x20] sm:$0xff]
      %v342 = vld [vmem:[#allocation2 + $0x28] sm:$0xff]
      %v343 = vld [vmem:[#allocation2 + $0x30] sm:$0xff]
      %v344 = vld [vmem:[#allocation2 + $0x38] sm:$0xff]
      %v345 = vld [vmem:[#allocation2 + $0x40] sm:$0xff]
      %v346 = vld [vmem:[#allocation2 + $0x48] sm:$0xff]
      %v347 = vld [vmem:[#allocation2 + $0x50] sm:$0xff]
      %v348 = vld [vmem:[#allocation2 + $0x58] sm:$0xff]
      %v349 = vld [vmem:[#allocation2 + $0x60] sm:$0xff]
      %v350 = vld [vmem:[#allocation2 + $0x68] sm:$0xff]
      %v351 = vld [vmem:[#allocation2 + $0x70] sm:$0xff]
      %v352 = vld [vmem:[#allocation2 + $0x78] sm:$0xff]
      %v353 = vld [vmem:[#allocation2 + $0x80] sm:$0xff]
      %v354 = vld [vmem:[#allocation2 + $0x88] sm:$0xff]
      %v355 = vld [vmem:[#allocation2 + $0x90] sm:$0xff]
      %v356 = vld [vmem:[#allocation2 + $0x98] sm:$0xff]
      %v357 = vld [vmem:[#allocation2 + $0xa0] sm:$0xff]
      %v358 = vld [vmem:[#allocation2 + $0xa8] sm:$0xff]
      %v359 = vld [vmem:[#allocation2 + $0xb0] sm:$0xff]
      %v360 = vld [vmem:[#allocation2 + $0xb8] sm:$0xff]
      %v361 = vld [vmem:[#allocation2 + $0xc0] sm:$0xff]
      %v362 = vld [vmem:[#allocation2 + $0xc8] sm:$0xff]
      %v363 = vld [vmem:[#allocation2 + $0xd0] sm:$0xff]
      %v364 = vld [vmem:[#allocation2 + $0xd8] sm:$0xff]
      %v365 = vld [vmem:[#allocation2 + $0xe0] sm:$0xff]
      %v366 = vld [vmem:[#allocation2 + $0xe8] sm:$0xff]
      %v367 = vld [vmem:[#allocation2 + $0xf0] sm:$0xff]
      %v368 = vld [vmem:[#allocation2 + $0xf8] sm:$0xff]
      %v369 = vld [vmem:[%s274] sm:$0xf]
      %v370 = vld [vmem:[%s274 + $0x4] sm:$0xf]
      %v371 = vld [vmem:[%s274 + $0x8] sm:$0xf]
      %v372 = vld [vmem:[%s274 + $0xc] sm:$0xf]
      %v373 = vld [vmem:[%s274 + $0x10] sm:$0xf]
      %v374 = vld [vmem:[%s274 + $0x14] sm:$0xf]
      %v375 = vld [vmem:[%s274 + $0x18] sm:$0xf]
      %v376 = vld [vmem:[%s274 + $0x1c] sm:$0xf]
      %v377 = vld [vmem:[%s274 + $0x20] sm:$0xf]
      %v378 = vld [vmem:[%s274 + $0x24] sm:$0xf]
      %v379 = vld [vmem:[%s274 + $0x28] sm:$0xf]
      %v380 = vld [vmem:[%s274 + $0x2c] sm:$0xf]
      %v381 = vld [vmem:[%s274 + $0x30] sm:$0xf]
      %v382 = vld [vmem:[%s274 + $0x34] sm:$0xf]
      %v383 = vld [vmem:[%s274 + $0x38] sm:$0xf]
      %v384 = vld [vmem:[%s274 + $0x3c] sm:$0xf]
      %v385 = vld [vmem:[%s274 + $0x40] sm:$0xf]
      %v386 = vld [vmem:[%s274 + $0x44] sm:$0xf]
      %v387 = vld [vmem:[%s274 + $0x48] sm:$0xf]
      %v388 = vld [vmem:[%s274 + $0x4c] sm:$0xf]
      %v389 = vld [vmem:[%s274 + $0x50] sm:$0xf]
      %v390 = vld [vmem:[%s274 + $0x54] sm:$0xf]
      %v391 = vld [vmem:[%s274 + $0x58] sm:$0xf]
      %v392 = vld [vmem:[%s274 + $0x5c] sm:$0xf]
      %v393 = vld [vmem:[%s274 + $0x60] sm:$0xf]
      %v394 = vld [vmem:[%s274 + $0x64] sm:$0xf]
      %v395 = vld [vmem:[%s274 + $0x68] sm:$0xf]
      %v396 = vld [vmem:[%s274 + $0x6c] sm:$0xf]
      %v397 = vld [vmem:[%s274 + $0x70] sm:$0xf]
      %v398 = vld [vmem:[%s274 + $0x74] sm:$0xf]
      %v399 = vld [vmem:[%s274 + $0x78] sm:$0xf]
      %v400 = vld [vmem:[%s274 + $0x7c] sm:$0xf]
      %v401 = vld [vmem:[%s283] sm:$0xf]
      %v402 = vld [vmem:[%s283 + $0x4] sm:$0xf]
      %v403 = vld [vmem:[%s283 + $0x8] sm:$0xf]
      %v404 = vld [vmem:[%s283 + $0xc] sm:$0xf]
      %v405 = vld [vmem:[%s283 + $0x10] sm:$0xf]
      %v406 = vld [vmem:[%s283 + $0x14] sm:$0xf]
      %v407 = vld [vmem:[%s283 + $0x18] sm:$0xf]
      %v408 = vld [vmem:[%s283 + $0x1c] sm:$0xf]
      %v409 = vld [vmem:[%s283 + $0x20] sm:$0xf]
      %v410 = vld [vmem:[%s283 + $0x24] sm:$0xf]
      %v411 = vld [vmem:[%s283 + $0x28] sm:$0xf]
      %v412 = vld [vmem:[%s283 + $0x2c] sm:$0xf]
      %v413 = vld [vmem:[%s283 + $0x30] sm:$0xf]
      %v414 = vld [vmem:[%s283 + $0x34] sm:$0xf]
      %v415 = vld [vmem:[%s283 + $0x38] sm:$0xf]
      %v416 = vld [vmem:[%s283 + $0x3c] sm:$0xf]
      %v449 = vunpack.c.l.b16 %v369
      %v450 = vunpack.c.l.b16 %v370
      %v451 = vunpack.c.l.b16 %v371
      %v452 = vunpack.c.l.b16 %v372
      %v453 = vunpack.c.l.b16 %v373
      %v454 = vunpack.c.l.b16 %v374
      %v455 = vunpack.c.l.b16 %v375
      %v456 = vunpack.c.l.b16 %v376
      %v457 = vunpack.c.l.b16 %v377
      %v458 = vunpack.c.l.b16 %v378
      %v459 = vunpack.c.l.b16 %v379
      %v460 = vunpack.c.l.b16 %v380
      %v461 = vunpack.c.l.b16 %v381
      %v462 = vunpack.c.l.b16 %v382
      %v463 = vunpack.c.l.b16 %v383
      %v464 = vunpack.c.l.b16 %v384
      %v465 = vunpack.c.l.b16 %v385
      %v466 = vunpack.c.l.b16 %v386
      %v467 = vunpack.c.l.b16 %v387
      %v468 = vunpack.c.l.b16 %v388
      %v469 = vunpack.c.l.b16 %v389
      %v470 = vunpack.c.l.b16 %v390
      %v471 = vunpack.c.l.b16 %v391
      %v472 = vunpack.c.l.b16 %v392
      %v473 = vunpack.c.l.b16 %v393
      %v474 = vunpack.c.l.b16 %v394
      %v475 = vunpack.c.l.b16 %v395
      %v476 = vunpack.c.l.b16 %v396
      %v477 = vunpack.c.l.b16 %v397
      %v478 = vunpack.c.l.b16 %v398
      %v479 = vunpack.c.l.b16 %v399
      %v480 = vunpack.c.l.b16 %v400
      %v481 = vpack.c.b16 %v450, %v449
      %v482 = vpack.c.b16 %v452, %v451
      %v483 = vpack.c.b16 %v454, %v453
      %v484 = vpack.c.b16 %v456, %v455
      %v485 = vpack.c.b16 %v458, %v457
      %v486 = vpack.c.b16 %v460, %v459
      %v487 = vpack.c.b16 %v462, %v461
      %v488 = vpack.c.b16 %v464, %v463
      %v489 = vpack.c.b16 %v466, %v465
      %v490 = vpack.c.b16 %v468, %v467
      %v491 = vpack.c.b16 %v470, %v469
      %v492 = vpack.c.b16 %v472, %v471
      %v493 = vpack.c.b16 %v474, %v473
      %v494 = vpack.c.b16 %v476, %v475
      %v495 = vpack.c.b16 %v478, %v477
      %v496 = vpack.c.b16 %v480, %v479
      %v529 = vunpack.c.l.b16 %v401
      %v530 = vunpack.c.l.b16 %v402
      %v531 = vunpack.c.l.b16 %v403
      %v532 = vunpack.c.l.b16 %v404
      %v533 = vunpack.c.l.b16 %v405
      %v534 = vunpack.c.l.b16 %v406
      %v535 = vunpack.c.l.b16 %v407
      %v536 = vunpack.c.l.b16 %v408
      %v537 = vunpack.c.l.b16 %v409
      %v538 = vunpack.c.l.b16 %v410
      %v539 = vunpack.c.l.b16 %v411
      %v540 = vunpack.c.l.b16 %v412
      %v541 = vunpack.c.l.b16 %v413
      %v542 = vunpack.c.l.b16 %v414
      %v543 = vunpack.c.l.b16 %v415
      %v544 = vunpack.c.l.b16 %v416
      %v545 = vpack.c.b16 %v530, %v529
      %v546 = vpack.c.b16 %v532, %v531
      %v547 = vpack.c.b16 %v534, %v533
      %v548 = vpack.c.b16 %v536, %v535
      %v549 = vpack.c.b16 %v538, %v537
      %v550 = vpack.c.b16 %v540, %v539
      %v551 = vpack.c.b16 %v542, %v541
      %v552 = vpack.c.b16 %v544, %v543
      %561 = vmatprep.subr.bf16.mxu0 0
      %562 = vmatpush1.bf16.msra.mxu0 %v545
      %563 = vmatprep.subr.bf16.mxu0 0
      %564 = vmatpush1.bf16.msra.mxu0 %v546
      %565 = vmatprep.subr.bf16.mxu0 0
      %566 = vmatpush1.bf16.msra.mxu0 %v547
      %567 = vmatprep.subr.bf16.mxu0 0
      %568 = vmatpush1.bf16.msra.mxu0 %v548
      %569 = vmatprep.subr.bf16.mxu0 0
      %570 = vmatpush1.bf16.msra.mxu0 %v549
      %571 = vmatprep.subr.bf16.mxu0 0
      %572 = vmatpush1.bf16.msra.mxu0 %v550
      %573 = vmatprep.subr.bf16.mxu0 0
      %574 = vmatpush1.bf16.msra.mxu0 %v551
      %575 = vmatprep.subr.bf16.mxu0 0
      %576 = vmatpush1.bf16.msra.mxu0 %v552
      %577 = vmatprep.subr.bf16.mxu0 0
      %578 = vmatpush1.bf16.msra.mxu0 0
      %579 = vmatprep.subr.bf16.mxu0 0
      %580 = vmatpush1.bf16.msra.mxu0 0
      %581 = vmatprep.subr.bf16.mxu0 0
      %582 = vmatpush1.bf16.msra.mxu0 0
      %583 = vmatprep.subr.bf16.mxu0 0
      %584 = vmatpush1.bf16.msra.mxu0 0
      %585 = vmatprep.subr.bf16.mxu0 0
      %586 = vmatpush1.bf16.msra.mxu0 0
      %587 = vmatprep.subr.bf16.mxu0 0
      %588 = vmatpush1.bf16.msra.mxu0 0
      %589 = vmatprep.subr.bf16.mxu0 0
      %590 = vmatpush1.bf16.msra.mxu0 0
      %591 = vmatprep.subr.bf16.mxu0 0
      %592 = vmatpush1.bf16.msra.mxu0 0
      %593 = vmatprep.mubr.bf16.mxu0 0
      %594 = vmatmul.mubr.bf16.gmra.mrb[0].mxu0 %v481
      %v595 = vpop.f32.mrb[0].mxu0
      %v596 = vadd.f32 0.0, %v595
      %v597 = vpop.f32.mrb[0].mxu0
      %v598 = vpop.f32.mrb[0].mxu0
      %v599 = vadd.f32 0.0, %v598
      %v600 = vpop.f32.mrb[0].mxu0
      %601 = vmatprep.mubr.bf16.mxu0 0
      %602 = vmatmul.mubr.bf16.gmra.mrb[0].mxu0 %v482
      %v603 = vpop.f32.mrb[0].mxu0
      %v604 = vadd.f32 0.0, %v603
      %v605 = vpop.f32.mrb[0].mxu0
      %v606 = vpop.f32.mrb[0].mxu0
      %v607 = vadd.f32 0.0, %v606
      %v608 = vpop.f32.mrb[0].mxu0
      %609 = vmatprep.mubr.bf16.mxu0 0
      %610 = vmatmul.mubr.bf16.gmra.mrb[0].mxu0 %v483
      %v611 = vpop.f32.mrb[0].mxu0
      %v612 = vadd.f32 0.0, %v611
      %v613 = vpop.f32.mrb[0].mxu0
      %v614 = vpop.f32.mrb[0].mxu0
      %v615 = vadd.f32 0.0, %v614
      %v616 = vpop.f32.mrb[0].mxu0
      %617 = vmatprep.mubr.bf16.mxu0 0
      %618 = vmatmul.mubr.bf16.gmra.mrb[0].mxu0 %v484
      %v619 = vpop.f32.mrb[0].mxu0
      %v620 = vadd.f32 0.0, %v619
      %v621 = vpop.f32.mrb[0].mxu0
      %v622 = vpop.f32.mrb[0].mxu0
      %v623 = vadd.f32 0.0, %v622
      %v624 = vpop.f32.mrb[0].mxu0
      %625 = vmatprep.mubr.bf16.mxu0 0
      %626 = vmatmul.mubr.bf16.gmra.mrb[0].mxu0 %v485
      %v627 = vpop.f32.mrb[0].mxu0
      %v628 = vadd.f32 0.0, %v627
      %v629 = vpop.f32.mrb[0].mxu0
      %v630 = vpop.f32.mrb[0].mxu0
      %v631 = vadd.f32 0.0, %v630
      %v632 = vpop.f32.mrb[0].mxu0
      %633 = vmatprep.mubr.bf16.mxu0 0
      %634 = vmatmul.mubr.bf16.gmra.mrb[0].mxu0 %v486
      %v635 = vpop.f32.mrb[0].mxu0
      %v636 = vadd.f32 0.0, %v635
      %v637 = vpop.f32.mrb[0].mxu0
      %v638 = vpop.f32.mrb[0].mxu0
      %v639 = vadd.f32 0.0, %v638
      %v640 = vpop.f32.mrb[0].mxu0
      %641 = vmatprep.mubr.bf16.mxu0 0
      %642 = vmatmul.mubr.bf16.gmra.mrb[0].mxu0 %v487
      %v643 = vpop.f32.mrb[0].mxu0
      %v644 = vadd.f32 0.0, %v643
      %v645 = vpop.f32.mrb[0].mxu0
      %v646 = vpop.f32.mrb[0].mxu0
      %v647 = vadd.f32 0.0, %v646
      %v648 = vpop.f32.mrb[0].mxu0
      %649 = vmatprep.mubr.bf16.mxu0 0
      %650 = vmatmul.mubr.bf16.gmra.mrb[0].mxu0 %v488
      %v651 = vpop.f32.mrb[0].mxu0
      %v652 = vadd.f32 0.0, %v651
      %v653 = vpop.f32.mrb[0].mxu0
      %v654 = vpop.f32.mrb[0].mxu0
      %v655 = vadd.f32 0.0, %v654
      %v656 = vpop.f32.mrb[0].mxu0
      %657 = vmatprep.mubr.bf16.mxu0 0
      %658 = vmatmul.mubr.bf16.gmra.mrb[0].mxu0 %v489
      %v659 = vpop.f32.mrb[0].mxu0
      %v660 = vadd.f32 0.0, %v659
      %v661 = vpop.f32.mrb[0].mxu0
      %v662 = vpop.f32.mrb[0].mxu0
      %v663 = vadd.f32 0.0, %v662
      %v664 = vpop.f32.mrb[0].mxu0
      %665 = vmatprep.mubr.bf16.mxu0 0
      %666 = vmatmul.mubr.bf16.gmra.mrb[0].mxu0 %v490
      %v667 = vpop.f32.mrb[0].mxu0
      %v668 = vadd.f32 0.0, %v667
      %v669 = vpop.f32.mrb[0].mxu0
      %v670 = vpop.f32.mrb[0].mxu0
      %v671 = vadd.f32 0.0, %v670
      %v672 = vpop.f32.mrb[0].mxu0
      %673 = vmatprep.mubr.bf16.mxu0 0
      %674 = vmatmul.mubr.bf16.gmra.mrb[0].mxu0 %v491
      %v675 = vpop.f32.mrb[0].mxu0
      %v676 = vadd.f32 0.0, %v675
      %v677 = vpop.f32.mrb[0].mxu0
      %v678 = vpop.f32.mrb[0].mxu0
      %v679 = vadd.f32 0.0, %v678
      %v680 = vpop.f32.mrb[0].mxu0
      %681 = vmatprep.mubr.bf16.mxu0 0
      %682 = vmatmul.mubr.bf16.gmra.mrb[0].mxu0 %v492
      %v683 = vpop.f32.mrb[0].mxu0
      %v684 = vadd.f32 0.0, %v683
      %v685 = vpop.f32.mrb[0].mxu0
      %v686 = vpop.f32.mrb[0].mxu0
      %v687 = vadd.f32 0.0, %v686
      %v688 = vpop.f32.mrb[0].mxu0
      %689 = vmatprep.mubr.bf16.mxu0 0
      %690 = vmatmul.mubr.bf16.gmra.mrb[0].mxu0 %v493
      %v691 = vpop.f32.mrb[0].mxu0
      %v692 = vadd.f32 0.0, %v691
      %v693 = vpop.f32.mrb[0].mxu0
      %v694 = vpop.f32.mrb[0].mxu0
      %v695 = vadd.f32 0.0, %v694
      %v696 = vpop.f32.mrb[0].mxu0
      %697 = vmatprep.mubr.bf16.mxu0 0
      %698 = vmatmul.mubr.bf16.gmra.mrb[0].mxu0 %v494
      %v699 = vpop.f32.mrb[0].mxu0
      %v700 = vadd.f32 0.0, %v699
      %v701 = vpop.f32.mrb[0].mxu0
      %v702 = vpop.f32.mrb[0].mxu0
      %v703 = vadd.f32 0.0, %v702
      %v704 = vpop.f32.mrb[0].mxu0
      %705 = vmatprep.mubr.bf16.mxu0 0
      %706 = vmatmul.mubr.bf16.gmra.mrb[0].mxu0 %v495
      %v707 = vpop.f32.mrb[0].mxu0
      %v708 = vadd.f32 0.0, %v707
      %v709 = vpop.f32.mrb[0].mxu0
      %v710 = vpop.f32.mrb[0].mxu0
      %v711 = vadd.f32 0.0, %v710
      %v712 = vpop.f32.mrb[0].mxu0
      %713 = vmatprep.mubr.bf16.mxu0 0
      %714 = vmatmul.mubr.bf16.gmra.mrb[0].mxu0 %v496
      %v715 = vpop.f32.mrb[0].mxu0
      %v716 = vadd.f32 0.0, %v715
      %v717 = vpop.f32.mrb[0].mxu0
      %v718 = vpop.f32.mrb[0].mxu0
      %v719 = vadd.f32 0.0, %v718
      %v720 = vpop.f32.mrb[0].mxu0
      %721 = vdwg.mxu0
      %v722 = vadd.f32 %v337, %v596
      %v723 = vadd.f32 %v338, %v599
      %v724 = vadd.f32 %v339, %v604
      %v725 = vadd.f32 %v340, %v607
      %v726 = vadd.f32 %v341, %v612
      %v727 = vadd.f32 %v342, %v615
      %v728 = vadd.f32 %v343, %v620
      %v729 = vadd.f32 %v344, %v623
      %v730 = vadd.f32 %v345, %v628
      %v731 = vadd.f32 %v346, %v631
      %v732 = vadd.f32 %v347, %v636
      %v733 = vadd.f32 %v348, %v639
      %v734 = vadd.f32 %v349, %v644
      %v735 = vadd.f32 %v350, %v647
      %v736 = vadd.f32 %v351, %v652
      %v737 = vadd.f32 %v352, %v655
      %v738 = vadd.f32 %v353, %v660
      %v739 = vadd.f32 %v354, %v663
      %v740 = vadd.f32 %v355, %v668
      %v741 = vadd.f32 %v356, %v671
      %v742 = vadd.f32 %v357, %v676
      %v743 = vadd.f32 %v358, %v679
      %v744 = vadd.f32 %v359, %v684
      %v745 = vadd.f32 %v360, %v687
      %v746 = vadd.f32 %v361, %v692
      %v747 = vadd.f32 %v362, %v695
      %v748 = vadd.f32 %v363, %v700
      %v749 = vadd.f32 %v364, %v703
      %v750 = vadd.f32 %v365, %v708
      %v751 = vadd.f32 %v366, %v711
      %v752 = vadd.f32 %v367, %v716
      %v753 = vadd.f32 %v368, %v719
      %754 = vst [vmem:[#allocation2] sm:$0xff] %v722
      %755 = vst [vmem:[#allocation2 + $0x8] sm:$0xff] %v723
      %756 = vst [vmem:[#allocation2 + $0x10] sm:$0xff] %v724
      %757 = vst [vmem:[#allocation2 + $0x18] sm:$0xff] %v725
      %758 = vst [vmem:[#allocation2 + $0x20] sm:$0xff] %v726
      %759 = vst [vmem:[#allocation2 + $0x28] sm:$0xff] %v727
      %760 = vst [vmem:[#allocation2 + $0x30] sm:$0xff] %v728
      %761 = vst [vmem:[#allocation2 + $0x38] sm:$0xff] %v729
      %762 = vst [vmem:[#allocation2 + $0x40] sm:$0xff] %v730
      %763 = vst [vmem:[#allocation2 + $0x48] sm:$0xff] %v731
      %764 = vst [vmem:[#allocation2 + $0x50] sm:$0xff] %v732
      %765 = vst [vmem:[#allocation2 + $0x58] sm:$0xff] %v733
      %766 = vst [vmem:[#allocation2 + $0x60] sm:$0xff] %v734
      %767 = vst [vmem:[#allocation2 + $0x68] sm:$0xff] %v735
      %768 = vst [vmem:[#allocation2 + $0x70] sm:$0xff] %v736
      %769 = vst [vmem:[#allocation2 + $0x78] sm:$0xff] %v737
      %770 = vst [vmem:[#allocation2 + $0x80] sm:$0xff] %v738
      %771 = vst [vmem:[#allocation2 + $0x88] sm:$0xff] %v739
      %772 = vst [vmem:[#allocation2 + $0x90] sm:$0xff] %v740
      %773 = vst [vmem:[#allocation2 + $0x98] sm:$0xff] %v741
      %774 = vst [vmem:[#allocation2 + $0xa0] sm:$0xff] %v742
      %775 = vst [vmem:[#allocation2 + $0xa8] sm:$0xff] %v743
      %776 = vst [vmem:[#allocation2 + $0xb0] sm:$0xff] %v744
      %777 = vst [vmem:[#allocation2 + $0xb8] sm:$0xff] %v745
      %778 = vst [vmem:[#allocation2 + $0xc0] sm:$0xff] %v746
      %779 = vst [vmem:[#allocation2 + $0xc8] sm:$0xff] %v747
      %780 = vst [vmem:[#allocation2 + $0xd0] sm:$0xff] %v748
      %781 = vst [vmem:[#allocation2 + $0xd8] sm:$0xff] %v749
      %782 = vst [vmem:[#allocation2 + $0xe0] sm:$0xff] %v750
      %783 = vst [vmem:[#allocation2 + $0xe8] sm:$0xff] %v751
      %784 = vst [vmem:[#allocation2 + $0xf0] sm:$0xff] %v752
      %785 = vst [vmem:[#allocation2 + $0xf8] sm:$0xff] %v753
      // Predicated region
      $region41: #{_lambda_.10} parent=35 // pred_check
        %p786 = pneg %p301
      $region42: #{_lambda_.10} parent=35 // pred_check_branch
        %788 = sbr.rel (%p786) target = $region44
      $region43: #{_lambda_.10} parent=35 // pred_region
        %v789 = vld [vmem:[#allocation2] sm:$0xff]
        %v790 = vld [vmem:[#allocation2 + $0x8] sm:$0xff]
        %v791 = vld [vmem:[#allocation2 + $0x10] sm:$0xff]
        %v792 = vld [vmem:[#allocation2 + $0x18] sm:$0xff]
        %v793 = vld [vmem:[#allocation2 + $0x20] sm:$0xff]
        %v794 = vld [vmem:[#allocation2 + $0x28] sm:$0xff]
        %v795 = vld [vmem:[#allocation2 + $0x30] sm:$0xff]
        %v796 = vld [vmem:[#allocation2 + $0x38] sm:$0xff]
        %v797 = vld [vmem:[#allocation2 + $0x40] sm:$0xff]
        %v798 = vld [vmem:[#allocation2 + $0x48] sm:$0xff]
        %v799 = vld [vmem:[#allocation2 + $0x50] sm:$0xff]
        %v800 = vld [vmem:[#allocation2 + $0x58] sm:$0xff]
        %v801 = vld [vmem:[#allocation2 + $0x60] sm:$0xff]
        %v802 = vld [vmem:[#allocation2 + $0x68] sm:$0xff]
        %v803 = vld [vmem:[#allocation2 + $0x70] sm:$0xff]
        %v804 = vld [vmem:[#allocation2 + $0x78] sm:$0xff]
        %v805 = vld [vmem:[#allocation2 + $0x80] sm:$0xff]
        %v806 = vld [vmem:[#allocation2 + $0x88] sm:$0xff]
        %v807 = vld [vmem:[#allocation2 + $0x90] sm:$0xff]
        %v808 = vld [vmem:[#allocation2 + $0x98] sm:$0xff]
        %v809 = vld [vmem:[#allocation2 + $0xa0] sm:$0xff]
        %v810 = vld [vmem:[#allocation2 + $0xa8] sm:$0xff]
        %v811 = vld [vmem:[#allocation2 + $0xb0] sm:$0xff]
        %v812 = vld [vmem:[#allocation2 + $0xb8] sm:$0xff]
        %v813 = vld [vmem:[#allocation2 + $0xc0] sm:$0xff]
        %v814 = vld [vmem:[#allocation2 + $0xc8] sm:$0xff]
        %v815 = vld [vmem:[#allocation2 + $0xd0] sm:$0xff]
        %v816 = vld [vmem:[#allocation2 + $0xd8] sm:$0xff]
        %v817 = vld [vmem:[#allocation2 + $0xe0] sm:$0xff]
        %v818 = vld [vmem:[#allocation2 + $0xe8] sm:$0xff]
        %v819 = vld [vmem:[#allocation2 + $0xf0] sm:$0xff]
        %v820 = vld [vmem:[#allocation2 + $0xf8] sm:$0xff]
        %v821 = vld [vmem:[%s287] sm:$0x1]
        %v823 = vlaneseq
        %v824 = vshrl.u32 %v823, 7
        %v825 = vsub.s32 0, %v824
        %v826 = vrot.slane %v821, %v825
        %v828 = vmul.f32 %v789, %v826
        %v829 = vmul.f32 %v790, %v826
        %v830 = vmul.f32 %v791, %v826
        %v831 = vmul.f32 %v792, %v826
        %v832 = vmul.f32 %v793, %v826
        %v833 = vmul.f32 %v794, %v826
        %v834 = vmul.f32 %v795, %v826
        %v835 = vmul.f32 %v796, %v826
        %v836 = vmul.f32 %v797, %v826
        %v837 = vmul.f32 %v798, %v826
        %v838 = vmul.f32 %v799, %v826
        %v839 = vmul.f32 %v800, %v826
        %v840 = vmul.f32 %v801, %v826
        %v841 = vmul.f32 %v802, %v826
        %v842 = vmul.f32 %v803, %v826
        %v843 = vmul.f32 %v804, %v826
        %v844 = vmul.f32 %v805, %v826
        %v845 = vmul.f32 %v806, %v826
        %v846 = vmul.f32 %v807, %v826
        %v847 = vmul.f32 %v808, %v826
        %v848 = vmul.f32 %v809, %v826
        %v849 = vmul.f32 %v810, %v826
        %v850 = vmul.f32 %v811, %v826
        %v851 = vmul.f32 %v812, %v826
        %v852 = vmul.f32 %v813, %v826
        %v853 = vmul.f32 %v814, %v826
        %v854 = vmul.f32 %v815, %v826
        %v855 = vmul.f32 %v816, %v826
        %v856 = vmul.f32 %v817, %v826
        %v857 = vmul.f32 %v818, %v826
        %v858 = vmul.f32 %v819, %v826
        %v859 = vmul.f32 %v820, %v826
        %v860 = vld [vmem:[%s290] sm:$0x1]
        %v862 = vlaneseq
        %v863 = vshrl.u32 %v862, 7
        %v864 = vsub.s32 0, %v863
        %v865 = vrot.slane %v860, %v864
        %v867 = vadd.f32 %v828, %v865
        %v868 = vadd.f32 %v829, %v865
        %v869 = vadd.f32 %v830, %v865
        %v870 = vadd.f32 %v831, %v865
        %v871 = vadd.f32 %v832, %v865
        %v872 = vadd.f32 %v833, %v865
        %v873 = vadd.f32 %v834, %v865
        %v874 = vadd.f32 %v835, %v865
        %v875 = vadd.f32 %v836, %v865
        %v876 = vadd.f32 %v837, %v865
        %v877 = vadd.f32 %v838, %v865
        %v878 = vadd.f32 %v839, %v865
        %v879 = vadd.f32 %v840, %v865
        %v880 = vadd.f32 %v841, %v865
        %v881 = vadd.f32 %v842, %v865
        %v882 = vadd.f32 %v843, %v865
        %v883 = vadd.f32 %v844, %v865
        %v884 = vadd.f32 %v845, %v865
        %v885 = vadd.f32 %v846, %v865
        %v886 = vadd.f32 %v847, %v865
        %v887 = vadd.f32 %v848, %v865
        %v888 = vadd.f32 %v849, %v865
        %v889 = vadd.f32 %v850, %v865
        %v890 = vadd.f32 %v851, %v865
        %v891 = vadd.f32 %v852, %v865
        %v892 = vadd.f32 %v853, %v865
        %v893 = vadd.f32 %v854, %v865
        %v894 = vadd.f32 %v855, %v865
        %v895 = vadd.f32 %v856, %v865
        %v896 = vadd.f32 %v857, %v865
        %v897 = vadd.f32 %v858, %v865
        %v898 = vadd.f32 %v859, %v865
        %vm899 = vcmp.gt.f32.partialorder %v867, 0.0
        %vm900 = vcmp.gt.f32.partialorder %v868, 0.0
        %vm901 = vcmp.gt.f32.partialorder %v869, 0.0
        %vm902 = vcmp.gt.f32.partialorder %v870, 0.0
        %vm903 = vcmp.gt.f32.partialorder %v871, 0.0
        %vm904 = vcmp.gt.f32.partialorder %v872, 0.0
        %vm905 = vcmp.gt.f32.partialorder %v873, 0.0
        %vm906 = vcmp.gt.f32.partialorder %v874, 0.0
        %vm907 = vcmp.gt.f32.partialorder %v875, 0.0
        %vm908 = vcmp.gt.f32.partialorder %v876, 0.0
        %vm909 = vcmp.gt.f32.partialorder %v877, 0.0
        %vm910 = vcmp.gt.f32.partialorder %v878, 0.0
        %vm911 = vcmp.gt.f32.partialorder %v879, 0.0
        %vm912 = vcmp.gt.f32.partialorder %v880, 0.0
        %vm913 = vcmp.gt.f32.partialorder %v881, 0.0
        %vm914 = vcmp.gt.f32.partialorder %v882, 0.0
        %vm915 = vcmp.gt.f32.partialorder %v883, 0.0
        %vm916 = vcmp.gt.f32.partialorder %v884, 0.0
        %vm917 = vcmp.gt.f32.partialorder %v885, 0.0
        %vm918 = vcmp.gt.f32.partialorder %v886, 0.0
        %vm919 = vcmp.gt.f32.partialorder %v887, 0.0
        %vm920 = vcmp.gt.f32.partialorder %v888, 0.0
        %vm921 = vcmp.gt.f32.partialorder %v889, 0.0
        %vm922 = vcmp.gt.f32.partialorder %v890, 0.0
        %vm923 = vcmp.gt.f32.partialorder %v891, 0.0
        %vm924 = vcmp.gt.f32.partialorder %v892, 0.0
        %vm925 = vcmp.gt.f32.partialorder %v893, 0.0
        %vm926 = vcmp.gt.f32.partialorder %v894, 0.0
        %vm927 = vcmp.gt.f32.partialorder %v895, 0.0
        %vm928 = vcmp.gt.f32.partialorder %v896, 0.0
        %vm929 = vcmp.gt.f32.partialorder %v897, 0.0
        %vm930 = vcmp.gt.f32.partialorder %v898, 0.0
        %v931 = vmul.f32 %v867, 0.1
        %v932 = vmul.f32 %v868, 0.1
        %v933 = vmul.f32 %v869, 0.1
        %v934 = vmul.f32 %v870, 0.1
        %v935 = vmul.f32 %v871, 0.1
        %v936 = vmul.f32 %v872, 0.1
        %v937 = vmul.f32 %v873, 0.1
        %v938 = vmul.f32 %v874, 0.1
        %v939 = vmul.f32 %v875, 0.1
        %v940 = vmul.f32 %v876, 0.1
        %v941 = vmul.f32 %v877, 0.1
        %v942 = vmul.f32 %v878, 0.1
        %v943 = vmul.f32 %v879, 0.1
        %v944 = vmul.f32 %v880, 0.1
        %v945 = vmul.f32 %v881, 0.1
        %v946 = vmul.f32 %v882, 0.1
        %v947 = vmul.f32 %v883, 0.1
        %v948 = vmul.f32 %v884, 0.1
        %v949 = vmul.f32 %v885, 0.1
        %v950 = vmul.f32 %v886, 0.1
        %v951 = vmul.f32 %v887, 0.1
        %v952 = vmul.f32 %v888, 0.1
        %v953 = vmul.f32 %v889, 0.1
        %v954 = vmul.f32 %v890, 0.1
        %v955 = vmul.f32 %v891, 0.1
        %v956 = vmul.f32 %v892, 0.1
        %v957 = vmul.f32 %v893, 0.1
        %v958 = vmul.f32 %v894, 0.1
        %v959 = vmul.f32 %v895, 0.1
        %v960 = vmul.f32 %v896, 0.1
        %v961 = vmul.f32 %v897, 0.1
        %v962 = vmul.f32 %v898, 0.1
        %v963 = vsel %vm899, %v867, %v931
        %v964 = vsel %vm900, %v868, %v932
        %v965 = vsel %vm901, %v869, %v933
        %v966 = vsel %vm902, %v870, %v934
        %v967 = vsel %vm903, %v871, %v935
        %v968 = vsel %vm904, %v872, %v936
        %v969 = vsel %vm905, %v873, %v937
        %v970 = vsel %vm906, %v874, %v938
        %v971 = vsel %vm907, %v875, %v939
        %v972 = vsel %vm908, %v876, %v940
        %v973 = vsel %vm909, %v877, %v941
        %v974 = vsel %vm910, %v878, %v942
        %v975 = vsel %vm911, %v879, %v943
        %v976 = vsel %vm912, %v880, %v944
        %v977 = vsel %vm913, %v881, %v945
        %v978 = vsel %vm914, %v882, %v946
        %v979 = vsel %vm915, %v883, %v947
        %v980 = vsel %vm916, %v884, %v948
        %v981 = vsel %vm917, %v885, %v949
        %v982 = vsel %vm918, %v886, %v950
        %v983 = vsel %vm919, %v887, %v951
        %v984 = vsel %vm920, %v888, %v952
        %v985 = vsel %vm921, %v889, %v953
        %v986 = vsel %vm922, %v890, %v954
        %v987 = vsel %vm923, %v891, %v955
        %v988 = vsel %vm924, %v892, %v956
        %v989 = vsel %vm925, %v893, %v957
        %v990 = vsel %vm926, %v894, %v958
        %v991 = vsel %vm927, %v895, %v959
        %v992 = vsel %vm928, %v896, %v960
        %v993 = vsel %vm929, %v897, %v961
        %v994 = vsel %vm930, %v898, %v962
        %995 = vst [vmem:[%s298] sm:$0xff] %v963
        %996 = vst [vmem:[%s298 + $0x8] sm:$0xff] %v964
        %997 = vst [vmem:[%s298 + $0x10] sm:$0xff] %v965
        %998 = vst [vmem:[%s298 + $0x18] sm:$0xff] %v966
        %999 = vst [vmem:[%s298 + $0x20] sm:$0xff] %v967
        %1000 = vst [vmem:[%s298 + $0x28] sm:$0xff] %v968
        %1001 = vst [vmem:[%s298 + $0x30] sm:$0xff] %v969
        %1002 = vst [vmem:[%s298 + $0x38] sm:$0xff] %v970
        %1003 = vst [vmem:[%s298 + $0x40] sm:$0xff] %v971
        %1004 = vst [vmem:[%s298 + $0x48] sm:$0xff] %v972
        %1005 = vst [vmem:[%s298 + $0x50] sm:$0xff] %v973
        %1006 = vst [vmem:[%s298 + $0x58] sm:$0xff] %v974
        %1007 = vst [vmem:[%s298 + $0x60] sm:$0xff] %v975
        %1008 = vst [vmem:[%s298 + $0x68] sm:$0xff] %v976
        %1009 = vst [vmem:[%s298 + $0x70] sm:$0xff] %v977
        %1010 = vst [vmem:[%s298 + $0x78] sm:$0xff] %v978
        %1011 = vst [vmem:[%s298 + $0x80] sm:$0xff] %v979
        %1012 = vst [vmem:[%s298 + $0x88] sm:$0xff] %v980
        %1013 = vst [vmem:[%s298 + $0x90] sm:$0xff] %v981
        %1014 = vst [vmem:[%s298 + $0x98] sm:$0xff] %v982
        %1015 = vst [vmem:[%s298 + $0xa0] sm:$0xff] %v983
        %1016 = vst [vmem:[%s298 + $0xa8] sm:$0xff] %v984
        %1017 = vst [vmem:[%s298 + $0xb0] sm:$0xff] %v985
        %1018 = vst [vmem:[%s298 + $0xb8] sm:$0xff] %v986
        %1019 = vst [vmem:[%s298 + $0xc0] sm:$0xff] %v987
        %1020 = vst [vmem:[%s298 + $0xc8] sm:$0xff] %v988
        %1021 = vst [vmem:[%s298 + $0xd0] sm:$0xff] %v989
        %1022 = vst [vmem:[%s298 + $0xd8] sm:$0xff] %v990
        %1023 = vst [vmem:[%s298 + $0xe0] sm:$0xff] %v991
        %1024 = vst [vmem:[%s298 + $0xe8] sm:$0xff] %v992
        %1025 = vst [vmem:[%s298 + $0xf0] sm:$0xff] %v993
        %1026 = vst [vmem:[%s298 + $0xf8] sm:$0xff] %v994
      $region44: #{_lambda_.10} parent=35 // pred_fallthru
        _
      %s1027 = smul.u32 32, %s20
      %p1028 = scmp.lt.s32.totalorder %s1027, 63
      %s1029 = scalar_select %p1028, %s1027, 63
      %p1030 = scmp.lt.s32.totalorder %s21, 0
      %s1031 = scalar_select %p1030, %s21, 0
      %s1032 = sadd.s32 %s1031, %s1029
      %s1033 = smul.addr %s1032, 8
      %s1034 = scalar_lea.vmem %s4, %s1033
      // Predicated region
      $region45: #{_lambda_.10} parent=35 // pred_check
        %p1035 = pneg %p162
      $region46: #{_lambda_.10} parent=35 // pred_check_branch
        %1037 = sbr.rel (%p1035) target = $region48
      $region47: #{_lambda_.10} parent=35 // pred_region
        %s1038 = smul.u32 32, %s20
      $region48: #{_lambda_.10} parent=35 // pred_fallthru
        _
    $region36: #{_lambda_.10} parent=5 // pred_fallthru
      _
    %p1039 = scmp.le.s32.totalorder 2, %s10
    // Predicated region
    $region49: #{_lambda_.10} parent=5 // pred_check
      %p1040 = pneg %p1039
    $region50: #{_lambda_.10} parent=5 // pred_check_branch
      %1042 = sbr.rel (%p1040) target = $region52
    $region51: #{_lambda_.10} parent=5 // pred_region
      %s1043 = ssub.s32 %s10, 2
      // Predicated region
      $region53: #{_lambda_.10} parent=51 // pred_check
        %p1044 = pneg %p168
      $region54: #{_lambda_.10} parent=51 // pred_check_branch
        %1046 = sbr.rel (%p1044) target = $region56
      $region55: #{_lambda_.10} parent=51 // pred_region
        %s1047 = smul.u32 32, %s23
        %p1048 = scmp.lt.s32.totalorder %s1047, 63
        %s1049 = scalar_select %p1048, %s1047, 63
        %p1050 = scmp.lt.s32.totalorder %s24, 0
        %s1051 = scalar_select %p1050, %s24, 0
        %s1052 = sadd.s32 %s1051, %s1049
        %s1053 = smul.addr %s1052, 8
        %s1054 = scalar_lea.vmem %s4, %s1053
      $region56: #{_lambda_.10} parent=51 // pred_fallthru
        _
    $region52: #{_lambda_.10} parent=5 // pred_fallthru
      _
  $region6: #{_lambda_.10} parent=0 // loop_footer
    %s14 = sadd.s32 1, %s10
  $region7: #{_lambda_.10} parent=0 // loop_footer_branch
    %9 = sbr.rel target = $region3
  $region8: #{_lambda_.10} parent=0 // loop_exit
    _

// kernel: _lambda_.11
$region0: #{_lambda_.11}
  #allocation0 [shape = 'u32[]', space=smem, size = 0x4, offset = 0x4, fixed_abs, tag = 'smem constant byte address 0x4 - core index']
  #allocation1 [shape = 'u32[144,128]{1,0:T(1,128)}', space=vmem, size = 0x12000, scoped, tag = 'internal scratch']
  #allocation2 [shape = 'f32[128,128]{1,0:T(8,128)}', space=vmem, size = 0x10000, scoped, tag = 'scratch operand']
  %s0 = inlined_call_operand.vmem [shape: bf16[128,128], index: 0, kind: input, shape index: {}]
  %s1 = inlined_call_operand.vmem [shape: bf16[128,128], index: 1, kind: input, shape index: {}]
  %s2 = inlined_call_operand.vmem [shape: f32[1,128], index: 2, kind: input, shape index: {}]
  %s3 = inlined_call_operand.vmem [shape: f32[1,128], index: 3, kind: input, shape index: {}]
  %s4 = inlined_call_operand.vmem [shape: f32[128,128], index: 4, kind: output, shape index: {}]
  %s5 = sld [smem:[#allocation0]]
  $region34: #{_lambda_.11} parent=0
    _
  %s7 = ssub.s32 1, %s5
  %s8 = scalar_select 0, %s7, %s5
  // Predicated region
  $region2: #{_lambda_.11} parent=0 // pred_check
    _
  $region3: #{_lambda_.11} parent=0 // pred_check_branch
    %10 = sbr.rel (0) target = $region5
  $region4: #{_lambda_.11} parent=0 // pred_region
    _
  $region5: #{_lambda_.11} parent=0 // pred_fallthru
    _
  // Predicated region
  $region6: #{_lambda_.11} parent=0 // pred_check
    _
  $region7: #{_lambda_.11} parent=0 // pred_check_branch
    %12 = sbr.rel (0) target = $region9
  $region8: #{_lambda_.11} parent=0 // pred_region
    _
  $region9: #{_lambda_.11} parent=0 // pred_fallthru
    _
  // Predicated region
  $region10: #{_lambda_.11} parent=0 // pred_check
    _
  $region11: #{_lambda_.11} parent=0 // pred_check_branch
    %14 = sbr.rel (0) target = $region13
  $region12: #{_lambda_.11} parent=0 // pred_region
    _
  $region13: #{_lambda_.11} parent=0 // pred_fallthru
    _
  // Predicated region
  $region14: #{_lambda_.11} parent=0 // pred_check
    _
  $region15: #{_lambda_.11} parent=0 // pred_check_branch
    %16 = sbr.rel (0) target = $region17
  $region16: #{_lambda_.11} parent=0 // pred_region
    _
  $region17: #{_lambda_.11} parent=0 // pred_fallthru
    _
  %p18 = scmp.eq.s32.totalorder 0, 0
  // Predicated region
  $region18: #{_lambda_.11} parent=0 // pred_check
    %p19 = pneg %p18
  $region19: #{_lambda_.11} parent=0 // pred_check_branch
    %21 = sbr.rel (%p19) target = $region21
  $region20: #{_lambda_.11} parent=0 // pred_region
    %22 = vst [vmem:[#allocation2] sm:$0xff] 0.0
    %23 = vst [vmem:[#allocation2 + $0x8] sm:$0xff] 0.0
    %24 = vst [vmem:[#allocation2 + $0x10] sm:$0xff] 0.0
    %25 = vst [vmem:[#allocation2 + $0x18] sm:$0xff] 0.0
    %26 = vst [vmem:[#allocation2 + $0x20] sm:$0xff] 0.0
    %27 = vst [vmem:[#allocation2 + $0x28] sm:$0xff] 0.0
    %28 = vst [vmem:[#allocation2 + $0x30] sm:$0xff] 0.0
    %29 = vst [vmem:[#allocation2 + $0x38] sm:$0xff] 0.0
    %30 = vst [vmem:[#allocation2 + $0x40] sm:$0xff] 0.0
    %31 = vst [vmem:[#allocation2 + $0x48] sm:$0xff] 0.0
    %32 = vst [vmem:[#allocation2 + $0x50] sm:$0xff] 0.0
    %33 = vst [vmem:[#allocation2 + $0x58] sm:$0xff] 0.0
    %34 = vst [vmem:[#allocation2 + $0x60] sm:$0xff] 0.0
    %35 = vst [vmem:[#allocation2 + $0x68] sm:$0xff] 0.0
    %36 = vst [vmem:[#allocation2 + $0x70] sm:$0xff] 0.0
    %37 = vst [vmem:[#allocation2 + $0x78] sm:$0xff] 0.0
  $region21: #{_lambda_.11} parent=0 // pred_fallthru
    _
  %v38 = vld [vmem:[#allocation2] sm:$0xff]
  %v39 = vld [vmem:[#allocation2 + $0x8] sm:$0xff]
  %v40 = vld [vmem:[#allocation2 + $0x10] sm:$0xff]
  %v41 = vld [vmem:[#allocation2 + $0x18] sm:$0xff]
  %v42 = vld [vmem:[#allocation2 + $0x20] sm:$0xff]
  %v43 = vld [vmem:[#allocation2 + $0x28] sm:$0xff]
  %v44 = vld [vmem:[#allocation2 + $0x30] sm:$0xff]
  %v45 = vld [vmem:[#allocation2 + $0x38] sm:$0xff]
  %v46 = vld [vmem:[#allocation2 + $0x40] sm:$0xff]
  %v47 = vld [vmem:[#allocation2 + $0x48] sm:$0xff]
  %v48 = vld [vmem:[#allocation2 + $0x50] sm:$0xff]
  %v49 = vld [vmem:[#allocation2 + $0x58] sm:$0xff]
  %v50 = vld [vmem:[#allocation2 + $0x60] sm:$0xff]
  %v51 = vld [vmem:[#allocation2 + $0x68] sm:$0xff]
  %v52 = vld [vmem:[#allocation2 + $0x70] sm:$0xff]
  %v53 = vld [vmem:[#allocation2 + $0x78] sm:$0xff]
  %v54 = vld [vmem:[%s0] sm:$0xf]
  %v55 = vld [vmem:[%s0 + $0x4] sm:$0xf]
  %v56 = vld [vmem:[%s0 + $0x8] sm:$0xf]
  %v57 = vld [vmem:[%s0 + $0xc] sm:$0xf]
  %v58 = vld [vmem:[%s0 + $0x10] sm:$0xf]
  %v59 = vld [vmem:[%s0 + $0x14] sm:$0xf]
  %v60 = vld [vmem:[%s0 + $0x18] sm:$0xf]
  %v61 = vld [vmem:[%s0 + $0x1c] sm:$0xf]
  %v62 = vld [vmem:[%s0 + $0x20] sm:$0xf]
  %v63 = vld [vmem:[%s0 + $0x24] sm:$0xf]
  %v64 = vld [vmem:[%s0 + $0x28] sm:$0xf]
  %v65 = vld [vmem:[%s0 + $0x2c] sm:$0xf]
  %v66 = vld [vmem:[%s0 + $0x30] sm:$0xf]
  %v67 = vld [vmem:[%s0 + $0x34] sm:$0xf]
  %v68 = vld [vmem:[%s0 + $0x38] sm:$0xf]
  %v69 = vld [vmem:[%s0 + $0x3c] sm:$0xf]
  %v70 = vld [vmem:[%s1] sm:$0xf]
  %v71 = vld [vmem:[%s1 + $0x4] sm:$0xf]
  %v72 = vld [vmem:[%s1 + $0x8] sm:$0xf]
  %v73 = vld [vmem:[%s1 + $0xc] sm:$0xf]
  %v74 = vld [vmem:[%s1 + $0x10] sm:$0xf]
  %v75 = vld [vmem:[%s1 + $0x14] sm:$0xf]
  %v76 = vld [vmem:[%s1 + $0x18] sm:$0xf]
  %v77 = vld [vmem:[%s1 + $0x1c] sm:$0xf]
  %v78 = vld [vmem:[%s1 + $0x20] sm:$0xf]
  %v79 = vld [vmem:[%s1 + $0x24] sm:$0xf]
  %v80 = vld [vmem:[%s1 + $0x28] sm:$0xf]
  %v81 = vld [vmem:[%s1 + $0x2c] sm:$0xf]
  %v82 = vld [vmem:[%s1 + $0x30] sm:$0xf]
  %v83 = vld [vmem:[%s1 + $0x34] sm:$0xf]
  %v84 = vld [vmem:[%s1 + $0x38] sm:$0xf]
  %v85 = vld [vmem:[%s1 + $0x3c] sm:$0xf]
  %v102 = vunpack.c.l.b16 %v54
  %v103 = vunpack.c.l.b16 %v55
  %v104 = vunpack.c.l.b16 %v56
  %v105 = vunpack.c.l.b16 %v57
  %v106 = vunpack.c.l.b16 %v58
  %v107 = vunpack.c.l.b16 %v59
  %v108 = vunpack.c.l.b16 %v60
  %v109 = vunpack.c.l.b16 %v61
  %v110 = vunpack.c.l.b16 %v62
  %v111 = vunpack.c.l.b16 %v63
  %v112 = vunpack.c.l.b16 %v64
  %v113 = vunpack.c.l.b16 %v65
  %v114 = vunpack.c.l.b16 %v66
  %v115 = vunpack.c.l.b16 %v67
  %v116 = vunpack.c.l.b16 %v68
  %v117 = vunpack.c.l.b16 %v69
  %v118 = vpack.c.b16 %v103, %v102
  %v119 = vpack.c.b16 %v105, %v104
  %v120 = vpack.c.b16 %v107, %v106
  %v121 = vpack.c.b16 %v109, %v108
  %v122 = vpack.c.b16 %v111, %v110
  %v123 = vpack.c.b16 %v113, %v112
  %v124 = vpack.c.b16 %v115, %v114
  %v125 = vpack.c.b16 %v117, %v116
  %v150 = vunpack.c.l.b16 %v70
  %v151 = vunpack.c.l.b16 %v71
  %v152 = vunpack.c.l.b16 %v72
  %v153 = vunpack.c.l.b16 %v73
  %v154 = vunpack.c.l.b16 %v74
  %v155 = vunpack.c.l.b16 %v75
  %v156 = vunpack.c.l.b16 %v76
  %v157 = vunpack.c.l.b16 %v77
  %v158 = vunpack.c.l.b16 %v78
  %v159 = vunpack.c.l.b16 %v79
  %v160 = vunpack.c.l.b16 %v80
  %v161 = vunpack.c.l.b16 %v81
  %v162 = vunpack.c.l.b16 %v82
  %v163 = vunpack.c.l.b16 %v83
  %v164 = vunpack.c.l.b16 %v84
  %v165 = vunpack.c.l.b16 %v85
  %v166 = vpack.c.b16 %v151, %v150
  %v167 = vpack.c.b16 %v153, %v152
  %v168 = vpack.c.b16 %v155, %v154
  %v169 = vpack.c.b16 %v157, %v156
  %v170 = vpack.c.b16 %v159, %v158
  %v171 = vpack.c.b16 %v161, %v160
  %v172 = vpack.c.b16 %v163, %v162
  %v173 = vpack.c.b16 %v165, %v164
  %182 = vmatprep.subr.bf16.mxu0 0
  %183 = vmatpush1.bf16.msra.mxu0 %v166
  %184 = vmatprep.subr.bf16.mxu0 0
  %185 = vmatpush1.bf16.msra.mxu0 %v167
  %186 = vmatprep.subr.bf16.mxu0 0
  %187 = vmatpush1.bf16.msra.mxu0 %v168
  %188 = vmatprep.subr.bf16.mxu0 0
  %189 = vmatpush1.bf16.msra.mxu0 %v169
  %190 = vmatprep.subr.bf16.mxu0 0
  %191 = vmatpush1.bf16.msra.mxu0 %v170
  %192 = vmatprep.subr.bf16.mxu0 0
  %193 = vmatpush1.bf16.msra.mxu0 %v171
  %194 = vmatprep.subr.bf16.mxu0 0
  %195 = vmatpush1.bf16.msra.mxu0 %v172
  %196 = vmatprep.subr.bf16.mxu0 0
  %197 = vmatpush1.bf16.msra.mxu0 %v173
  %198 = vmatprep.subr.bf16.mxu0 0
  %199 = vmatpush1.bf16.msra.mxu0 0
  %200 = vmatprep.subr.bf16.mxu0 0
  %201 = vmatpush1.bf16.msra.mxu0 0
  %202 = vmatprep.subr.bf16.mxu0 0
  %203 = vmatpush1.bf16.msra.mxu0 0
  %204 = vmatprep.subr.bf16.mxu0 0
  %205 = vmatpush1.bf16.msra.mxu0 0
  %206 = vmatprep.subr.bf16.mxu0 0
  %207 = vmatpush1.bf16.msra.mxu0 0
  %208 = vmatprep.subr.bf16.mxu0 0
  %209 = vmatpush1.bf16.msra.mxu0 0
  %210 = vmatprep.subr.bf16.mxu0 0
  %211 = vmatpush1.bf16.msra.mxu0 0
  %212 = vmatprep.subr.bf16.mxu0 0
  %213 = vmatpush1.bf16.msra.mxu0 0
  %214 = vmatprep.mubr.bf16.mxu0 0
  %215 = vmatmul.mubr.bf16.gmra.mrb[0].mxu0 %v118
  %v216 = vpop.f32.mrb[0].mxu0
  %v217 = vadd.f32 0.0, %v216
  %v218 = vpop.f32.mrb[0].mxu0
  %v219 = vpop.f32.mrb[0].mxu0
  %v220 = vadd.f32 0.0, %v219
  %v221 = vpop.f32.mrb[0].mxu0
  %222 = vmatprep.mubr.bf16.mxu0 0
  %223 = vmatmul.mubr.bf16.gmra.mrb[0].mxu0 %v119
  %v224 = vpop.f32.mrb[0].mxu0
  %v225 = vadd.f32 0.0, %v224
  %v226 = vpop.f32.mrb[0].mxu0
  %v227 = vpop.f32.mrb[0].mxu0
  %v228 = vadd.f32 0.0, %v227
  %v229 = vpop.f32.mrb[0].mxu0
  %230 = vmatprep.mubr.bf16.mxu0 0
  %231 = vmatmul.mubr.bf16.gmra.mrb[0].mxu0 %v120
  %v232 = vpop.f32.mrb[0].mxu0
  %v233 = vadd.f32 0.0, %v232
  %v234 = vpop.f32.mrb[0].mxu0
  %v235 = vpop.f32.mrb[0].mxu0
  %v236 = vadd.f32 0.0, %v235
  %v237 = vpop.f32.mrb[0].mxu0
  %238 = vmatprep.mubr.bf16.mxu0 0
  %239 = vmatmul.mubr.bf16.gmra.mrb[0].mxu0 %v121
  %v240 = vpop.f32.mrb[0].mxu0
  %v241 = vadd.f32 0.0, %v240
  %v242 = vpop.f32.mrb[0].mxu0
  %v243 = vpop.f32.mrb[0].mxu0
  %v244 = vadd.f32 0.0, %v243
  %v245 = vpop.f32.mrb[0].mxu0
  %246 = vmatprep.mubr.bf16.mxu0 0
  %247 = vmatmul.mubr.bf16.gmra.mrb[0].mxu0 %v122
  %v248 = vpop.f32.mrb[0].mxu0
  %v249 = vadd.f32 0.0, %v248
  %v250 = vpop.f32.mrb[0].mxu0
  %v251 = vpop.f32.mrb[0].mxu0
  %v252 = vadd.f32 0.0, %v251
  %v253 = vpop.f32.mrb[0].mxu0
  %254 = vmatprep.mubr.bf16.mxu0 0
  %255 = vmatmul.mubr.bf16.gmra.mrb[0].mxu0 %v123
  %v256 = vpop.f32.mrb[0].mxu0
  %v257 = vadd.f32 0.0, %v256
  %v258 = vpop.f32.mrb[0].mxu0
  %v259 = vpop.f32.mrb[0].mxu0
  %v260 = vadd.f32 0.0, %v259
  %v261 = vpop.f32.mrb[0].mxu0
  %262 = vmatprep.mubr.bf16.mxu0 0
  %263 = vmatmul.mubr.bf16.gmra.mrb[0].mxu0 %v124
  %v264 = vpop.f32.mrb[0].mxu0
  %v265 = vadd.f32 0.0, %v264
  %v266 = vpop.f32.mrb[0].mxu0
  %v267 = vpop.f32.mrb[0].mxu0
  %v268 = vadd.f32 0.0, %v267
  %v269 = vpop.f32.mrb[0].mxu0
  %270 = vmatprep.mubr.bf16.mxu0 0
  %271 = vmatmul.mubr.bf16.gmra.mrb[0].mxu0 %v125
  %v272 = vpop.f32.mrb[0].mxu0
  %v273 = vadd.f32 0.0, %v272
  %v274 = vpop.f32.mrb[0].mxu0
  %v275 = vpop.f32.mrb[0].mxu0
  %v276 = vadd.f32 0.0, %v275
  %v277 = vpop.f32.mrb[0].mxu0
  %278 = vdwg.mxu0
  %v279 = vadd.f32 %v38, %v217
  %v280 = vadd.f32 %v39, %v220
  %v281 = vadd.f32 %v40, %v225
  %v282 = vadd.f32 %v41, %v228
  %v283 = vadd.f32 %v42, %v233
  %v284 = vadd.f32 %v43, %v236
  %v285 = vadd.f32 %v44, %v241
  %v286 = vadd.f32 %v45, %v244
  %v287 = vadd.f32 %v46, %v249
  %v288 = vadd.f32 %v47, %v252
  %v289 = vadd.f32 %v48, %v257
  %v290 = vadd.f32 %v49, %v260
  %v291 = vadd.f32 %v50, %v265
  %v292 = vadd.f32 %v51, %v268
  %v293 = vadd.f32 %v52, %v273
  %v294 = vadd.f32 %v53, %v276
  %295 = vst [vmem:[#allocation2] sm:$0xff] %v279
  %296 = vst [vmem:[#allocation2 + $0x8] sm:$0xff] %v280
  %297 = vst [vmem:[#allocation2 + $0x10] sm:$0xff] %v281
  %298 = vst [vmem:[#allocation2 + $0x18] sm:$0xff] %v282
  %299 = vst [vmem:[#allocation2 + $0x20] sm:$0xff] %v283
  %300 = vst [vmem:[#allocation2 + $0x28] sm:$0xff] %v284
  %301 = vst [vmem:[#allocation2 + $0x30] sm:$0xff] %v285
  %302 = vst [vmem:[#allocation2 + $0x38] sm:$0xff] %v286
  %303 = vst [vmem:[#allocation2 + $0x40] sm:$0xff] %v287
  %304 = vst [vmem:[#allocation2 + $0x48] sm:$0xff] %v288
  %305 = vst [vmem:[#allocation2 + $0x50] sm:$0xff] %v289
  %306 = vst [vmem:[#allocation2 + $0x58] sm:$0xff] %v290
  %307 = vst [vmem:[#allocation2 + $0x60] sm:$0xff] %v291
  %308 = vst [vmem:[#allocation2 + $0x68] sm:$0xff] %v292
  %309 = vst [vmem:[#allocation2 + $0x70] sm:$0xff] %v293
  %310 = vst [vmem:[#allocation2 + $0x78] sm:$0xff] %v294
  // Predicated region
  $region22: #{_lambda_.11} parent=0 // pred_check
    %p311 = pneg %p18
  $region23: #{_lambda_.11} parent=0 // pred_check_branch
    %313 = sbr.rel (%p311) target = $region25
  $region24: #{_lambda_.11} parent=0 // pred_region
    %v314 = vld [vmem:[#allocation2] sm:$0xff]
    %v315 = vld [vmem:[#allocation2 + $0x8] sm:$0xff]
    %v316 = vld [vmem:[#allocation2 + $0x10] sm:$0xff]
    %v317 = vld [vmem:[#allocation2 + $0x18] sm:$0xff]
    %v318 = vld [vmem:[#allocation2 + $0x20] sm:$0xff]
    %v319 = vld [vmem:[#allocation2 + $0x28] sm:$0xff]
    %v320 = vld [vmem:[#allocation2 + $0x30] sm:$0xff]
    %v321 = vld [vmem:[#allocation2 + $0x38] sm:$0xff]
    %v322 = vld [vmem:[#allocation2 + $0x40] sm:$0xff]
    %v323 = vld [vmem:[#allocation2 + $0x48] sm:$0xff]
    %v324 = vld [vmem:[#allocation2 + $0x50] sm:$0xff]
    %v325 = vld [vmem:[#allocation2 + $0x58] sm:$0xff]
    %v326 = vld [vmem:[#allocation2 + $0x60] sm:$0xff]
    %v327 = vld [vmem:[#allocation2 + $0x68] sm:$0xff]
    %v328 = vld [vmem:[#allocation2 + $0x70] sm:$0xff]
    %v329 = vld [vmem:[#allocation2 + $0x78] sm:$0xff]
    %v330 = vld [vmem:[%s2] sm:$0x1]
    %v332 = vlaneseq
    %v333 = vshrl.u32 %v332, 7
    %v334 = vsub.s32 0, %v333
    %v335 = vrot.slane %v330, %v334
    %v337 = vmul.f32 %v314, %v335
    %v338 = vmul.f32 %v315, %v335
    %v339 = vmul.f32 %v316, %v335
    %v340 = vmul.f32 %v317, %v335
    %v341 = vmul.f32 %v318, %v335
    %v342 = vmul.f32 %v319, %v335
    %v343 = vmul.f32 %v320, %v335
    %v344 = vmul.f32 %v321, %v335
    %v345 = vmul.f32 %v322, %v335
    %v346 = vmul.f32 %v323, %v335
    %v347 = vmul.f32 %v324, %v335
    %v348 = vmul.f32 %v325, %v335
    %v349 = vmul.f32 %v326, %v335
    %v350 = vmul.f32 %v327, %v335
    %v351 = vmul.f32 %v328, %v335
    %v352 = vmul.f32 %v329, %v335
    %v353 = vld [vmem:[%s3] sm:$0x1]
    %v355 = vlaneseq
    %v356 = vshrl.u32 %v355, 7
    %v357 = vsub.s32 0, %v356
    %v358 = vrot.slane %v353, %v357
    %v360 = vadd.f32 %v337, %v358
    %v361 = vadd.f32 %v338, %v358
    %v362 = vadd.f32 %v339, %v358
    %v363 = vadd.f32 %v340, %v358
    %v364 = vadd.f32 %v341, %v358
    %v365 = vadd.f32 %v342, %v358
    %v366 = vadd.f32 %v343, %v358
    %v367 = vadd.f32 %v344, %v358
    %v368 = vadd.f32 %v345, %v358
    %v369 = vadd.f32 %v346, %v358
    %v370 = vadd.f32 %v347, %v358
    %v371 = vadd.f32 %v348, %v358
    %v372 = vadd.f32 %v349, %v358
    %v373 = vadd.f32 %v350, %v358
    %v374 = vadd.f32 %v351, %v358
    %v375 = vadd.f32 %v352, %v358
    %vm376 = vcmp.gt.f32.partialorder %v360, 0.0
    %vm377 = vcmp.gt.f32.partialorder %v361, 0.0
    %vm378 = vcmp.gt.f32.partialorder %v362, 0.0
    %vm379 = vcmp.gt.f32.partialorder %v363, 0.0
    %vm380 = vcmp.gt.f32.partialorder %v364, 0.0
    %vm381 = vcmp.gt.f32.partialorder %v365, 0.0
    %vm382 = vcmp.gt.f32.partialorder %v366, 0.0
    %vm383 = vcmp.gt.f32.partialorder %v367, 0.0
    %vm384 = vcmp.gt.f32.partialorder %v368, 0.0
    %vm385 = vcmp.gt.f32.partialorder %v369, 0.0
    %vm386 = vcmp.gt.f32.partialorder %v370, 0.0
    %vm387 = vcmp.gt.f32.partialorder %v371, 0.0
    %vm388 = vcmp.gt.f32.partialorder %v372, 0.0
    %vm389 = vcmp.gt.f32.partialorder %v373, 0.0
    %vm390 = vcmp.gt.f32.partialorder %v374, 0.0
    %vm391 = vcmp.gt.f32.partialorder %v375, 0.0
    %v392 = vmul.f32 %v360, 0.1
    %v393 = vmul.f32 %v361, 0.1
    %v394 = vmul.f32 %v362, 0.1
    %v395 = vmul.f32 %v363, 0.1
    %v396 = vmul.f32 %v364, 0.1
    %v397 = vmul.f32 %v365, 0.1
    %v398 = vmul.f32 %v366, 0.1
    %v399 = vmul.f32 %v367, 0.1
    %v400 = vmul.f32 %v368, 0.1
    %v401 = vmul.f32 %v369, 0.1
    %v402 = vmul.f32 %v370, 0.1
    %v403 = vmul.f32 %v371, 0.1
    %v404 = vmul.f32 %v372, 0.1
    %v405 = vmul.f32 %v373, 0.1
    %v406 = vmul.f32 %v374, 0.1
    %v407 = vmul.f32 %v375, 0.1
    %v408 = vsel %vm376, %v360, %v392
    %v409 = vsel %vm377, %v361, %v393
    %v410 = vsel %vm378, %v362, %v394
    %v411 = vsel %vm379, %v363, %v395
    %v412 = vsel %vm380, %v364, %v396
    %v413 = vsel %vm381, %v365, %v397
    %v414 = vsel %vm382, %v366, %v398
    %v415 = vsel %vm383, %v367, %v399
    %v416 = vsel %vm384, %v368, %v400
    %v417 = vsel %vm385, %v369, %v401
    %v418 = vsel %vm386, %v370, %v402
    %v419 = vsel %vm387, %v371, %v403
    %v420 = vsel %vm388, %v372, %v404
    %v421 = vsel %vm389, %v373, %v405
    %v422 = vsel %vm390, %v374, %v406
    %v423 = vsel %vm391, %v375, %v407
    %424 = vst [vmem:[%s4] sm:$0xff] %v408
    %425 = vst [vmem:[%s4 + $0x8] sm:$0xff] %v409
    %426 = vst [vmem:[%s4 + $0x10] sm:$0xff] %v410
    %427 = vst [vmem:[%s4 + $0x18] sm:$0xff] %v411
    %428 = vst [vmem:[%s4 + $0x20] sm:$0xff] %v412
    %429 = vst [vmem:[%s4 + $0x28] sm:$0xff] %v413
    %430 = vst [vmem:[%s4 + $0x30] sm:$0xff] %v414
    %431 = vst [vmem:[%s4 + $0x38] sm:$0xff] %v415
    %432 = vst [vmem:[%s4 + $0x40] sm:$0xff] %v416
    %433 = vst [vmem:[%s4 + $0x48] sm:$0xff] %v417
    %434 = vst [vmem:[%s4 + $0x50] sm:$0xff] %v418
    %435 = vst [vmem:[%s4 + $0x58] sm:$0xff] %v419
    %436 = vst [vmem:[%s4 + $0x60] sm:$0xff] %v420
    %437 = vst [vmem:[%s4 + $0x68] sm:$0xff] %v421
    %438 = vst [vmem:[%s4 + $0x70] sm:$0xff] %v422
    %439 = vst [vmem:[%s4 + $0x78] sm:$0xff] %v423
  $region25: #{_lambda_.11} parent=0 // pred_fallthru
    _
  // Predicated region
  $region26: #{_lambda_.11} parent=0 // pred_check
    _
  $region27: #{_lambda_.11} parent=0 // pred_check_branch
    %441 = sbr.rel (0) target = $region29
  $region28: #{_lambda_.11} parent=0 // pred_region
    _
  $region29: #{_lambda_.11} parent=0 // pred_fallthru
    _
  // Predicated region
  $region30: #{_lambda_.11} parent=0 // pred_check
    _
  $region31: #{_lambda_.11} parent=0 // pred_check_branch
    %443 = sbr.rel (0) target = $region33
  $region32: #{_lambda_.11} parent=0 // pred_region
    _
  $region33: #{_lambda_.11} parent=0 // pred_fallthru
    _

// kernel: _lambda_.13
$region0: #{_lambda_.13}
  #allocation0 [shape = 'u32[]', space=smem, size = 0x4, offset = 0x4, fixed_abs, tag = 'smem constant byte address 0x4 - core index']
  #allocation1 [shape = 'u32[144,128]{1,0:T(1,128)}', space=vmem, size = 0x12000, scoped, tag = 'internal scratch']
  #allocation2 [shape = 'f32[128,128]{1,0:T(8,128)}', space=vmem, size = 0x10000, scoped, tag = 'scratch operand']
  %s0 = inlined_call_operand.vmem [shape: bf16[128,128], index: 0, kind: input, shape index: {}]
  %s1 = inlined_call_operand.vmem [shape: bf16[128,128], index: 1, kind: input, shape index: {}]
  %s2 = inlined_call_operand.vmem [shape: f32[1,128], index: 2, kind: input, shape index: {}]
  %s3 = inlined_call_operand.vmem [shape: f32[1,128], index: 3, kind: input, shape index: {}]
  %s4 = inlined_call_operand.vmem [shape: f32[128,128], index: 4, kind: input, shape index: {}]
  %s5 = inlined_call_operand.vmem [shape: f32[128,128], index: 5, kind: output, shape index: {}]
  %s6 = sld [smem:[#allocation0]]
  $region38: #{_lambda_.13} parent=0
    _
  %s8 = ssub.s32 1, %s6
  %s9 = scalar_select 0, %s8, %s6
  // Predicated region
  $region2: #{_lambda_.13} parent=0 // pred_check
    _
  $region3: #{_lambda_.13} parent=0 // pred_check_branch
    %11 = sbr.rel (0) target = $region5
  $region4: #{_lambda_.13} parent=0 // pred_region
    _
  $region5: #{_lambda_.13} parent=0 // pred_fallthru
    _
  // Predicated region
  $region6: #{_lambda_.13} parent=0 // pred_check
    _
  $region7: #{_lambda_.13} parent=0 // pred_check_branch
    %13 = sbr.rel (0) target = $region9
  $region8: #{_lambda_.13} parent=0 // pred_region
    _
  $region9: #{_lambda_.13} parent=0 // pred_fallthru
    _
  // Predicated region
  $region10: #{_lambda_.13} parent=0 // pred_check
    _
  $region11: #{_lambda_.13} parent=0 // pred_check_branch
    %15 = sbr.rel (0) target = $region13
  $region12: #{_lambda_.13} parent=0 // pred_region
    _
  $region13: #{_lambda_.13} parent=0 // pred_fallthru
    _
  // Predicated region
  $region14: #{_lambda_.13} parent=0 // pred_check
    _
  $region15: #{_lambda_.13} parent=0 // pred_check_branch
    %17 = sbr.rel (0) target = $region17
  $region16: #{_lambda_.13} parent=0 // pred_region
    _
  $region17: #{_lambda_.13} parent=0 // pred_fallthru
    _
  // Predicated region
  $region18: #{_lambda_.13} parent=0 // pred_check
    _
  $region19: #{_lambda_.13} parent=0 // pred_check_branch
    %19 = sbr.rel (0) target = $region21
  $region20: #{_lambda_.13} parent=0 // pred_region
    _
  $region21: #{_lambda_.13} parent=0 // pred_fallthru
    _
  %p21 = scmp.eq.s32.totalorder 0, 0
  // Predicated region
  $region22: #{_lambda_.13} parent=0 // pred_check
    %p22 = pneg %p21
  $region23: #{_lambda_.13} parent=0 // pred_check_branch
    %24 = sbr.rel (%p22) target = $region25
  $region24: #{_lambda_.13} parent=0 // pred_region
    %25 = vst [vmem:[#allocation2] sm:$0xff] 0.0
    %26 = vst [vmem:[#allocation2 + $0x8] sm:$0xff] 0.0
    %27 = vst [vmem:[#allocation2 + $0x10] sm:$0xff] 0.0
    %28 = vst [vmem:[#allocation2 + $0x18] sm:$0xff] 0.0
    %29 = vst [vmem:[#allocation2 + $0x20] sm:$0xff] 0.0
    %30 = vst [vmem:[#allocation2 + $0x28] sm:$0xff] 0.0
    %31 = vst [vmem:[#allocation2 + $0x30] sm:$0xff] 0.0
    %32 = vst [vmem:[#allocation2 + $0x38] sm:$0xff] 0.0
    %33 = vst [vmem:[#allocation2 + $0x40] sm:$0xff] 0.0
    %34 = vst [vmem:[#allocation2 + $0x48] sm:$0xff] 0.0
    %35 = vst [vmem:[#allocation2 + $0x50] sm:$0xff] 0.0
    %36 = vst [vmem:[#allocation2 + $0x58] sm:$0xff] 0.0
    %37 = vst [vmem:[#allocation2 + $0x60] sm:$0xff] 0.0
    %38 = vst [vmem:[#allocation2 + $0x68] sm:$0xff] 0.0
    %39 = vst [vmem:[#allocation2 + $0x70] sm:$0xff] 0.0
    %40 = vst [vmem:[#allocation2 + $0x78] sm:$0xff] 0.0
  $region25: #{_lambda_.13} parent=0 // pred_fallthru
    _
  %v41 = vld [vmem:[#allocation2] sm:$0xff]
  %v42 = vld [vmem:[#allocation2 + $0x8] sm:$0xff]
  %v43 = vld [vmem:[#allocation2 + $0x10] sm:$0xff]
  %v44 = vld [vmem:[#allocation2 + $0x18] sm:$0xff]
  %v45 = vld [vmem:[#allocation2 + $0x20] sm:$0xff]
  %v46 = vld [vmem:[#allocation2 + $0x28] sm:$0xff]
  %v47 = vld [vmem:[#allocation2 + $0x30] sm:$0xff]
  %v48 = vld [vmem:[#allocation2 + $0x38] sm:$0xff]
  %v49 = vld [vmem:[#allocation2 + $0x40] sm:$0xff]
  %v50 = vld [vmem:[#allocation2 + $0x48] sm:$0xff]
  %v51 = vld [vmem:[#allocation2 + $0x50] sm:$0xff]
  %v52 = vld [vmem:[#allocation2 + $0x58] sm:$0xff]
  %v53 = vld [vmem:[#allocation2 + $0x60] sm:$0xff]
  %v54 = vld [vmem:[#allocation2 + $0x68] sm:$0xff]
  %v55 = vld [vmem:[#allocation2 + $0x70] sm:$0xff]
  %v56 = vld [vmem:[#allocation2 + $0x78] sm:$0xff]
  %v57 = vld [vmem:[%s0] sm:$0xf]
  %v58 = vld [vmem:[%s0 + $0x4] sm:$0xf]
  %v59 = vld [vmem:[%s0 + $0x8] sm:$0xf]
  %v60 = vld [vmem:[%s0 + $0xc] sm:$0xf]
  %v61 = vld [vmem:[%s0 + $0x10] sm:$0xf]
  %v62 = vld [vmem:[%s0 + $0x14] sm:$0xf]
  %v63 = vld [vmem:[%s0 + $0x18] sm:$0xf]
  %v64 = vld [vmem:[%s0 + $0x1c] sm:$0xf]
  %v65 = vld [vmem:[%s0 + $0x20] sm:$0xf]
  %v66 = vld [vmem:[%s0 + $0x24] sm:$0xf]
  %v67 = vld [vmem:[%s0 + $0x28] sm:$0xf]
  %v68 = vld [vmem:[%s0 + $0x2c] sm:$0xf]
  %v69 = vld [vmem:[%s0 + $0x30] sm:$0xf]
  %v70 = vld [vmem:[%s0 + $0x34] sm:$0xf]
  %v71 = vld [vmem:[%s0 + $0x38] sm:$0xf]
  %v72 = vld [vmem:[%s0 + $0x3c] sm:$0xf]
  %v73 = vld [vmem:[%s1] sm:$0xf]
  %v74 = vld [vmem:[%s1 + $0x4] sm:$0xf]
  %v75 = vld [vmem:[%s1 + $0x8] sm:$0xf]
  %v76 = vld [vmem:[%s1 + $0xc] sm:$0xf]
  %v77 = vld [vmem:[%s1 + $0x10] sm:$0xf]
  %v78 = vld [vmem:[%s1 + $0x14] sm:$0xf]
  %v79 = vld [vmem:[%s1 + $0x18] sm:$0xf]
  %v80 = vld [vmem:[%s1 + $0x1c] sm:$0xf]
  %v81 = vld [vmem:[%s1 + $0x20] sm:$0xf]
  %v82 = vld [vmem:[%s1 + $0x24] sm:$0xf]
  %v83 = vld [vmem:[%s1 + $0x28] sm:$0xf]
  %v84 = vld [vmem:[%s1 + $0x2c] sm:$0xf]
  %v85 = vld [vmem:[%s1 + $0x30] sm:$0xf]
  %v86 = vld [vmem:[%s1 + $0x34] sm:$0xf]
  %v87 = vld [vmem:[%s1 + $0x38] sm:$0xf]
  %v88 = vld [vmem:[%s1 + $0x3c] sm:$0xf]
  %v105 = vunpack.c.l.b16 %v57
  %v106 = vunpack.c.l.b16 %v58
  %v107 = vunpack.c.l.b16 %v59
  %v108 = vunpack.c.l.b16 %v60
  %v109 = vunpack.c.l.b16 %v61
  %v110 = vunpack.c.l.b16 %v62
  %v111 = vunpack.c.l.b16 %v63
  %v112 = vunpack.c.l.b16 %v64
  %v113 = vunpack.c.l.b16 %v65
  %v114 = vunpack.c.l.b16 %v66
  %v115 = vunpack.c.l.b16 %v67
  %v116 = vunpack.c.l.b16 %v68
  %v117 = vunpack.c.l.b16 %v69
  %v118 = vunpack.c.l.b16 %v70
  %v119 = vunpack.c.l.b16 %v71
  %v120 = vunpack.c.l.b16 %v72
  %v121 = vpack.c.b16 %v106, %v105
  %v122 = vpack.c.b16 %v108, %v107
  %v123 = vpack.c.b16 %v110, %v109
  %v124 = vpack.c.b16 %v112, %v111
  %v125 = vpack.c.b16 %v114, %v113
  %v126 = vpack.c.b16 %v116, %v115
  %v127 = vpack.c.b16 %v118, %v117
  %v128 = vpack.c.b16 %v120, %v119
  %v153 = vunpack.c.l.b16 %v73
  %v154 = vunpack.c.l.b16 %v74
  %v155 = vunpack.c.l.b16 %v75
  %v156 = vunpack.c.l.b16 %v76
  %v157 = vunpack.c.l.b16 %v77
  %v158 = vunpack.c.l.b16 %v78
  %v159 = vunpack.c.l.b16 %v79
  %v160 = vunpack.c.l.b16 %v80
  %v161 = vunpack.c.l.b16 %v81
  %v162 = vunpack.c.l.b16 %v82
  %v163 = vunpack.c.l.b16 %v83
  %v164 = vunpack.c.l.b16 %v84
  %v165 = vunpack.c.l.b16 %v85
  %v166 = vunpack.c.l.b16 %v86
  %v167 = vunpack.c.l.b16 %v87
  %v168 = vunpack.c.l.b16 %v88
  %v169 = vpack.c.b16 %v154, %v153
  %v170 = vpack.c.b16 %v156, %v155
  %v171 = vpack.c.b16 %v158, %v157
  %v172 = vpack.c.b16 %v160, %v159
  %v173 = vpack.c.b16 %v162, %v161
  %v174 = vpack.c.b16 %v164, %v163
  %v175 = vpack.c.b16 %v166, %v165
  %v176 = vpack.c.b16 %v168, %v167
  %185 = vmatprep.subr.bf16.mxu0 0
  %186 = vmatpush1.bf16.msra.mxu0 %v169
  %187 = vmatprep.subr.bf16.mxu0 0
  %188 = vmatpush1.bf16.msra.mxu0 %v170
  %189 = vmatprep.subr.bf16.mxu0 0
  %190 = vmatpush1.bf16.msra.mxu0 %v171
  %191 = vmatprep.subr.bf16.mxu0 0
  %192 = vmatpush1.bf16.msra.mxu0 %v172
  %193 = vmatprep.subr.bf16.mxu0 0
  %194 = vmatpush1.bf16.msra.mxu0 %v173
  %195 = vmatprep.subr.bf16.mxu0 0
  %196 = vmatpush1.bf16.msra.mxu0 %v174
  %197 = vmatprep.subr.bf16.mxu0 0
  %198 = vmatpush1.bf16.msra.mxu0 %v175
  %199 = vmatprep.subr.bf16.mxu0 0
  %200 = vmatpush1.bf16.msra.mxu0 %v176
  %201 = vmatprep.subr.bf16.mxu0 0
  %202 = vmatpush1.bf16.msra.mxu0 0
  %203 = vmatprep.subr.bf16.mxu0 0
  %204 = vmatpush1.bf16.msra.mxu0 0
  %205 = vmatprep.subr.bf16.mxu0 0
  %206 = vmatpush1.bf16.msra.mxu0 0
  %207 = vmatprep.subr.bf16.mxu0 0
  %208 = vmatpush1.bf16.msra.mxu0 0
  %209 = vmatprep.subr.bf16.mxu0 0
  %210 = vmatpush1.bf16.msra.mxu0 0
  %211 = vmatprep.subr.bf16.mxu0 0
  %212 = vmatpush1.bf16.msra.mxu0 0
  %213 = vmatprep.subr.bf16.mxu0 0
  %214 = vmatpush1.bf16.msra.mxu0 0
  %215 = vmatprep.subr.bf16.mxu0 0
  %216 = vmatpush1.bf16.msra.mxu0 0
  %217 = vmatprep.mubr.bf16.mxu0 0
  %218 = vmatmul.mubr.bf16.gmra.mrb[0].mxu0 %v121
  %v219 = vpop.f32.mrb[0].mxu0
  %v220 = vadd.f32 0.0, %v219
  %v221 = vpop.f32.mrb[0].mxu0
  %v222 = vpop.f32.mrb[0].mxu0
  %v223 = vadd.f32 0.0, %v222
  %v224 = vpop.f32.mrb[0].mxu0
  %225 = vmatprep.mubr.bf16.mxu0 0
  %226 = vmatmul.mubr.bf16.gmra.mrb[0].mxu0 %v122
  %v227 = vpop.f32.mrb[0].mxu0
  %v228 = vadd.f32 0.0, %v227
  %v229 = vpop.f32.mrb[0].mxu0
  %v230 = vpop.f32.mrb[0].mxu0
  %v231 = vadd.f32 0.0, %v230
  %v232 = vpop.f32.mrb[0].mxu0
  %233 = vmatprep.mubr.bf16.mxu0 0
  %234 = vmatmul.mubr.bf16.gmra.mrb[0].mxu0 %v123
  %v235 = vpop.f32.mrb[0].mxu0
  %v236 = vadd.f32 0.0, %v235
  %v237 = vpop.f32.mrb[0].mxu0
  %v238 = vpop.f32.mrb[0].mxu0
  %v239 = vadd.f32 0.0, %v238
  %v240 = vpop.f32.mrb[0].mxu0
  %241 = vmatprep.mubr.bf16.mxu0 0
  %242 = vmatmul.mubr.bf16.gmra.mrb[0].mxu0 %v124
  %v243 = vpop.f32.mrb[0].mxu0
  %v244 = vadd.f32 0.0, %v243
  %v245 = vpop.f32.mrb[0].mxu0
  %v246 = vpop.f32.mrb[0].mxu0
  %v247 = vadd.f32 0.0, %v246
  %v248 = vpop.f32.mrb[0].mxu0
  %249 = vmatprep.mubr.bf16.mxu0 0
  %250 = vmatmul.mubr.bf16.gmra.mrb[0].mxu0 %v125
  %v251 = vpop.f32.mrb[0].mxu0
  %v252 = vadd.f32 0.0, %v251
  %v253 = vpop.f32.mrb[0].mxu0
  %v254 = vpop.f32.mrb[0].mxu0
  %v255 = vadd.f32 0.0, %v254
  %v256 = vpop.f32.mrb[0].mxu0
  %257 = vmatprep.mubr.bf16.mxu0 0
  %258 = vmatmul.mubr.bf16.gmra.mrb[0].mxu0 %v126
  %v259 = vpop.f32.mrb[0].mxu0
  %v260 = vadd.f32 0.0, %v259
  %v261 = vpop.f32.mrb[0].mxu0
  %v262 = vpop.f32.mrb[0].mxu0
  %v263 = vadd.f32 0.0, %v262
  %v264 = vpop.f32.mrb[0].mxu0
  %265 = vmatprep.mubr.bf16.mxu0 0
  %266 = vmatmul.mubr.bf16.gmra.mrb[0].mxu0 %v127
  %v267 = vpop.f32.mrb[0].mxu0
  %v268 = vadd.f32 0.0, %v267
  %v269 = vpop.f32.mrb[0].mxu0
  %v270 = vpop.f32.mrb[0].mxu0
  %v271 = vadd.f32 0.0, %v270
  %v272 = vpop.f32.mrb[0].mxu0
  %273 = vmatprep.mubr.bf16.mxu0 0
  %274 = vmatmul.mubr.bf16.gmra.mrb[0].mxu0 %v128
  %v275 = vpop.f32.mrb[0].mxu0
  %v276 = vadd.f32 0.0, %v275
  %v277 = vpop.f32.mrb[0].mxu0
  %v278 = vpop.f32.mrb[0].mxu0
  %v279 = vadd.f32 0.0, %v278
  %v280 = vpop.f32.mrb[0].mxu0
  %281 = vdwg.mxu0
  %v282 = vadd.f32 %v41, %v220
  %v283 = vadd.f32 %v42, %v223
  %v284 = vadd.f32 %v43, %v228
  %v285 = vadd.f32 %v44, %v231
  %v286 = vadd.f32 %v45, %v236
  %v287 = vadd.f32 %v46, %v239
  %v288 = vadd.f32 %v47, %v244
  %v289 = vadd.f32 %v48, %v247
  %v290 = vadd.f32 %v49, %v252
  %v291 = vadd.f32 %v50, %v255
  %v292 = vadd.f32 %v51, %v260
  %v293 = vadd.f32 %v52, %v263
  %v294 = vadd.f32 %v53, %v268
  %v295 = vadd.f32 %v54, %v271
  %v296 = vadd.f32 %v55, %v276
  %v297 = vadd.f32 %v56, %v279
  %298 = vst [vmem:[#allocation2] sm:$0xff] %v282
  %299 = vst [vmem:[#allocation2 + $0x8] sm:$0xff] %v283
  %300 = vst [vmem:[#allocation2 + $0x10] sm:$0xff] %v284
  %301 = vst [vmem:[#allocation2 + $0x18] sm:$0xff] %v285
  %302 = vst [vmem:[#allocation2 + $0x20] sm:$0xff] %v286
  %303 = vst [vmem:[#allocation2 + $0x28] sm:$0xff] %v287
  %304 = vst [vmem:[#allocation2 + $0x30] sm:$0xff] %v288
  %305 = vst [vmem:[#allocation2 + $0x38] sm:$0xff] %v289
  %306 = vst [vmem:[#allocation2 + $0x40] sm:$0xff] %v290
  %307 = vst [vmem:[#allocation2 + $0x48] sm:$0xff] %v291
  %308 = vst [vmem:[#allocation2 + $0x50] sm:$0xff] %v292
  %309 = vst [vmem:[#allocation2 + $0x58] sm:$0xff] %v293
  %310 = vst [vmem:[#allocation2 + $0x60] sm:$0xff] %v294
  %311 = vst [vmem:[#allocation2 + $0x68] sm:$0xff] %v295
  %312 = vst [vmem:[#allocation2 + $0x70] sm:$0xff] %v296
  %313 = vst [vmem:[#allocation2 + $0x78] sm:$0xff] %v297
  // Predicated region
  $region26: #{_lambda_.13} parent=0 // pred_check
    %p314 = pneg %p21
  $region27: #{_lambda_.13} parent=0 // pred_check_branch
    %316 = sbr.rel (%p314) target = $region29
  $region28: #{_lambda_.13} parent=0 // pred_region
    %v317 = vld [vmem:[#allocation2] sm:$0xff]
    %v318 = vld [vmem:[#allocation2 + $0x8] sm:$0xff]
    %v319 = vld [vmem:[#allocation2 + $0x10] sm:$0xff]
    %v320 = vld [vmem:[#allocation2 + $0x18] sm:$0xff]
    %v321 = vld [vmem:[#allocation2 + $0x20] sm:$0xff]
    %v322 = vld [vmem:[#allocation2 + $0x28] sm:$0xff]
    %v323 = vld [vmem:[#allocation2 + $0x30] sm:$0xff]
    %v324 = vld [vmem:[#allocation2 + $0x38] sm:$0xff]
    %v325 = vld [vmem:[#allocation2 + $0x40] sm:$0xff]
    %v326 = vld [vmem:[#allocation2 + $0x48] sm:$0xff]
    %v327 = vld [vmem:[#allocation2 + $0x50] sm:$0xff]
    %v328 = vld [vmem:[#allocation2 + $0x58] sm:$0xff]
    %v329 = vld [vmem:[#allocation2 + $0x60] sm:$0xff]
    %v330 = vld [vmem:[#allocation2 + $0x68] sm:$0xff]
    %v331 = vld [vmem:[#allocation2 + $0x70] sm:$0xff]
    %v332 = vld [vmem:[#allocation2 + $0x78] sm:$0xff]
    %v333 = vld [vmem:[%s2] sm:$0x1]
    %v335 = vlaneseq
    %v336 = vshrl.u32 %v335, 7
    %v337 = vsub.s32 0, %v336
    %v338 = vrot.slane %v333, %v337
    %v340 = vmul.f32 %v317, %v338
    %v341 = vmul.f32 %v318, %v338
    %v342 = vmul.f32 %v319, %v338
    %v343 = vmul.f32 %v320, %v338
    %v344 = vmul.f32 %v321, %v338
    %v345 = vmul.f32 %v322, %v338
    %v346 = vmul.f32 %v323, %v338
    %v347 = vmul.f32 %v324, %v338
    %v348 = vmul.f32 %v325, %v338
    %v349 = vmul.f32 %v326, %v338
    %v350 = vmul.f32 %v327, %v338
    %v351 = vmul.f32 %v328, %v338
    %v352 = vmul.f32 %v329, %v338
    %v353 = vmul.f32 %v330, %v338
    %v354 = vmul.f32 %v331, %v338
    %v355 = vmul.f32 %v332, %v338
    %v356 = vld [vmem:[%s3] sm:$0x1]
    %v358 = vlaneseq
    %v359 = vshrl.u32 %v358, 7
    %v360 = vsub.s32 0, %v359
    %v361 = vrot.slane %v356, %v360
    %v363 = vadd.f32 %v340, %v361
    %v364 = vadd.f32 %v341, %v361
    %v365 = vadd.f32 %v342, %v361
    %v366 = vadd.f32 %v343, %v361
    %v367 = vadd.f32 %v344, %v361
    %v368 = vadd.f32 %v345, %v361
    %v369 = vadd.f32 %v346, %v361
    %v370 = vadd.f32 %v347, %v361
    %v371 = vadd.f32 %v348, %v361
    %v372 = vadd.f32 %v349, %v361
    %v373 = vadd.f32 %v350, %v361
    %v374 = vadd.f32 %v351, %v361
    %v375 = vadd.f32 %v352, %v361
    %v376 = vadd.f32 %v353, %v361
    %v377 = vadd.f32 %v354, %v361
    %v378 = vadd.f32 %v355, %v361
    %vm379 = vcmp.gt.f32.partialorder %v363, 0.0
    %vm380 = vcmp.gt.f32.partialorder %v364, 0.0
    %vm381 = vcmp.gt.f32.partialorder %v365, 0.0
    %vm382 = vcmp.gt.f32.partialorder %v366, 0.0
    %vm383 = vcmp.gt.f32.partialorder %v367, 0.0
    %vm384 = vcmp.gt.f32.partialorder %v368, 0.0
    %vm385 = vcmp.gt.f32.partialorder %v369, 0.0
    %vm386 = vcmp.gt.f32.partialorder %v370, 0.0
    %vm387 = vcmp.gt.f32.partialorder %v371, 0.0
    %vm388 = vcmp.gt.f32.partialorder %v372, 0.0
    %vm389 = vcmp.gt.f32.partialorder %v373, 0.0
    %vm390 = vcmp.gt.f32.partialorder %v374, 0.0
    %vm391 = vcmp.gt.f32.partialorder %v375, 0.0
    %vm392 = vcmp.gt.f32.partialorder %v376, 0.0
    %vm393 = vcmp.gt.f32.partialorder %v377, 0.0
    %vm394 = vcmp.gt.f32.partialorder %v378, 0.0
    %v395 = vmul.f32 %v363, 0.1
    %v396 = vmul.f32 %v364, 0.1
    %v397 = vmul.f32 %v365, 0.1
    %v398 = vmul.f32 %v366, 0.1
    %v399 = vmul.f32 %v367, 0.1
    %v400 = vmul.f32 %v368, 0.1
    %v401 = vmul.f32 %v369, 0.1
    %v402 = vmul.f32 %v370, 0.1
    %v403 = vmul.f32 %v371, 0.1
    %v404 = vmul.f32 %v372, 0.1
    %v405 = vmul.f32 %v373, 0.1
    %v406 = vmul.f32 %v374, 0.1
    %v407 = vmul.f32 %v375, 0.1
    %v408 = vmul.f32 %v376, 0.1
    %v409 = vmul.f32 %v377, 0.1
    %v410 = vmul.f32 %v378, 0.1
    %v411 = vsel %vm379, %v363, %v395
    %v412 = vsel %vm380, %v364, %v396
    %v413 = vsel %vm381, %v365, %v397
    %v414 = vsel %vm382, %v366, %v398
    %v415 = vsel %vm383, %v367, %v399
    %v416 = vsel %vm384, %v368, %v400
    %v417 = vsel %vm385, %v369, %v401
    %v418 = vsel %vm386, %v370, %v402
    %v419 = vsel %vm387, %v371, %v403
    %v420 = vsel %vm388, %v372, %v404
    %v421 = vsel %vm389, %v373, %v405
    %v422 = vsel %vm390, %v374, %v406
    %v423 = vsel %vm391, %v375, %v407
    %v424 = vsel %vm392, %v376, %v408
    %v425 = vsel %vm393, %v377, %v409
    %v426 = vsel %vm394, %v378, %v410
    %v427 = vld [vmem:[%s4] sm:$0xff]
    %v428 = vld [vmem:[%s4 + $0x8] sm:$0xff]
    %v429 = vld [vmem:[%s4 + $0x10] sm:$0xff]
    %v430 = vld [vmem:[%s4 + $0x18] sm:$0xff]
    %v431 = vld [vmem:[%s4 + $0x20] sm:$0xff]
    %v432 = vld [vmem:[%s4 + $0x28] sm:$0xff]
    %v433 = vld [vmem:[%s4 + $0x30] sm:$0xff]
    %v434 = vld [vmem:[%s4 + $0x38] sm:$0xff]
    %v435 = vld [vmem:[%s4 + $0x40] sm:$0xff]
    %v436 = vld [vmem:[%s4 + $0x48] sm:$0xff]
    %v437 = vld [vmem:[%s4 + $0x50] sm:$0xff]
    %v438 = vld [vmem:[%s4 + $0x58] sm:$0xff]
    %v439 = vld [vmem:[%s4 + $0x60] sm:$0xff]
    %v440 = vld [vmem:[%s4 + $0x68] sm:$0xff]
    %v441 = vld [vmem:[%s4 + $0x70] sm:$0xff]
    %v442 = vld [vmem:[%s4 + $0x78] sm:$0xff]
    %v443 = vadd.f32 %v411, %v427
    %v444 = vadd.f32 %v412, %v428
    %v445 = vadd.f32 %v413, %v429
    %v446 = vadd.f32 %v414, %v430
    %v447 = vadd.f32 %v415, %v431
    %v448 = vadd.f32 %v416, %v432
    %v449 = vadd.f32 %v417, %v433
    %v450 = vadd.f32 %v418, %v434
    %v451 = vadd.f32 %v419, %v435
    %v452 = vadd.f32 %v420, %v436
    %v453 = vadd.f32 %v421, %v437
    %v454 = vadd.f32 %v422, %v438
    %v455 = vadd.f32 %v423, %v439
    %v456 = vadd.f32 %v424, %v440
    %v457 = vadd.f32 %v425, %v441
    %v458 = vadd.f32 %v426, %v442
    %459 = vst [vmem:[%s5] sm:$0xff] %v443
    %460 = vst [vmem:[%s5 + $0x8] sm:$0xff] %v444
    %461 = vst [vmem:[%s5 + $0x10] sm:$0xff] %v445
    %462 = vst [vmem:[%s5 + $0x18] sm:$0xff] %v446
    %463 = vst [vmem:[%s5 + $0x20] sm:$0xff] %v447
    %464 = vst [vmem:[%s5 + $0x28] sm:$0xff] %v448
    %465 = vst [vmem:[%s5 + $0x30] sm:$0xff] %v449
    %466 = vst [vmem:[%s5 + $0x38] sm:$0xff] %v450
    %467 = vst [vmem:[%s5 + $0x40] sm:$0xff] %v451
    %468 = vst [vmem:[%s5 + $0x48] sm:$0xff] %v452
    %469 = vst [vmem:[%s5 + $0x50] sm:$0xff] %v453
    %470 = vst [vmem:[%s5 + $0x58] sm:$0xff] %v454
    %471 = vst [vmem:[%s5 + $0x60] sm:$0xff] %v455
    %472 = vst [vmem:[%s5 + $0x68] sm:$0xff] %v456
    %473 = vst [vmem:[%s5 + $0x70] sm:$0xff] %v457
    %474 = vst [vmem:[%s5 + $0x78] sm:$0xff] %v458
  $region29: #{_lambda_.13} parent=0 // pred_fallthru
    _
  // Predicated region
  $region30: #{_lambda_.13} parent=0 // pred_check
    _
  $region31: #{_lambda_.13} parent=0 // pred_check_branch
    %476 = sbr.rel (0) target = $region33
  $region32: #{_lambda_.13} parent=0 // pred_region
    _
  $region33: #{_lambda_.13} parent=0 // pred_fallthru
    _
  // Predicated region
  $region34: #{_lambda_.13} parent=0 // pred_check
    _
  $region35: #{_lambda_.13} parent=0 // pred_check_branch
    %478 = sbr.rel (0) target = $region37
  $region36: #{_lambda_.13} parent=0 // pred_region
    _
  $region37: #{_lambda_.13} parent=0 // pred_fallthru
    _

// kernel: _lambda_.16
$region0: #{_lambda_.16}
  #allocation0 [shape = 'u32[]', space=smem, size = 0x4, offset = 0x4, fixed_abs, tag = 'smem constant byte address 0x4 - core index']
  #allocation1 [shape = 'u32[144,128]{1,0:T(1,128)}', space=vmem, size = 0x12000, scoped, tag = 'internal scratch']
  #allocation2 [shape = 'f32[32,128]{1,0:T(8,128)}', space=vmem, size = 0x4000, scoped, tag = 'scratch operand']
  %s0 = inlined_call_operand.vmem [shape: bf16[32,128], index: 0, kind: input, shape index: {}]
  %s1 = inlined_call_operand.vmem [shape: bf16[128,128], index: 1, kind: input, shape index: {}]
  %s2 = inlined_call_operand.vmem [shape: f32[1,128], index: 2, kind: input, shape index: {}]
  %s3 = inlined_call_operand.vmem [shape: f32[1,128], index: 3, kind: input, shape index: {}]
  %s4 = inlined_call_operand.vmem [shape: f32[32,128], index: 4, kind: output, shape index: {}]
  %s5 = sld [smem:[#allocation0]]
  $region34: #{_lambda_.16} parent=0
    _
  %s7 = ssub.s32 1, %s5
  %s8 = scalar_select 0, %s7, %s5
  // Predicated region
  $region2: #{_lambda_.16} parent=0 // pred_check
    _
  $region3: #{_lambda_.16} parent=0 // pred_check_branch
    %10 = sbr.rel (0) target = $region5
  $region4: #{_lambda_.16} parent=0 // pred_region
    _
  $region5: #{_lambda_.16} parent=0 // pred_fallthru
    _
  // Predicated region
  $region6: #{_lambda_.16} parent=0 // pred_check
    _
  $region7: #{_lambda_.16} parent=0 // pred_check_branch
    %12 = sbr.rel (0) target = $region9
  $region8: #{_lambda_.16} parent=0 // pred_region
    _
  $region9: #{_lambda_.16} parent=0 // pred_fallthru
    _
  // Predicated region
  $region10: #{_lambda_.16} parent=0 // pred_check
    _
  $region11: #{_lambda_.16} parent=0 // pred_check_branch
    %14 = sbr.rel (0) target = $region13
  $region12: #{_lambda_.16} parent=0 // pred_region
    _
  $region13: #{_lambda_.16} parent=0 // pred_fallthru
    _
  // Predicated region
  $region14: #{_lambda_.16} parent=0 // pred_check
    _
  $region15: #{_lambda_.16} parent=0 // pred_check_branch
    %16 = sbr.rel (0) target = $region17
  $region16: #{_lambda_.16} parent=0 // pred_region
    _
  $region17: #{_lambda_.16} parent=0 // pred_fallthru
    _
  %p18 = scmp.eq.s32.totalorder 0, 0
  // Predicated region
  $region18: #{_lambda_.16} parent=0 // pred_check
    %p19 = pneg %p18
  $region19: #{_lambda_.16} parent=0 // pred_check_branch
    %21 = sbr.rel (%p19) target = $region21
  $region20: #{_lambda_.16} parent=0 // pred_region
    %22 = vst [vmem:[#allocation2] sm:$0xff] 0.0
    %23 = vst [vmem:[#allocation2 + $0x8] sm:$0xff] 0.0
    %24 = vst [vmem:[#allocation2 + $0x10] sm:$0xff] 0.0
    %25 = vst [vmem:[#allocation2 + $0x18] sm:$0xff] 0.0
  $region21: #{_lambda_.16} parent=0 // pred_fallthru
    _
  %v26 = vld [vmem:[#allocation2] sm:$0xff]
  %v27 = vld [vmem:[#allocation2 + $0x8] sm:$0xff]
  %v28 = vld [vmem:[#allocation2 + $0x10] sm:$0xff]
  %v29 = vld [vmem:[#allocation2 + $0x18] sm:$0xff]
  %v30 = vld [vmem:[%s0] sm:$0xf]
  %v31 = vld [vmem:[%s0 + $0x4] sm:$0xf]
  %v32 = vld [vmem:[%s0 + $0x8] sm:$0xf]
  %v33 = vld [vmem:[%s0 + $0xc] sm:$0xf]
  %v34 = vld [vmem:[%s1] sm:$0xf]
  %v35 = vld [vmem:[%s1 + $0x4] sm:$0xf]
  %v36 = vld [vmem:[%s1 + $0x8] sm:$0xf]
  %v37 = vld [vmem:[%s1 + $0xc] sm:$0xf]
  %v38 = vld [vmem:[%s1 + $0x10] sm:$0xf]
  %v39 = vld [vmem:[%s1 + $0x14] sm:$0xf]
  %v40 = vld [vmem:[%s1 + $0x18] sm:$0xf]
  %v41 = vld [vmem:[%s1 + $0x1c] sm:$0xf]
  %v42 = vld [vmem:[%s1 + $0x20] sm:$0xf]
  %v43 = vld [vmem:[%s1 + $0x24] sm:$0xf]
  %v44 = vld [vmem:[%s1 + $0x28] sm:$0xf]
  %v45 = vld [vmem:[%s1 + $0x2c] sm:$0xf]
  %v46 = vld [vmem:[%s1 + $0x30] sm:$0xf]
  %v47 = vld [vmem:[%s1 + $0x34] sm:$0xf]
  %v48 = vld [vmem:[%s1 + $0x38] sm:$0xf]
  %v49 = vld [vmem:[%s1 + $0x3c] sm:$0xf]
  %v54 = vunpack.c.l.b16 %v30
  %v55 = vunpack.c.l.b16 %v31
  %v56 = vunpack.c.l.b16 %v32
  %v57 = vunpack.c.l.b16 %v33
  %v58 = vpack.c.b16 %v55, %v54
  %v59 = vpack.c.b16 %v57, %v56
  %v78 = vunpack.c.l.b16 %v34
  %v79 = vunpack.c.l.b16 %v35
  %v80 = vunpack.c.l.b16 %v36
  %v81 = vunpack.c.l.b16 %v37
  %v82 = vunpack.c.l.b16 %v38
  %v83 = vunpack.c.l.b16 %v39
  %v84 = vunpack.c.l.b16 %v40
  %v85 = vunpack.c.l.b16 %v41
  %v86 = vunpack.c.l.b16 %v42
  %v87 = vunpack.c.l.b16 %v43
  %v88 = vunpack.c.l.b16 %v44
  %v89 = vunpack.c.l.b16 %v45
  %v90 = vunpack.c.l.b16 %v46
  %v91 = vunpack.c.l.b16 %v47
  %v92 = vunpack.c.l.b16 %v48
  %v93 = vunpack.c.l.b16 %v49
  %v94 = vpack.c.b16 %v79, %v78
  %v95 = vpack.c.b16 %v81, %v80
  %v96 = vpack.c.b16 %v83, %v82
  %v97 = vpack.c.b16 %v85, %v84
  %v98 = vpack.c.b16 %v87, %v86
  %v99 = vpack.c.b16 %v89, %v88
  %v100 = vpack.c.b16 %v91, %v90
  %v101 = vpack.c.b16 %v93, %v92
  %110 = vmatprep.subr.bf16.mxu0 0
  %111 = vmatpush1.bf16.msra.mxu0 %v94
  %112 = vmatprep.subr.bf16.mxu0 0
  %113 = vmatpush1.bf16.msra.mxu0 %v95
  %114 = vmatprep.subr.bf16.mxu0 0
  %115 = vmatpush1.bf16.msra.mxu0 %v96
  %116 = vmatprep.subr.bf16.mxu0 0
  %117 = vmatpush1.bf16.msra.mxu0 %v97
  %118 = vmatprep.subr.bf16.mxu0 0
  %119 = vmatpush1.bf16.msra.mxu0 %v98
  %120 = vmatprep.subr.bf16.mxu0 0
  %121 = vmatpush1.bf16.msra.mxu0 %v99
  %122 = vmatprep.subr.bf16.mxu0 0
  %123 = vmatpush1.bf16.msra.mxu0 %v100
  %124 = vmatprep.subr.bf16.mxu0 0
  %125 = vmatpush1.bf16.msra.mxu0 %v101
  %126 = vmatprep.subr.bf16.mxu0 0
  %127 = vmatpush1.bf16.msra.mxu0 0
  %128 = vmatprep.subr.bf16.mxu0 0
  %129 = vmatpush1.bf16.msra.mxu0 0
  %130 = vmatprep.subr.bf16.mxu0 0
  %131 = vmatpush1.bf16.msra.mxu0 0
  %132 = vmatprep.subr.bf16.mxu0 0
  %133 = vmatpush1.bf16.msra.mxu0 0
  %134 = vmatprep.subr.bf16.mxu0 0
  %135 = vmatpush1.bf16.msra.mxu0 0
  %136 = vmatprep.subr.bf16.mxu0 0
  %137 = vmatpush1.bf16.msra.mxu0 0
  %138 = vmatprep.subr.bf16.mxu0 0
  %139 = vmatpush1.bf16.msra.mxu0 0
  %140 = vmatprep.subr.bf16.mxu0 0
  %141 = vmatpush1.bf16.msra.mxu0 0
  %142 = vmatprep.mubr.bf16.mxu0 0
  %143 = vmatmul.mubr.bf16.gmra.mrb[0].mxu0 %v58
  %v144 = vpop.f32.mrb[0].mxu0
  %v145 = vadd.f32 0.0, %v144
  %v146 = vpop.f32.mrb[0].mxu0
  %v147 = vpop.f32.mrb[0].mxu0
  %v148 = vadd.f32 0.0, %v147
  %v149 = vpop.f32.mrb[0].mxu0
  %150 = vmatprep.mubr.bf16.mxu0 0
  %151 = vmatmul.mubr.bf16.gmra.mrb[0].mxu0 %v59
  %v152 = vpop.f32.mrb[0].mxu0
  %v153 = vadd.f32 0.0, %v152
  %v154 = vpop.f32.mrb[0].mxu0
  %v155 = vpop.f32.mrb[0].mxu0
  %v156 = vadd.f32 0.0, %v155
  %v157 = vpop.f32.mrb[0].mxu0
  %158 = vdwg.mxu0
  %v159 = vadd.f32 %v26, %v145
  %v160 = vadd.f32 %v27, %v148
  %v161 = vadd.f32 %v28, %v153
  %v162 = vadd.f32 %v29, %v156
  %163 = vst [vmem:[#allocation2] sm:$0xff] %v159
  %164 = vst [vmem:[#allocation2 + $0x8] sm:$0xff] %v160
  %165 = vst [vmem:[#allocation2 + $0x10] sm:$0xff] %v161
  %166 = vst [vmem:[#allocation2 + $0x18] sm:$0xff] %v162
  // Predicated region
  $region22: #{_lambda_.16} parent=0 // pred_check
    %p167 = pneg %p18
  $region23: #{_lambda_.16} parent=0 // pred_check_branch
    %169 = sbr.rel (%p167) target = $region25
  $region24: #{_lambda_.16} parent=0 // pred_region
    %v170 = vld [vmem:[#allocation2] sm:$0xff]
    %v171 = vld [vmem:[#allocation2 + $0x8] sm:$0xff]
    %v172 = vld [vmem:[#allocation2 + $0x10] sm:$0xff]
    %v173 = vld [vmem:[#allocation2 + $0x18] sm:$0xff]
    %v174 = vld [vmem:[%s2] sm:$0x1]
    %v176 = vlaneseq
    %v177 = vshrl.u32 %v176, 7
    %v178 = vsub.s32 0, %v177
    %v179 = vrot.slane %v174, %v178
    %v181 = vmul.f32 %v170, %v179
    %v182 = vmul.f32 %v171, %v179
    %v183 = vmul.f32 %v172, %v179
    %v184 = vmul.f32 %v173, %v179
    %v185 = vld [vmem:[%s3] sm:$0x1]
    %v187 = vlaneseq
    %v188 = vshrl.u32 %v187, 7
    %v189 = vsub.s32 0, %v188
    %v190 = vrot.slane %v185, %v189
    %v192 = vadd.f32 %v181, %v190
    %v193 = vadd.f32 %v182, %v190
    %v194 = vadd.f32 %v183, %v190
    %v195 = vadd.f32 %v184, %v190
    %vm196 = vcmp.gt.f32.partialorder %v192, 0.0
    %vm197 = vcmp.gt.f32.partialorder %v193, 0.0
    %vm198 = vcmp.gt.f32.partialorder %v194, 0.0
    %vm199 = vcmp.gt.f32.partialorder %v195, 0.0
    %v200 = vmul.f32 %v192, 0.1
    %v201 = vmul.f32 %v193, 0.1
    %v202 = vmul.f32 %v194, 0.1
    %v203 = vmul.f32 %v195, 0.1
    %v204 = vsel %vm196, %v192, %v200
    %v205 = vsel %vm197, %v193, %v201
    %v206 = vsel %vm198, %v194, %v202
    %v207 = vsel %vm199, %v195, %v203
    %208 = vst [vmem:[%s4] sm:$0xff] %v204
    %209 = vst [vmem:[%s4 + $0x8] sm:$0xff] %v205
    %210 = vst [vmem:[%s4 + $0x10] sm:$0xff] %v206
    %211 = vst [vmem:[%s4 + $0x18] sm:$0xff] %v207
  $region25: #{_lambda_.16} parent=0 // pred_fallthru
    _
  // Predicated region
  $region26: #{_lambda_.16} parent=0 // pred_check
    _
  $region27: #{_lambda_.16} parent=0 // pred_check_branch
    %213 = sbr.rel (0) target = $region29
  $region28: #{_lambda_.16} parent=0 // pred_region
    _
  $region29: #{_lambda_.16} parent=0 // pred_fallthru
    _
  // Predicated region
  $region30: #{_lambda_.16} parent=0 // pred_check
    _
  $region31: #{_lambda_.16} parent=0 // pred_check_branch
    %215 = sbr.rel (0) target = $region33
  $region32: #{_lambda_.16} parent=0 // pred_region
    _
  $region33: #{_lambda_.16} parent=0 // pred_fallthru
    _

// kernel: _lambda_.14
$region0: #{_lambda_.14}
  #allocation0 [shape = 'u32[]', space=smem, size = 0x4, offset = 0x4, fixed_abs, tag = 'smem constant byte address 0x4 - core index']
  #allocation1 [shape = 'u32[144,128]{1,0:T(1,128)}', space=vmem, size = 0x12000, scoped, tag = 'internal scratch']
  #allocation2 [shape = 'f32[32,128]{1,0:T(8,128)}', space=vmem, size = 0x4000, scoped, tag = 'scratch operand']
  %s0 = inlined_call_operand.vmem [shape: bf16[32,256], index: 0, kind: input, shape index: {}]
  %s1 = inlined_call_operand.vmem [shape: bf16[256,128], index: 1, kind: input, shape index: {}]
  %s2 = inlined_call_operand.vmem [shape: f32[1,128], index: 2, kind: input, shape index: {}]
  %s3 = inlined_call_operand.vmem [shape: f32[1,128], index: 3, kind: input, shape index: {}]
  %s4 = inlined_call_operand.vmem [shape: f32[32,128], index: 4, kind: output, shape index: {}]
  %s5 = sld [smem:[#allocation0]]
  $region34: #{_lambda_.14} parent=0
    _
  %s7 = ssub.s32 1, %s5
  %s8 = scalar_select 0, %s7, %s5
  // Predicated region
  $region2: #{_lambda_.14} parent=0 // pred_check
    _
  $region3: #{_lambda_.14} parent=0 // pred_check_branch
    %10 = sbr.rel (0) target = $region5
  $region4: #{_lambda_.14} parent=0 // pred_region
    _
  $region5: #{_lambda_.14} parent=0 // pred_fallthru
    _
  // Predicated region
  $region6: #{_lambda_.14} parent=0 // pred_check
    _
  $region7: #{_lambda_.14} parent=0 // pred_check_branch
    %12 = sbr.rel (0) target = $region9
  $region8: #{_lambda_.14} parent=0 // pred_region
    _
  $region9: #{_lambda_.14} parent=0 // pred_fallthru
    _
  // Predicated region
  $region10: #{_lambda_.14} parent=0 // pred_check
    _
  $region11: #{_lambda_.14} parent=0 // pred_check_branch
    %14 = sbr.rel (0) target = $region13
  $region12: #{_lambda_.14} parent=0 // pred_region
    _
  $region13: #{_lambda_.14} parent=0 // pred_fallthru
    _
  // Predicated region
  $region14: #{_lambda_.14} parent=0 // pred_check
    _
  $region15: #{_lambda_.14} parent=0 // pred_check_branch
    %16 = sbr.rel (0) target = $region17
  $region16: #{_lambda_.14} parent=0 // pred_region
    _
  $region17: #{_lambda_.14} parent=0 // pred_fallthru
    _
  %p18 = scmp.eq.s32.totalorder 0, 0
  // Predicated region
  $region18: #{_lambda_.14} parent=0 // pred_check
    %p19 = pneg %p18
  $region19: #{_lambda_.14} parent=0 // pred_check_branch
    %21 = sbr.rel (%p19) target = $region21
  $region20: #{_lambda_.14} parent=0 // pred_region
    %22 = vst [vmem:[#allocation2] sm:$0xff] 0.0
    %23 = vst [vmem:[#allocation2 + $0x8] sm:$0xff] 0.0
    %24 = vst [vmem:[#allocation2 + $0x10] sm:$0xff] 0.0
    %25 = vst [vmem:[#allocation2 + $0x18] sm:$0xff] 0.0
  $region21: #{_lambda_.14} parent=0 // pred_fallthru
    _
  %v26 = vld [vmem:[#allocation2] sm:$0xff]
  %v27 = vld [vmem:[#allocation2 + $0x8] sm:$0xff]
  %v28 = vld [vmem:[#allocation2 + $0x10] sm:$0xff]
  %v29 = vld [vmem:[#allocation2 + $0x18] sm:$0xff]
  %v30 = vld [vmem:[%s0] sm:$0xff]
  %v31 = vld [vmem:[%s0 + $0x8] sm:$0xff]
  %v32 = vld [vmem:[%s0 + $0x10] sm:$0xff]
  %v33 = vld [vmem:[%s0 + $0x18] sm:$0xff]
  %v34 = vld [vmem:[%s1] sm:$0xf]
  %v35 = vld [vmem:[%s1 + $0x4] sm:$0xf]
  %v36 = vld [vmem:[%s1 + $0x8] sm:$0xf]
  %v37 = vld [vmem:[%s1 + $0xc] sm:$0xf]
  %v38 = vld [vmem:[%s1 + $0x10] sm:$0xf]
  %v39 = vld [vmem:[%s1 + $0x14] sm:$0xf]
  %v40 = vld [vmem:[%s1 + $0x18] sm:$0xf]
  %v41 = vld [vmem:[%s1 + $0x1c] sm:$0xf]
  %v42 = vld [vmem:[%s1 + $0x20] sm:$0xf]
  %v43 = vld [vmem:[%s1 + $0x24] sm:$0xf]
  %v44 = vld [vmem:[%s1 + $0x28] sm:$0xf]
  %v45 = vld [vmem:[%s1 + $0x2c] sm:$0xf]
  %v46 = vld [vmem:[%s1 + $0x30] sm:$0xf]
  %v47 = vld [vmem:[%s1 + $0x34] sm:$0xf]
  %v48 = vld [vmem:[%s1 + $0x38] sm:$0xf]
  %v49 = vld [vmem:[%s1 + $0x3c] sm:$0xf]
  %v50 = vld [vmem:[%s1 + $0x40] sm:$0xf]
  %v51 = vld [vmem:[%s1 + $0x44] sm:$0xf]
  %v52 = vld [vmem:[%s1 + $0x48] sm:$0xf]
  %v53 = vld [vmem:[%s1 + $0x4c] sm:$0xf]
  %v54 = vld [vmem:[%s1 + $0x50] sm:$0xf]
  %v55 = vld [vmem:[%s1 + $0x54] sm:$0xf]
  %v56 = vld [vmem:[%s1 + $0x58] sm:$0xf]
  %v57 = vld [vmem:[%s1 + $0x5c] sm:$0xf]
  %v58 = vld [vmem:[%s1 + $0x60] sm:$0xf]
  %v59 = vld [vmem:[%s1 + $0x64] sm:$0xf]
  %v60 = vld [vmem:[%s1 + $0x68] sm:$0xf]
  %v61 = vld [vmem:[%s1 + $0x6c] sm:$0xf]
  %v62 = vld [vmem:[%s1 + $0x70] sm:$0xf]
  %v63 = vld [vmem:[%s1 + $0x74] sm:$0xf]
  %v64 = vld [vmem:[%s1 + $0x78] sm:$0xf]
  %v65 = vld [vmem:[%s1 + $0x7c] sm:$0xf]
  %v70 = vunpack.c.l.b16 %v30
  %v71 = vunpack.c.h.b16 %v30
  %v72 = vunpack.c.l.b16 %v31
  %v73 = vunpack.c.h.b16 %v31
  %v74 = vunpack.c.l.b16 %v32
  %v75 = vunpack.c.h.b16 %v32
  %v76 = vunpack.c.l.b16 %v33
  %v77 = vunpack.c.h.b16 %v33
  %v78 = vpack.c.b16 %v72, %v70
  %v79 = vpack.c.b16 %v73, %v71
  %v80 = vpack.c.b16 %v76, %v74
  %v81 = vpack.c.b16 %v77, %v75
  %v118 = vunpack.c.l.b16 %v34
  %v119 = vunpack.c.l.b16 %v35
  %v120 = vunpack.c.l.b16 %v36
  %v121 = vunpack.c.l.b16 %v37
  %v122 = vunpack.c.l.b16 %v38
  %v123 = vunpack.c.l.b16 %v39
  %v124 = vunpack.c.l.b16 %v40
  %v125 = vunpack.c.l.b16 %v41
  %v126 = vunpack.c.l.b16 %v42
  %v127 = vunpack.c.l.b16 %v43
  %v128 = vunpack.c.l.b16 %v44
  %v129 = vunpack.c.l.b16 %v45
  %v130 = vunpack.c.l.b16 %v46
  %v131 = vunpack.c.l.b16 %v47
  %v132 = vunpack.c.l.b16 %v48
  %v133 = vunpack.c.l.b16 %v49
  %v134 = vunpack.c.l.b16 %v50
  %v135 = vunpack.c.l.b16 %v51
  %v136 = vunpack.c.l.b16 %v52
  %v137 = vunpack.c.l.b16 %v53
  %v138 = vunpack.c.l.b16 %v54
  %v139 = vunpack.c.l.b16 %v55
  %v140 = vunpack.c.l.b16 %v56
  %v141 = vunpack.c.l.b16 %v57
  %v142 = vunpack.c.l.b16 %v58
  %v143 = vunpack.c.l.b16 %v59
  %v144 = vunpack.c.l.b16 %v60
  %v145 = vunpack.c.l.b16 %v61
  %v146 = vunpack.c.l.b16 %v62
  %v147 = vunpack.c.l.b16 %v63
  %v148 = vunpack.c.l.b16 %v64
  %v149 = vunpack.c.l.b16 %v65
  %v150 = vpack.c.b16 %v119, %v118
  %v151 = vpack.c.b16 %v121, %v120
  %v152 = vpack.c.b16 %v123, %v122
  %v153 = vpack.c.b16 %v125, %v124
  %v154 = vpack.c.b16 %v127, %v126
  %v155 = vpack.c.b16 %v129, %v128
  %v156 = vpack.c.b16 %v131, %v130
  %v157 = vpack.c.b16 %v133, %v132
  %v158 = vpack.c.b16 %v135, %v134
  %v159 = vpack.c.b16 %v137, %v136
  %v160 = vpack.c.b16 %v139, %v138
  %v161 = vpack.c.b16 %v141, %v140
  %v162 = vpack.c.b16 %v143, %v142
  %v163 = vpack.c.b16 %v145, %v144
  %v164 = vpack.c.b16 %v147, %v146
  %v165 = vpack.c.b16 %v149, %v148
  %182 = vmatprep.subr.bf16.mxu0 0
  %183 = vmatpush1.bf16.msra.mxu0 %v150
  %184 = vmatprep.subr.bf16.mxu0 0
  %185 = vmatpush1.bf16.msra.mxu0 %v151
  %186 = vmatprep.subr.bf16.mxu0 0
  %187 = vmatpush1.bf16.msra.mxu0 %v152
  %188 = vmatprep.subr.bf16.mxu0 0
  %189 = vmatpush1.bf16.msra.mxu0 %v153
  %190 = vmatprep.subr.bf16.mxu0 0
  %191 = vmatpush1.bf16.msra.mxu0 %v154
  %192 = vmatprep.subr.bf16.mxu0 0
  %193 = vmatpush1.bf16.msra.mxu0 %v155
  %194 = vmatprep.subr.bf16.mxu0 0
  %195 = vmatpush1.bf16.msra.mxu0 %v156
  %196 = vmatprep.subr.bf16.mxu0 0
  %197 = vmatpush1.bf16.msra.mxu0 %v157
  %198 = vmatprep.subr.bf16.mxu0 0
  %199 = vmatpush1.bf16.msra.mxu0 %v158
  %200 = vmatprep.subr.bf16.mxu0 0
  %201 = vmatpush1.bf16.msra.mxu0 %v159
  %202 = vmatprep.subr.bf16.mxu0 0
  %203 = vmatpush1.bf16.msra.mxu0 %v160
  %204 = vmatprep.subr.bf16.mxu0 0
  %205 = vmatpush1.bf16.msra.mxu0 %v161
  %206 = vmatprep.subr.bf16.mxu0 0
  %207 = vmatpush1.bf16.msra.mxu0 %v162
  %208 = vmatprep.subr.bf16.mxu0 0
  %209 = vmatpush1.bf16.msra.mxu0 %v163
  %210 = vmatprep.subr.bf16.mxu0 0
  %211 = vmatpush1.bf16.msra.mxu0 %v164
  %212 = vmatprep.subr.bf16.mxu0 0
  %213 = vmatpush1.bf16.msra.mxu0 %v165
  %214 = vmatprep.mubr.bf16.mxu0 %v79
  %215 = vmatmul.mubr.bf16.gmra.mrb[0].mxu0 %v78
  %v216 = vpop.f32.mrb[0].mxu0
  %v217 = vadd.f32 0.0, %v216
  %v218 = vpop.f32.mrb[0].mxu0
  %v219 = vpop.f32.mrb[0].mxu0
  %v220 = vadd.f32 0.0, %v219
  %v221 = vpop.f32.mrb[0].mxu0
  %222 = vmatprep.mubr.bf16.mxu0 %v81
  %223 = vmatmul.mubr.bf16.gmra.mrb[0].mxu0 %v80
  %v224 = vpop.f32.mrb[0].mxu0
  %v225 = vadd.f32 0.0, %v224
  %v226 = vpop.f32.mrb[0].mxu0
  %v227 = vpop.f32.mrb[0].mxu0
  %v228 = vadd.f32 0.0, %v227
  %v229 = vpop.f32.mrb[0].mxu0
  %230 = vdwg.mxu0
  %v231 = vadd.f32 %v26, %v217
  %v232 = vadd.f32 %v27, %v220
  %v233 = vadd.f32 %v28, %v225
  %v234 = vadd.f32 %v29, %v228
  %235 = vst [vmem:[#allocation2] sm:$0xff] %v231
  %236 = vst [vmem:[#allocation2 + $0x8] sm:$0xff] %v232
  %237 = vst [vmem:[#allocation2 + $0x10] sm:$0xff] %v233
  %238 = vst [vmem:[#allocation2 + $0x18] sm:$0xff] %v234
  // Predicated region
  $region22: #{_lambda_.14} parent=0 // pred_check
    %p239 = pneg %p18
  $region23: #{_lambda_.14} parent=0 // pred_check_branch
    %241 = sbr.rel (%p239) target = $region25
  $region24: #{_lambda_.14} parent=0 // pred_region
    %v242 = vld [vmem:[#allocation2] sm:$0xff]
    %v243 = vld [vmem:[#allocation2 + $0x8] sm:$0xff]
    %v244 = vld [vmem:[#allocation2 + $0x10] sm:$0xff]
    %v245 = vld [vmem:[#allocation2 + $0x18] sm:$0xff]
    %v246 = vld [vmem:[%s2] sm:$0x1]
    %v248 = vlaneseq
    %v249 = vshrl.u32 %v248, 7
    %v250 = vsub.s32 0, %v249
    %v251 = vrot.slane %v246, %v250
    %v253 = vmul.f32 %v242, %v251
    %v254 = vmul.f32 %v243, %v251
    %v255 = vmul.f32 %v244, %v251
    %v256 = vmul.f32 %v245, %v251
    %v257 = vld [vmem:[%s3] sm:$0x1]
    %v259 = vlaneseq
    %v260 = vshrl.u32 %v259, 7
    %v261 = vsub.s32 0, %v260
    %v262 = vrot.slane %v257, %v261
    %v264 = vadd.f32 %v253, %v262
    %v265 = vadd.f32 %v254, %v262
    %v266 = vadd.f32 %v255, %v262
    %v267 = vadd.f32 %v256, %v262
    %vm268 = vcmp.gt.f32.partialorder %v264, 0.0
    %vm269 = vcmp.gt.f32.partialorder %v265, 0.0
    %vm270 = vcmp.gt.f32.partialorder %v266, 0.0
    %vm271 = vcmp.gt.f32.partialorder %v267, 0.0
    %v272 = vmul.f32 %v264, 0.1
    %v273 = vmul.f32 %v265, 0.1
    %v274 = vmul.f32 %v266, 0.1
    %v275 = vmul.f32 %v267, 0.1
    %v276 = vsel %vm268, %v264, %v272
    %v277 = vsel %vm269, %v265, %v273
    %v278 = vsel %vm270, %v266, %v274
    %v279 = vsel %vm271, %v267, %v275
    %280 = vst [vmem:[%s4] sm:$0xff] %v276
    %281 = vst [vmem:[%s4 + $0x8] sm:$0xff] %v277
    %282 = vst [vmem:[%s4 + $0x10] sm:$0xff] %v278
    %283 = vst [vmem:[%s4 + $0x18] sm:$0xff] %v279
  $region25: #{_lambda_.14} parent=0 // pred_fallthru
    _
  // Predicated region
  $region26: #{_lambda_.14} parent=0 // pred_check
    _
  $region27: #{_lambda_.14} parent=0 // pred_check_branch
    %285 = sbr.rel (0) target = $region29
  $region28: #{_lambda_.14} parent=0 // pred_region
    _
  $region29: #{_lambda_.14} parent=0 // pred_fallthru
    _
  // Predicated region
  $region30: #{_lambda_.14} parent=0 // pred_check
    _
  $region31: #{_lambda_.14} parent=0 // pred_check_branch
    %287 = sbr.rel (0) target = $region33
  $region32: #{_lambda_.14} parent=0 // pred_region
    _
  $region33: #{_lambda_.14} parent=0 // pred_fallthru
    _

// kernel: _lambda_.17
$region0: #{_lambda_.17}
  #allocation0 [shape = 'u32[]', space=smem, size = 0x4, offset = 0x4, fixed_abs, tag = 'smem constant byte address 0x4 - core index']
  #allocation1 [shape = 'u32[144,128]{1,0:T(1,128)}', space=vmem, size = 0x12000, scoped, tag = 'internal scratch']
  %s0 = inlined_call_operand.vmem [shape: f32[2,4,4,8], index: 0, kind: input, shape index: {}]
  %s1 = inlined_call_operand.vmem [shape: f32[2,4,4,8], index: 1, kind: output, shape index: {0}]
  %s2 = inlined_call_operand.vmem [shape: f32[2,4,4,8], index: 2, kind: output, shape index: {1}]
  %s3 = inlined_call_operand.vmem [shape: f32[2,4,4,8], index: 3, kind: output, shape index: {2}]
  %s4 = inlined_call_operand.vmem [shape: f32[2,4,4,8], index: 4, kind: output, shape index: {3}]
  %5 = xla_tuple %s1, %s2, %s3, %s4
  %s6 = sld [smem:[#allocation0]]
  $region38: #{_lambda_.17} parent=0
    _
  %s8 = ssub.s32 1, %s6
  %s9 = scalar_select 0, %s8, %s6
  // Predicated region
  $region2: #{_lambda_.17} parent=0 // pred_check
    _
  $region3: #{_lambda_.17} parent=0 // pred_check_branch
    %11 = sbr.rel (0) target = $region5
  $region4: #{_lambda_.17} parent=0 // pred_region
    _
  $region5: #{_lambda_.17} parent=0 // pred_fallthru
    _
  %v12 = vld [vmem:[%s0] sm:$0xf]
  %v13 = vld [vmem:[%s0 + $0x4] sm:$0xf]
  %v14 = vld [vmem:[%s0 + $0x8] sm:$0xf]
  %v15 = vld [vmem:[%s0 + $0xc] sm:$0xf]
  %v16 = vld [vmem:[%s0 + $0x10] sm:$0xf]
  %v17 = vld [vmem:[%s0 + $0x14] sm:$0xf]
  %v18 = vld [vmem:[%s0 + $0x18] sm:$0xf]
  %v19 = vld [vmem:[%s0 + $0x1c] sm:$0xf]
  %v20 = vmul.f32 %v12, 0.25
  %v21 = vmul.f32 %v13, 0.25
  %v22 = vmul.f32 %v14, 0.25
  %v23 = vmul.f32 %v16, 0.25
  %v24 = vmul.f32 %v17, 0.25
  %v25 = vmul.f32 %v18, 0.25
  %v26 = vmul.f32 %v12, 0.75
  %v27 = vmul.f32 %v13, 0.75
  %v28 = vmul.f32 %v14, 0.75
  %v29 = vmul.f32 %v15, 0.75
  %v30 = vmul.f32 %v16, 0.75
  %v31 = vmul.f32 %v17, 0.75
  %v32 = vmul.f32 %v18, 0.75
  %v33 = vmul.f32 %v19, 0.75
  %v34 = vadd.f32 %v20, %v26
  %v35 = vadd.f32 %v20, %v27
  %v36 = vadd.f32 %v21, %v28
  %v37 = vadd.f32 %v22, %v29
  %v38 = vadd.f32 %v23, %v30
  %v39 = vadd.f32 %v23, %v31
  %v40 = vadd.f32 %v24, %v32
  %v41 = vadd.f32 %v25, %v33
  %v42 = vmul.f32 %v15, 0.25
  %v43 = vmul.f32 %v19, 0.25
  %v44 = vadd.f32 %v26, %v21
  %v45 = vadd.f32 %v27, %v22
  %v46 = vadd.f32 %v28, %v42
  %v47 = vadd.f32 %v29, %v42
  %v48 = vadd.f32 %v30, %v24
  %v49 = vadd.f32 %v31, %v25
  %v50 = vadd.f32 %v32, %v43
  %v51 = vadd.f32 %v33, %v43
  %v60 = vrot.slane %v34, 7
  %v61 = vrot.slane %v35, 7
  %v62 = vrot.slane %v36, 7
  %v63 = vrot.slane %v37, 7
  %v64 = vrot.slane %v38, 7
  %v65 = vrot.slane %v39, 7
  %v66 = vrot.slane %v40, 7
  %v67 = vrot.slane %v41, 7
  %vm76 = vcmask 1040384
  %v77 = vsel %vm76, %v34, %v60
  %v78 = vsel %vm76, %v35, %v61
  %v79 = vsel %vm76, %v36, %v62
  %v80 = vsel %vm76, %v37, %v63
  %v81 = vsel %vm76, %v38, %v64
  %v82 = vsel %vm76, %v39, %v65
  %v83 = vsel %vm76, %v40, %v66
  %v84 = vsel %vm76, %v41, %v67
  %v85 = vrot.slane %v34, 1
  %v86 = vrot.slane %v35, 1
  %v87 = vrot.slane %v36, 1
  %v88 = vrot.slane %v37, 1
  %v89 = vrot.slane %v38, 1
  %v90 = vrot.slane %v39, 1
  %v91 = vrot.slane %v40, 1
  %v92 = vrot.slane %v41, 1
  %vm101 = vcmask 1042432
  %v102 = vsel %vm101, %v85, %v34
  %v103 = vsel %vm101, %v86, %v35
  %v104 = vsel %vm101, %v87, %v36
  %v105 = vsel %vm101, %v88, %v37
  %v106 = vsel %vm101, %v89, %v38
  %v107 = vsel %vm101, %v90, %v39
  %v108 = vsel %vm101, %v91, %v40
  %v109 = vsel %vm101, %v92, %v41
  %v110 = vmul.f32 %v77, 0.25
  %v111 = vmul.f32 %v78, 0.25
  %v112 = vmul.f32 %v79, 0.25
  %v113 = vmul.f32 %v80, 0.25
  %v114 = vmul.f32 %v81, 0.25
  %v115 = vmul.f32 %v82, 0.25
  %v116 = vmul.f32 %v83, 0.25
  %v117 = vmul.f32 %v84, 0.25
  %v118 = vmul.f32 %v34, 0.75
  %v119 = vmul.f32 %v35, 0.75
  %v120 = vmul.f32 %v36, 0.75
  %v121 = vmul.f32 %v37, 0.75
  %v122 = vmul.f32 %v38, 0.75
  %v123 = vmul.f32 %v39, 0.75
  %v124 = vmul.f32 %v40, 0.75
  %v125 = vmul.f32 %v41, 0.75
  %v126 = vadd.f32 %v110, %v118
  %v127 = vadd.f32 %v111, %v119
  %v128 = vadd.f32 %v112, %v120
  %v129 = vadd.f32 %v113, %v121
  %v130 = vadd.f32 %v114, %v122
  %v131 = vadd.f32 %v115, %v123
  %v132 = vadd.f32 %v116, %v124
  %v133 = vadd.f32 %v117, %v125
  %v134 = vmul.f32 %v102, 0.25
  %v135 = vmul.f32 %v103, 0.25
  %v136 = vmul.f32 %v104, 0.25
  %v137 = vmul.f32 %v105, 0.25
  %v138 = vmul.f32 %v106, 0.25
  %v139 = vmul.f32 %v107, 0.25
  %v140 = vmul.f32 %v108, 0.25
  %v141 = vmul.f32 %v109, 0.25
  %v142 = vadd.f32 %v118, %v134
  %v143 = vadd.f32 %v119, %v135
  %v144 = vadd.f32 %v120, %v136
  %v145 = vadd.f32 %v121, %v137
  %v146 = vadd.f32 %v122, %v138
  %v147 = vadd.f32 %v123, %v139
  %v148 = vadd.f32 %v124, %v140
  %v149 = vadd.f32 %v125, %v141
  %v158 = vrot.slane %v44, 7
  %v159 = vrot.slane %v45, 7
  %v160 = vrot.slane %v46, 7
  %v161 = vrot.slane %v47, 7
  %v162 = vrot.slane %v48, 7
  %v163 = vrot.slane %v49, 7
  %v164 = vrot.slane %v50, 7
  %v165 = vrot.slane %v51, 7
  %v174 = vsel %vm76, %v44, %v158
  %v175 = vsel %vm76, %v45, %v159
  %v176 = vsel %vm76, %v46, %v160
  %v177 = vsel %vm76, %v47, %v161
  %v178 = vsel %vm76, %v48, %v162
  %v179 = vsel %vm76, %v49, %v163
  %v180 = vsel %vm76, %v50, %v164
  %v181 = vsel %vm76, %v51, %v165
  %v182 = vrot.slane %v44, 1
  %v183 = vrot.slane %v45, 1
  %v184 = vrot.slane %v46, 1
  %v185 = vrot.slane %v47, 1
  %v186 = vrot.slane %v48, 1
  %v187 = vrot.slane %v49, 1
  %v188 = vrot.slane %v50, 1
  %v189 = vrot.slane %v51, 1
  %v198 = vsel %vm101, %v182, %v44
  %v199 = vsel %vm101, %v183, %v45
  %v200 = vsel %vm101, %v184, %v46
  %v201 = vsel %vm101, %v185, %v47
  %v202 = vsel %vm101, %v186, %v48
  %v203 = vsel %vm101, %v187, %v49
  %v204 = vsel %vm101, %v188, %v50
  %v205 = vsel %vm101, %v189, %v51
  %v206 = vmul.f32 %v174, 0.25
  %v207 = vmul.f32 %v175, 0.25
  %v208 = vmul.f32 %v176, 0.25
  %v209 = vmul.f32 %v177, 0.25
  %v210 = vmul.f32 %v178, 0.25
  %v211 = vmul.f32 %v179, 0.25
  %v212 = vmul.f32 %v180, 0.25
  %v213 = vmul.f32 %v181, 0.25
  %v214 = vmul.f32 %v44, 0.75
  %v215 = vmul.f32 %v45, 0.75
  %v216 = vmul.f32 %v46, 0.75
  %v217 = vmul.f32 %v47, 0.75
  %v218 = vmul.f32 %v48, 0.75
  %v219 = vmul.f32 %v49, 0.75
  %v220 = vmul.f32 %v50, 0.75
  %v221 = vmul.f32 %v51, 0.75
  %v222 = vadd.f32 %v206, %v214
  %v223 = vadd.f32 %v207, %v215
  %v224 = vadd.f32 %v208, %v216
  %v225 = vadd.f32 %v209, %v217
  %v226 = vadd.f32 %v210, %v218
  %v227 = vadd.f32 %v211, %v219
  %v228 = vadd.f32 %v212, %v220
  %v229 = vadd.f32 %v213, %v221
  %v230 = vmul.f32 %v198, 0.25
  %v231 = vmul.f32 %v199, 0.25
  %v232 = vmul.f32 %v200, 0.25
  %v233 = vmul.f32 %v201, 0.25
  %v234 = vmul.f32 %v202, 0.25
  %v235 = vmul.f32 %v203, 0.25
  %v236 = vmul.f32 %v204, 0.25
  %v237 = vmul.f32 %v205, 0.25
  %v238 = vadd.f32 %v214, %v230
  %v239 = vadd.f32 %v215, %v231
  %v240 = vadd.f32 %v216, %v232
  %v241 = vadd.f32 %v217, %v233
  %v242 = vadd.f32 %v218, %v234
  %v243 = vadd.f32 %v219, %v235
  %v244 = vadd.f32 %v220, %v236
  %v245 = vadd.f32 %v221, %v237
  %vm246 = vcmask 60416
  %247 = vst.msk [vmem:[%s1] sm:$0xf] %vm246, %v126
  %248 = vst.msk [vmem:[%s1 + $0x4] sm:$0xf] %vm246, %v127
  %249 = vst.msk [vmem:[%s1 + $0x8] sm:$0xf] %vm246, %v128
  %250 = vst.msk [vmem:[%s1 + $0xc] sm:$0xf] %vm246, %v129
  %251 = vst.msk [vmem:[%s1 + $0x10] sm:$0xf] %vm246, %v130
  %252 = vst.msk [vmem:[%s1 + $0x14] sm:$0xf] %vm246, %v131
  %253 = vst.msk [vmem:[%s1 + $0x18] sm:$0xf] %vm246, %v132
  %254 = vst.msk [vmem:[%s1 + $0x1c] sm:$0xf] %vm246, %v133
  %255 = vst.msk [vmem:[%s2] sm:$0xf] %vm246, %v142
  %256 = vst.msk [vmem:[%s2 + $0x4] sm:$0xf] %vm246, %v143
  %257 = vst.msk [vmem:[%s2 + $0x8] sm:$0xf] %vm246, %v144
  %258 = vst.msk [vmem:[%s2 + $0xc] sm:$0xf] %vm246, %v145
  %259 = vst.msk [vmem:[%s2 + $0x10] sm:$0xf] %vm246, %v146
  %260 = vst.msk [vmem:[%s2 + $0x14] sm:$0xf] %vm246, %v147
  %261 = vst.msk [vmem:[%s2 + $0x18] sm:$0xf] %vm246, %v148
  %262 = vst.msk [vmem:[%s2 + $0x1c] sm:$0xf] %vm246, %v149
  %263 = vst.msk [vmem:[%s3] sm:$0xf] %vm246, %v222
  %264 = vst.msk [vmem:[%s3 + $0x4] sm:$0xf] %vm246, %v223
  %265 = vst.msk [vmem:[%s3 + $0x8] sm:$0xf] %vm246, %v224
  %266 = vst.msk [vmem:[%s3 + $0xc] sm:$0xf] %vm246, %v225
  %267 = vst.msk [vmem:[%s3 + $0x10] sm:$0xf] %vm246, %v226
  %268 = vst.msk [vmem:[%s3 + $0x14] sm:$0xf] %vm246, %v227
  %269 = vst.msk [vmem:[%s3 + $0x18] sm:$0xf] %vm246, %v228
  %270 = vst.msk [vmem:[%s3 + $0x1c] sm:$0xf] %vm246, %v229
  %271 = vst.msk [vmem:[%s4] sm:$0xf] %vm246, %v238
  %272 = vst.msk [vmem:[%s4 + $0x4] sm:$0xf] %vm246, %v239
  %273 = vst.msk [vmem:[%s4 + $0x8] sm:$0xf] %vm246, %v240
  %274 = vst.msk [vmem:[%s4 + $0xc] sm:$0xf] %vm246, %v241
  %275 = vst.msk [vmem:[%s4 + $0x10] sm:$0xf] %vm246, %v242
  %276 = vst.msk [vmem:[%s4 + $0x14] sm:$0xf] %vm246, %v243
  %277 = vst.msk [vmem:[%s4 + $0x18] sm:$0xf] %vm246, %v244
  %278 = vst.msk [vmem:[%s4 + $0x1c] sm:$0xf] %vm246, %v245
  // Predicated region
  $region6: #{_lambda_.17} parent=0 // pred_check
    _
  $region7: #{_lambda_.17} parent=0 // pred_check_branch
    %280 = sbr.rel (0) target = $region9
  $region8: #{_lambda_.17} parent=0 // pred_region
    _
  $region9: #{_lambda_.17} parent=0 // pred_fallthru
    _
  // Predicated region
  $region10: #{_lambda_.17} parent=0 // pred_check
    _
  $region11: #{_lambda_.17} parent=0 // pred_check_branch
    %282 = sbr.rel (0) target = $region13
  $region12: #{_lambda_.17} parent=0 // pred_region
    _
  $region13: #{_lambda_.17} parent=0 // pred_fallthru
    _
  // Predicated region
  $region14: #{_lambda_.17} parent=0 // pred_check
    _
  $region15: #{_lambda_.17} parent=0 // pred_check_branch
    %284 = sbr.rel (0) target = $region17
  $region16: #{_lambda_.17} parent=0 // pred_region
    _
  $region17: #{_lambda_.17} parent=0 // pred_fallthru
    _
  // Predicated region
  $region18: #{_lambda_.17} parent=0 // pred_check
    _
  $region19: #{_lambda_.17} parent=0 // pred_check_branch
    %286 = sbr.rel (0) target = $region21
  $region20: #{_lambda_.17} parent=0 // pred_region
    _
  $region21: #{_lambda_.17} parent=0 // pred_fallthru
    _
  // Predicated region
  $region22: #{_lambda_.17} parent=0 // pred_check
    _
  $region23: #{_lambda_.17} parent=0 // pred_check_branch
    %288 = sbr.rel (0) target = $region25
  $region24: #{_lambda_.17} parent=0 // pred_region
    _
  $region25: #{_lambda_.17} parent=0 // pred_fallthru
    _
  // Predicated region
  $region26: #{_lambda_.17} parent=0 // pred_check
    _
  $region27: #{_lambda_.17} parent=0 // pred_check_branch
    %290 = sbr.rel (0) target = $region29
  $region28: #{_lambda_.17} parent=0 // pred_region
    _
  $region29: #{_lambda_.17} parent=0 // pred_fallthru
    _
  // Predicated region
  $region30: #{_lambda_.17} parent=0 // pred_check
    _
  $region31: #{_lambda_.17} parent=0 // pred_check_branch
    %292 = sbr.rel (0) target = $region33
  $region32: #{_lambda_.17} parent=0 // pred_region
    _
  $region33: #{_lambda_.17} parent=0 // pred_fallthru
    _
  // Predicated region
  $region34: #{_lambda_.17} parent=0 // pred_check
    _
  $region35: #{_lambda_.17} parent=0 // pred_check_branch
    %294 = sbr.rel (0) target = $region37
  $region36: #{_lambda_.17} parent=0 // pred_region
    _
  $region37: #{_lambda_.17} parent=0 // pred_fallthru
    _

// kernel: _lambda_.18
$region0: #{_lambda_.18}
  #allocation0 [shape = 'u32[]', space=smem, size = 0x4, offset = 0x4, fixed_abs, tag = 'smem constant byte address 0x4 - core index']
  #allocation1 [shape = 'u32[144,128]{1,0:T(1,128)}', space=vmem, size = 0x12000, scoped, tag = 'internal scratch']
  #allocation2 [shape = 'f32[128,128]{1,0:T(8,128)}', space=vmem, size = 0x10000, scoped, tag = 'scratch operand']
  %s0 = inlined_call_operand.vmem [shape: bf16[128,256], index: 0, kind: input, shape index: {}]
  %s1 = inlined_call_operand.vmem [shape: bf16[256,128], index: 1, kind: input, shape index: {}]
  %s2 = inlined_call_operand.vmem [shape: f32[1,128], index: 2, kind: input, shape index: {}]
  %s3 = inlined_call_operand.vmem [shape: f32[1,128], index: 3, kind: input, shape index: {}]
  %s4 = inlined_call_operand.vmem [shape: f32[128,128], index: 4, kind: output, shape index: {}]
  %s5 = sld [smem:[#allocation0]]
  $region34: #{_lambda_.18} parent=0
    _
  %s7 = ssub.s32 1, %s5
  %s8 = scalar_select 0, %s7, %s5
  // Predicated region
  $region2: #{_lambda_.18} parent=0 // pred_check
    _
  $region3: #{_lambda_.18} parent=0 // pred_check_branch
    %10 = sbr.rel (0) target = $region5
  $region4: #{_lambda_.18} parent=0 // pred_region
    _
  $region5: #{_lambda_.18} parent=0 // pred_fallthru
    _
  // Predicated region
  $region6: #{_lambda_.18} parent=0 // pred_check
    _
  $region7: #{_lambda_.18} parent=0 // pred_check_branch
    %12 = sbr.rel (0) target = $region9
  $region8: #{_lambda_.18} parent=0 // pred_region
    _
  $region9: #{_lambda_.18} parent=0 // pred_fallthru
    _
  // Predicated region
  $region10: #{_lambda_.18} parent=0 // pred_check
    _
  $region11: #{_lambda_.18} parent=0 // pred_check_branch
    %14 = sbr.rel (0) target = $region13
  $region12: #{_lambda_.18} parent=0 // pred_region
    _
  $region13: #{_lambda_.18} parent=0 // pred_fallthru
    _
  // Predicated region
  $region14: #{_lambda_.18} parent=0 // pred_check
    _
  $region15: #{_lambda_.18} parent=0 // pred_check_branch
    %16 = sbr.rel (0) target = $region17
  $region16: #{_lambda_.18} parent=0 // pred_region
    _
  $region17: #{_lambda_.18} parent=0 // pred_fallthru
    _
  %p18 = scmp.eq.s32.totalorder 0, 0
  // Predicated region
  $region18: #{_lambda_.18} parent=0 // pred_check
    %p19 = pneg %p18
  $region19: #{_lambda_.18} parent=0 // pred_check_branch
    %21 = sbr.rel (%p19) target = $region21
  $region20: #{_lambda_.18} parent=0 // pred_region
    %22 = vst [vmem:[#allocation2] sm:$0xff] 0.0
    %23 = vst [vmem:[#allocation2 + $0x8] sm:$0xff] 0.0
    %24 = vst [vmem:[#allocation2 + $0x10] sm:$0xff] 0.0
    %25 = vst [vmem:[#allocation2 + $0x18] sm:$0xff] 0.0
    %26 = vst [vmem:[#allocation2 + $0x20] sm:$0xff] 0.0
    %27 = vst [vmem:[#allocation2 + $0x28] sm:$0xff] 0.0
    %28 = vst [vmem:[#allocation2 + $0x30] sm:$0xff] 0.0
    %29 = vst [vmem:[#allocation2 + $0x38] sm:$0xff] 0.0
    %30 = vst [vmem:[#allocation2 + $0x40] sm:$0xff] 0.0
    %31 = vst [vmem:[#allocation2 + $0x48] sm:$0xff] 0.0
    %32 = vst [vmem:[#allocation2 + $0x50] sm:$0xff] 0.0
    %33 = vst [vmem:[#allocation2 + $0x58] sm:$0xff] 0.0
    %34 = vst [vmem:[#allocation2 + $0x60] sm:$0xff] 0.0
    %35 = vst [vmem:[#allocation2 + $0x68] sm:$0xff] 0.0
    %36 = vst [vmem:[#allocation2 + $0x70] sm:$0xff] 0.0
    %37 = vst [vmem:[#allocation2 + $0x78] sm:$0xff] 0.0
  $region21: #{_lambda_.18} parent=0 // pred_fallthru
    _
  %v38 = vld [vmem:[#allocation2] sm:$0xff]
  %v39 = vld [vmem:[#allocation2 + $0x8] sm:$0xff]
  %v40 = vld [vmem:[#allocation2 + $0x10] sm:$0xff]
  %v41 = vld [vmem:[#allocation2 + $0x18] sm:$0xff]
  %v42 = vld [vmem:[#allocation2 + $0x20] sm:$0xff]
  %v43 = vld [vmem:[#allocation2 + $0x28] sm:$0xff]
  %v44 = vld [vmem:[#allocation2 + $0x30] sm:$0xff]
  %v45 = vld [vmem:[#allocation2 + $0x38] sm:$0xff]
  %v46 = vld [vmem:[#allocation2 + $0x40] sm:$0xff]
  %v47 = vld [vmem:[#allocation2 + $0x48] sm:$0xff]
  %v48 = vld [vmem:[#allocation2 + $0x50] sm:$0xff]
  %v49 = vld [vmem:[#allocation2 + $0x58] sm:$0xff]
  %v50 = vld [vmem:[#allocation2 + $0x60] sm:$0xff]
  %v51 = vld [vmem:[#allocation2 + $0x68] sm:$0xff]
  %v52 = vld [vmem:[#allocation2 + $0x70] sm:$0xff]
  %v53 = vld [vmem:[#allocation2 + $0x78] sm:$0xff]
  %v54 = vld [vmem:[%s0] sm:$0xff]
  %v55 = vld [vmem:[%s0 + $0x8] sm:$0xff]
  %v56 = vld [vmem:[%s0 + $0x10] sm:$0xff]
  %v57 = vld [vmem:[%s0 + $0x18] sm:$0xff]
  %v58 = vld [vmem:[%s0 + $0x20] sm:$0xff]
  %v59 = vld [vmem:[%s0 + $0x28] sm:$0xff]
  %v60 = vld [vmem:[%s0 + $0x30] sm:$0xff]
  %v61 = vld [vmem:[%s0 + $0x38] sm:$0xff]
  %v62 = vld [vmem:[%s0 + $0x40] sm:$0xff]
  %v63 = vld [vmem:[%s0 + $0x48] sm:$0xff]
  %v64 = vld [vmem:[%s0 + $0x50] sm:$0xff]
  %v65 = vld [vmem:[%s0 + $0x58] sm:$0xff]
  %v66 = vld [vmem:[%s0 + $0x60] sm:$0xff]
  %v67 = vld [vmem:[%s0 + $0x68] sm:$0xff]
  %v68 = vld [vmem:[%s0 + $0x70] sm:$0xff]
  %v69 = vld [vmem:[%s0 + $0x78] sm:$0xff]
  %v70 = vld [vmem:[%s1] sm:$0xf]
  %v71 = vld [vmem:[%s1 + $0x4] sm:$0xf]
  %v72 = vld [vmem:[%s1 + $0x8] sm:$0xf]
  %v73 = vld [vmem:[%s1 + $0xc] sm:$0xf]
  %v74 = vld [vmem:[%s1 + $0x10] sm:$0xf]
  %v75 = vld [vmem:[%s1 + $0x14] sm:$0xf]
  %v76 = vld [vmem:[%s1 + $0x18] sm:$0xf]
  %v77 = vld [vmem:[%s1 + $0x1c] sm:$0xf]
  %v78 = vld [vmem:[%s1 + $0x20] sm:$0xf]
  %v79 = vld [vmem:[%s1 + $0x24] sm:$0xf]
  %v80 = vld [vmem:[%s1 + $0x28] sm:$0xf]
  %v81 = vld [vmem:[%s1 + $0x2c] sm:$0xf]
  %v82 = vld [vmem:[%s1 + $0x30] sm:$0xf]
  %v83 = vld [vmem:[%s1 + $0x34] sm:$0xf]
  %v84 = vld [vmem:[%s1 + $0x38] sm:$0xf]
  %v85 = vld [vmem:[%s1 + $0x3c] sm:$0xf]
  %v86 = vld [vmem:[%s1 + $0x40] sm:$0xf]
  %v87 = vld [vmem:[%s1 + $0x44] sm:$0xf]
  %v88 = vld [vmem:[%s1 + $0x48] sm:$0xf]
  %v89 = vld [vmem:[%s1 + $0x4c] sm:$0xf]
  %v90 = vld [vmem:[%s1 + $0x50] sm:$0xf]
  %v91 = vld [vmem:[%s1 + $0x54] sm:$0xf]
  %v92 = vld [vmem:[%s1 + $0x58] sm:$0xf]
  %v93 = vld [vmem:[%s1 + $0x5c] sm:$0xf]
  %v94 = vld [vmem:[%s1 + $0x60] sm:$0xf]
  %v95 = vld [vmem:[%s1 + $0x64] sm:$0xf]
  %v96 = vld [vmem:[%s1 + $0x68] sm:$0xf]
  %v97 = vld [vmem:[%s1 + $0x6c] sm:$0xf]
  %v98 = vld [vmem:[%s1 + $0x70] sm:$0xf]
  %v99 = vld [vmem:[%s1 + $0x74] sm:$0xf]
  %v100 = vld [vmem:[%s1 + $0x78] sm:$0xf]
  %v101 = vld [vmem:[%s1 + $0x7c] sm:$0xf]
  %v118 = vunpack.c.l.b16 %v54
  %v119 = vunpack.c.h.b16 %v54
  %v120 = vunpack.c.l.b16 %v55
  %v121 = vunpack.c.h.b16 %v55
  %v122 = vunpack.c.l.b16 %v56
  %v123 = vunpack.c.h.b16 %v56
  %v124 = vunpack.c.l.b16 %v57
  %v125 = vunpack.c.h.b16 %v57
  %v126 = vunpack.c.l.b16 %v58
  %v127 = vunpack.c.h.b16 %v58
  %v128 = vunpack.c.l.b16 %v59
  %v129 = vunpack.c.h.b16 %v59
  %v130 = vunpack.c.l.b16 %v60
  %v131 = vunpack.c.h.b16 %v60
  %v132 = vunpack.c.l.b16 %v61
  %v133 = vunpack.c.h.b16 %v61
  %v134 = vunpack.c.l.b16 %v62
  %v135 = vunpack.c.h.b16 %v62
  %v136 = vunpack.c.l.b16 %v63
  %v137 = vunpack.c.h.b16 %v63
  %v138 = vunpack.c.l.b16 %v64
  %v139 = vunpack.c.h.b16 %v64
  %v140 = vunpack.c.l.b16 %v65
  %v141 = vunpack.c.h.b16 %v65
  %v142 = vunpack.c.l.b16 %v66
  %v143 = vunpack.c.h.b16 %v66
  %v144 = vunpack.c.l.b16 %v67
  %v145 = vunpack.c.h.b16 %v67
  %v146 = vunpack.c.l.b16 %v68
  %v147 = vunpack.c.h.b16 %v68
  %v148 = vunpack.c.l.b16 %v69
  %v149 = vunpack.c.h.b16 %v69
  %v150 = vpack.c.b16 %v120, %v118
  %v151 = vpack.c.b16 %v121, %v119
  %v152 = vpack.c.b16 %v124, %v122
  %v153 = vpack.c.b16 %v125, %v123
  %v154 = vpack.c.b16 %v128, %v126
  %v155 = vpack.c.b16 %v129, %v127
  %v156 = vpack.c.b16 %v132, %v130
  %v157 = vpack.c.b16 %v133, %v131
  %v158 = vpack.c.b16 %v136, %v134
  %v159 = vpack.c.b16 %v137, %v135
  %v160 = vpack.c.b16 %v140, %v138
  %v161 = vpack.c.b16 %v141, %v139
  %v162 = vpack.c.b16 %v144, %v142
  %v163 = vpack.c.b16 %v145, %v143
  %v164 = vpack.c.b16 %v148, %v146
  %v165 = vpack.c.b16 %v149, %v147
  %v214 = vunpack.c.l.b16 %v70
  %v215 = vunpack.c.l.b16 %v71
  %v216 = vunpack.c.l.b16 %v72
  %v217 = vunpack.c.l.b16 %v73
  %v218 = vunpack.c.l.b16 %v74
  %v219 = vunpack.c.l.b16 %v75
  %v220 = vunpack.c.l.b16 %v76
  %v221 = vunpack.c.l.b16 %v77
  %v222 = vunpack.c.l.b16 %v78
  %v223 = vunpack.c.l.b16 %v79
  %v224 = vunpack.c.l.b16 %v80
  %v225 = vunpack.c.l.b16 %v81
  %v226 = vunpack.c.l.b16 %v82
  %v227 = vunpack.c.l.b16 %v83
  %v228 = vunpack.c.l.b16 %v84
  %v229 = vunpack.c.l.b16 %v85
  %v230 = vunpack.c.l.b16 %v86
  %v231 = vunpack.c.l.b16 %v87
  %v232 = vunpack.c.l.b16 %v88
  %v233 = vunpack.c.l.b16 %v89
  %v234 = vunpack.c.l.b16 %v90
  %v235 = vunpack.c.l.b16 %v91
  %v236 = vunpack.c.l.b16 %v92
  %v237 = vunpack.c.l.b16 %v93
  %v238 = vunpack.c.l.b16 %v94
  %v239 = vunpack.c.l.b16 %v95
  %v240 = vunpack.c.l.b16 %v96
  %v241 = vunpack.c.l.b16 %v97
  %v242 = vunpack.c.l.b16 %v98
  %v243 = vunpack.c.l.b16 %v99
  %v244 = vunpack.c.l.b16 %v100
  %v245 = vunpack.c.l.b16 %v101
  %v246 = vpack.c.b16 %v215, %v214
  %v247 = vpack.c.b16 %v217, %v216
  %v248 = vpack.c.b16 %v219, %v218
  %v249 = vpack.c.b16 %v221, %v220
  %v250 = vpack.c.b16 %v223, %v222
  %v251 = vpack.c.b16 %v225, %v224
  %v252 = vpack.c.b16 %v227, %v226
  %v253 = vpack.c.b16 %v229, %v228
  %v254 = vpack.c.b16 %v231, %v230
  %v255 = vpack.c.b16 %v233, %v232
  %v256 = vpack.c.b16 %v235, %v234
  %v257 = vpack.c.b16 %v237, %v236
  %v258 = vpack.c.b16 %v239, %v238
  %v259 = vpack.c.b16 %v241, %v240
  %v260 = vpack.c.b16 %v243, %v242
  %v261 = vpack.c.b16 %v245, %v244
  %278 = vmatprep.subr.bf16.mxu0 0
  %279 = vmatpush1.bf16.msra.mxu0 %v246
  %280 = vmatprep.subr.bf16.mxu0 0
  %281 = vmatpush1.bf16.msra.mxu0 %v247
  %282 = vmatprep.subr.bf16.mxu0 0
  %283 = vmatpush1.bf16.msra.mxu0 %v248
  %284 = vmatprep.subr.bf16.mxu0 0
  %285 = vmatpush1.bf16.msra.mxu0 %v249
  %286 = vmatprep.subr.bf16.mxu0 0
  %287 = vmatpush1.bf16.msra.mxu0 %v250
  %288 = vmatprep.subr.bf16.mxu0 0
  %289 = vmatpush1.bf16.msra.mxu0 %v251
  %290 = vmatprep.subr.bf16.mxu0 0
  %291 = vmatpush1.bf16.msra.mxu0 %v252
  %292 = vmatprep.subr.bf16.mxu0 0
  %293 = vmatpush1.bf16.msra.mxu0 %v253
  %294 = vmatprep.subr.bf16.mxu0 0
  %295 = vmatpush1.bf16.msra.mxu0 %v254
  %296 = vmatprep.subr.bf16.mxu0 0
  %297 = vmatpush1.bf16.msra.mxu0 %v255
  %298 = vmatprep.subr.bf16.mxu0 0
  %299 = vmatpush1.bf16.msra.mxu0 %v256
  %300 = vmatprep.subr.bf16.mxu0 0
  %301 = vmatpush1.bf16.msra.mxu0 %v257
  %302 = vmatprep.subr.bf16.mxu0 0
  %303 = vmatpush1.bf16.msra.mxu0 %v258
  %304 = vmatprep.subr.bf16.mxu0 0
  %305 = vmatpush1.bf16.msra.mxu0 %v259
  %306 = vmatprep.subr.bf16.mxu0 0
  %307 = vmatpush1.bf16.msra.mxu0 %v260
  %308 = vmatprep.subr.bf16.mxu0 0
  %309 = vmatpush1.bf16.msra.mxu0 %v261
  %310 = vmatprep.mubr.bf16.mxu0 %v151
  %311 = vmatmul.mubr.bf16.gmra.mrb[0].mxu0 %v150
  %v312 = vpop.f32.mrb[0].mxu0
  %v313 = vadd.f32 0.0, %v312
  %v314 = vpop.f32.mrb[0].mxu0
  %v315 = vpop.f32.mrb[0].mxu0
  %v316 = vadd.f32 0.0, %v315
  %v317 = vpop.f32.mrb[0].mxu0
  %318 = vmatprep.mubr.bf16.mxu0 %v153
  %319 = vmatmul.mubr.bf16.gmra.mrb[0].mxu0 %v152
  %v320 = vpop.f32.mrb[0].mxu0
  %v321 = vadd.f32 0.0, %v320
  %v322 = vpop.f32.mrb[0].mxu0
  %v323 = vpop.f32.mrb[0].mxu0
  %v324 = vadd.f32 0.0, %v323
  %v325 = vpop.f32.mrb[0].mxu0
  %326 = vmatprep.mubr.bf16.mxu0 %v155
  %327 = vmatmul.mubr.bf16.gmra.mrb[0].mxu0 %v154
  %v328 = vpop.f32.mrb[0].mxu0
  %v329 = vadd.f32 0.0, %v328
  %v330 = vpop.f32.mrb[0].mxu0
  %v331 = vpop.f32.mrb[0].mxu0
  %v332 = vadd.f32 0.0, %v331
  %v333 = vpop.f32.mrb[0].mxu0
  %334 = vmatprep.mubr.bf16.mxu0 %v157
  %335 = vmatmul.mubr.bf16.gmra.mrb[0].mxu0 %v156
  %v336 = vpop.f32.mrb[0].mxu0
  %v337 = vadd.f32 0.0, %v336
  %v338 = vpop.f32.mrb[0].mxu0
  %v339 = vpop.f32.mrb[0].mxu0
  %v340 = vadd.f32 0.0, %v339
  %v341 = vpop.f32.mrb[0].mxu0
  %342 = vmatprep.mubr.bf16.mxu0 %v159
  %343 = vmatmul.mubr.bf16.gmra.mrb[0].mxu0 %v158
  %v344 = vpop.f32.mrb[0].mxu0
  %v345 = vadd.f32 0.0, %v344
  %v346 = vpop.f32.mrb[0].mxu0
  %v347 = vpop.f32.mrb[0].mxu0
  %v348 = vadd.f32 0.0, %v347
  %v349 = vpop.f32.mrb[0].mxu0
  %350 = vmatprep.mubr.bf16.mxu0 %v161
  %351 = vmatmul.mubr.bf16.gmra.mrb[0].mxu0 %v160
  %v352 = vpop.f32.mrb[0].mxu0
  %v353 = vadd.f32 0.0, %v352
  %v354 = vpop.f32.mrb[0].mxu0
  %v355 = vpop.f32.mrb[0].mxu0
  %v356 = vadd.f32 0.0, %v355
  %v357 = vpop.f32.mrb[0].mxu0
  %358 = vmatprep.mubr.bf16.mxu0 %v163
  %359 = vmatmul.mubr.bf16.gmra.mrb[0].mxu0 %v162
  %v360 = vpop.f32.mrb[0].mxu0
  %v361 = vadd.f32 0.0, %v360
  %v362 = vpop.f32.mrb[0].mxu0
  %v363 = vpop.f32.mrb[0].mxu0
  %v364 = vadd.f32 0.0, %v363
  %v365 = vpop.f32.mrb[0].mxu0
  %366 = vmatprep.mubr.bf16.mxu0 %v165
  %367 = vmatmul.mubr.bf16.gmra.mrb[0].mxu0 %v164
  %v368 = vpop.f32.mrb[0].mxu0
  %v369 = vadd.f32 0.0, %v368
  %v370 = vpop.f32.mrb[0].mxu0
  %v371 = vpop.f32.mrb[0].mxu0
  %v372 = vadd.f32 0.0, %v371
  %v373 = vpop.f32.mrb[0].mxu0
  %374 = vdwg.mxu0
  %v375 = vadd.f32 %v38, %v313
  %v376 = vadd.f32 %v39, %v316
  %v377 = vadd.f32 %v40, %v321
  %v378 = vadd.f32 %v41, %v324
  %v379 = vadd.f32 %v42, %v329
  %v380 = vadd.f32 %v43, %v332
  %v381 = vadd.f32 %v44, %v337
  %v382 = vadd.f32 %v45, %v340
  %v383 = vadd.f32 %v46, %v345
  %v384 = vadd.f32 %v47, %v348
  %v385 = vadd.f32 %v48, %v353
  %v386 = vadd.f32 %v49, %v356
  %v387 = vadd.f32 %v50, %v361
  %v388 = vadd.f32 %v51, %v364
  %v389 = vadd.f32 %v52, %v369
  %v390 = vadd.f32 %v53, %v372
  %391 = vst [vmem:[#allocation2] sm:$0xff] %v375
  %392 = vst [vmem:[#allocation2 + $0x8] sm:$0xff] %v376
  %393 = vst [vmem:[#allocation2 + $0x10] sm:$0xff] %v377
  %394 = vst [vmem:[#allocation2 + $0x18] sm:$0xff] %v378
  %395 = vst [vmem:[#allocation2 + $0x20] sm:$0xff] %v379
  %396 = vst [vmem:[#allocation2 + $0x28] sm:$0xff] %v380
  %397 = vst [vmem:[#allocation2 + $0x30] sm:$0xff] %v381
  %398 = vst [vmem:[#allocation2 + $0x38] sm:$0xff] %v382
  %399 = vst [vmem:[#allocation2 + $0x40] sm:$0xff] %v383
  %400 = vst [vmem:[#allocation2 + $0x48] sm:$0xff] %v384
  %401 = vst [vmem:[#allocation2 + $0x50] sm:$0xff] %v385
  %402 = vst [vmem:[#allocation2 + $0x58] sm:$0xff] %v386
  %403 = vst [vmem:[#allocation2 + $0x60] sm:$0xff] %v387
  %404 = vst [vmem:[#allocation2 + $0x68] sm:$0xff] %v388
  %405 = vst [vmem:[#allocation2 + $0x70] sm:$0xff] %v389
  %406 = vst [vmem:[#allocation2 + $0x78] sm:$0xff] %v390
  // Predicated region
  $region22: #{_lambda_.18} parent=0 // pred_check
    %p407 = pneg %p18
  $region23: #{_lambda_.18} parent=0 // pred_check_branch
    %409 = sbr.rel (%p407) target = $region25
  $region24: #{_lambda_.18} parent=0 // pred_region
    %v410 = vld [vmem:[#allocation2] sm:$0xff]
    %v411 = vld [vmem:[#allocation2 + $0x8] sm:$0xff]
    %v412 = vld [vmem:[#allocation2 + $0x10] sm:$0xff]
    %v413 = vld [vmem:[#allocation2 + $0x18] sm:$0xff]
    %v414 = vld [vmem:[#allocation2 + $0x20] sm:$0xff]
    %v415 = vld [vmem:[#allocation2 + $0x28] sm:$0xff]
    %v416 = vld [vmem:[#allocation2 + $0x30] sm:$0xff]
    %v417 = vld [vmem:[#allocation2 + $0x38] sm:$0xff]
    %v418 = vld [vmem:[#allocation2 + $0x40] sm:$0xff]
    %v419 = vld [vmem:[#allocation2 + $0x48] sm:$0xff]
    %v420 = vld [vmem:[#allocation2 + $0x50] sm:$0xff]
    %v421 = vld [vmem:[#allocation2 + $0x58] sm:$0xff]
    %v422 = vld [vmem:[#allocation2 + $0x60] sm:$0xff]
    %v423 = vld [vmem:[#allocation2 + $0x68] sm:$0xff]
    %v424 = vld [vmem:[#allocation2 + $0x70] sm:$0xff]
    %v425 = vld [vmem:[#allocation2 + $0x78] sm:$0xff]
    %v426 = vld [vmem:[%s2] sm:$0x1]
    %v428 = vlaneseq
    %v429 = vshrl.u32 %v428, 7
    %v430 = vsub.s32 0, %v429
    %v431 = vrot.slane %v426, %v430
    %v433 = vmul.f32 %v410, %v431
    %v434 = vmul.f32 %v411, %v431
    %v435 = vmul.f32 %v412, %v431
    %v436 = vmul.f32 %v413, %v431
    %v437 = vmul.f32 %v414, %v431
    %v438 = vmul.f32 %v415, %v431
    %v439 = vmul.f32 %v416, %v431
    %v440 = vmul.f32 %v417, %v431
    %v441 = vmul.f32 %v418, %v431
    %v442 = vmul.f32 %v419, %v431
    %v443 = vmul.f32 %v420, %v431
    %v444 = vmul.f32 %v421, %v431
    %v445 = vmul.f32 %v422, %v431
    %v446 = vmul.f32 %v423, %v431
    %v447 = vmul.f32 %v424, %v431
    %v448 = vmul.f32 %v425, %v431
    %v449 = vld [vmem:[%s3] sm:$0x1]
    %v451 = vlaneseq
    %v452 = vshrl.u32 %v451, 7
    %v453 = vsub.s32 0, %v452
    %v454 = vrot.slane %v449, %v453
    %v456 = vadd.f32 %v433, %v454
    %v457 = vadd.f32 %v434, %v454
    %v458 = vadd.f32 %v435, %v454
    %v459 = vadd.f32 %v436, %v454
    %v460 = vadd.f32 %v437, %v454
    %v461 = vadd.f32 %v438, %v454
    %v462 = vadd.f32 %v439, %v454
    %v463 = vadd.f32 %v440, %v454
    %v464 = vadd.f32 %v441, %v454
    %v465 = vadd.f32 %v442, %v454
    %v466 = vadd.f32 %v443, %v454
    %v467 = vadd.f32 %v444, %v454
    %v468 = vadd.f32 %v445, %v454
    %v469 = vadd.f32 %v446, %v454
    %v470 = vadd.f32 %v447, %v454
    %v471 = vadd.f32 %v448, %v454
    %vm472 = vcmp.gt.f32.partialorder %v456, 0.0
    %vm473 = vcmp.gt.f32.partialorder %v457, 0.0
    %vm474 = vcmp.gt.f32.partialorder %v458, 0.0
    %vm475 = vcmp.gt.f32.partialorder %v459, 0.0
    %vm476 = vcmp.gt.f32.partialorder %v460, 0.0
    %vm477 = vcmp.gt.f32.partialorder %v461, 0.0
    %vm478 = vcmp.gt.f32.partialorder %v462, 0.0
    %vm479 = vcmp.gt.f32.partialorder %v463, 0.0
    %vm480 = vcmp.gt.f32.partialorder %v464, 0.0
    %vm481 = vcmp.gt.f32.partialorder %v465, 0.0
    %vm482 = vcmp.gt.f32.partialorder %v466, 0.0
    %vm483 = vcmp.gt.f32.partialorder %v467, 0.0
    %vm484 = vcmp.gt.f32.partialorder %v468, 0.0
    %vm485 = vcmp.gt.f32.partialorder %v469, 0.0
    %vm486 = vcmp.gt.f32.partialorder %v470, 0.0
    %vm487 = vcmp.gt.f32.partialorder %v471, 0.0
    %v488 = vmul.f32 %v456, 0.1
    %v489 = vmul.f32 %v457, 0.1
    %v490 = vmul.f32 %v458, 0.1
    %v491 = vmul.f32 %v459, 0.1
    %v492 = vmul.f32 %v460, 0.1
    %v493 = vmul.f32 %v461, 0.1
    %v494 = vmul.f32 %v462, 0.1
    %v495 = vmul.f32 %v463, 0.1
    %v496 = vmul.f32 %v464, 0.1
    %v497 = vmul.f32 %v465, 0.1
    %v498 = vmul.f32 %v466, 0.1
    %v499 = vmul.f32 %v467, 0.1
    %v500 = vmul.f32 %v468, 0.1
    %v501 = vmul.f32 %v469, 0.1
    %v502 = vmul.f32 %v470, 0.1
    %v503 = vmul.f32 %v471, 0.1
    %v504 = vsel %vm472, %v456, %v488
    %v505 = vsel %vm473, %v457, %v489
    %v506 = vsel %vm474, %v458, %v490
    %v507 = vsel %vm475, %v459, %v491
    %v508 = vsel %vm476, %v460, %v492
    %v509 = vsel %vm477, %v461, %v493
    %v510 = vsel %vm478, %v462, %v494
    %v511 = vsel %vm479, %v463, %v495
    %v512 = vsel %vm480, %v464, %v496
    %v513 = vsel %vm481, %v465, %v497
    %v514 = vsel %vm482, %v466, %v498
    %v515 = vsel %vm483, %v467, %v499
    %v516 = vsel %vm484, %v468, %v500
    %v517 = vsel %vm485, %v469, %v501
    %v518 = vsel %vm486, %v470, %v502
    %v519 = vsel %vm487, %v471, %v503
    %520 = vst [vmem:[%s4] sm:$0xff] %v504
    %521 = vst [vmem:[%s4 + $0x8] sm:$0xff] %v505
    %522 = vst [vmem:[%s4 + $0x10] sm:$0xff] %v506
    %523 = vst [vmem:[%s4 + $0x18] sm:$0xff] %v507
    %524 = vst [vmem:[%s4 + $0x20] sm:$0xff] %v508
    %525 = vst [vmem:[%s4 + $0x28] sm:$0xff] %v509
    %526 = vst [vmem:[%s4 + $0x30] sm:$0xff] %v510
    %527 = vst [vmem:[%s4 + $0x38] sm:$0xff] %v511
    %528 = vst [vmem:[%s4 + $0x40] sm:$0xff] %v512
    %529 = vst [vmem:[%s4 + $0x48] sm:$0xff] %v513
    %530 = vst [vmem:[%s4 + $0x50] sm:$0xff] %v514
    %531 = vst [vmem:[%s4 + $0x58] sm:$0xff] %v515
    %532 = vst [vmem:[%s4 + $0x60] sm:$0xff] %v516
    %533 = vst [vmem:[%s4 + $0x68] sm:$0xff] %v517
    %534 = vst [vmem:[%s4 + $0x70] sm:$0xff] %v518
    %535 = vst [vmem:[%s4 + $0x78] sm:$0xff] %v519
  $region25: #{_lambda_.18} parent=0 // pred_fallthru
    _
  // Predicated region
  $region26: #{_lambda_.18} parent=0 // pred_check
    _
  $region27: #{_lambda_.18} parent=0 // pred_check_branch
    %537 = sbr.rel (0) target = $region29
  $region28: #{_lambda_.18} parent=0 // pred_region
    _
  $region29: #{_lambda_.18} parent=0 // pred_fallthru
    _
  // Predicated region
  $region30: #{_lambda_.18} parent=0 // pred_check
    _
  $region31: #{_lambda_.18} parent=0 // pred_check_branch
    %539 = sbr.rel (0) target = $region33
  $region32: #{_lambda_.18} parent=0 // pred_region
    _
  $region33: #{_lambda_.18} parent=0 // pred_fallthru
    _

// kernel: _lambda_.19
$region0: #{_lambda_.19}
  #allocation0 [shape = 'u32[]', space=smem, size = 0x4, offset = 0x4, fixed_abs, tag = 'smem constant byte address 0x4 - core index']
  #allocation1 [shape = 'u32[144,128]{1,0:T(1,128)}', space=vmem, size = 0x12000, scoped, tag = 'internal scratch']
  #allocation2 [shape = 'f32[128,128]{1,0:T(8,128)}', space=vmem, size = 0x10000, scoped, tag = 'scratch operand']
  %s0 = inlined_call_operand.vmem [shape: bf16[128,128], index: 0, kind: input, shape index: {}]
  %s1 = inlined_call_operand.vmem [shape: bf16[128,128], index: 1, kind: input, shape index: {}]
  %s2 = inlined_call_operand.vmem [shape: f32[1,128], index: 2, kind: input, shape index: {}]
  %s3 = inlined_call_operand.vmem [shape: f32[1,128], index: 3, kind: input, shape index: {}]
  %s4 = inlined_call_operand.vmem [shape: f32[128,128], index: 4, kind: input, shape index: {}]
  %s5 = inlined_call_operand.vmem [shape: f32[1,128], index: 5, kind: input, shape index: {}]
  %s6 = inlined_call_operand.vmem [shape: f32[1,128], index: 6, kind: input, shape index: {}]
  %s7 = inlined_call_operand.vmem [shape: f32[128,128], index: 7, kind: output, shape index: {}]
  %s8 = sld [smem:[#allocation0]]
  $region46: #{_lambda_.19} parent=0
    _
  %s10 = ssub.s32 1, %s8
  %s11 = scalar_select 0, %s10, %s8
  // Predicated region
  $region2: #{_lambda_.19} parent=0 // pred_check
    _
  $region3: #{_lambda_.19} parent=0 // pred_check_branch
    %13 = sbr.rel (0) target = $region5
  $region4: #{_lambda_.19} parent=0 // pred_region
    _
  $region5: #{_lambda_.19} parent=0 // pred_fallthru
    _
  // Predicated region
  $region6: #{_lambda_.19} parent=0 // pred_check
    _
  $region7: #{_lambda_.19} parent=0 // pred_check_branch
    %15 = sbr.rel (0) target = $region9
  $region8: #{_lambda_.19} parent=0 // pred_region
    _
  $region9: #{_lambda_.19} parent=0 // pred_fallthru
    _
  // Predicated region
  $region10: #{_lambda_.19} parent=0 // pred_check
    _
  $region11: #{_lambda_.19} parent=0 // pred_check_branch
    %17 = sbr.rel (0) target = $region13
  $region12: #{_lambda_.19} parent=0 // pred_region
    _
  $region13: #{_lambda_.19} parent=0 // pred_fallthru
    _
  // Predicated region
  $region14: #{_lambda_.19} parent=0 // pred_check
    _
  $region15: #{_lambda_.19} parent=0 // pred_check_branch
    %19 = sbr.rel (0) target = $region17
  $region16: #{_lambda_.19} parent=0 // pred_region
    _
  $region17: #{_lambda_.19} parent=0 // pred_fallthru
    _
  // Predicated region
  $region18: #{_lambda_.19} parent=0 // pred_check
    _
  $region19: #{_lambda_.19} parent=0 // pred_check_branch
    %21 = sbr.rel (0) target = $region21
  $region20: #{_lambda_.19} parent=0 // pred_region
    _
  $region21: #{_lambda_.19} parent=0 // pred_fallthru
    _
  // Predicated region
  $region22: #{_lambda_.19} parent=0 // pred_check
    _
  $region23: #{_lambda_.19} parent=0 // pred_check_branch
    %23 = sbr.rel (0) target = $region25
  $region24: #{_lambda_.19} parent=0 // pred_region
    _
  $region25: #{_lambda_.19} parent=0 // pred_fallthru
    _
  // Predicated region
  $region26: #{_lambda_.19} parent=0 // pred_check
    _
  $region27: #{_lambda_.19} parent=0 // pred_check_branch
    %25 = sbr.rel (0) target = $region29
  $region28: #{_lambda_.19} parent=0 // pred_region
    _
  $region29: #{_lambda_.19} parent=0 // pred_fallthru
    _
  %p27 = scmp.eq.s32.totalorder 0, 0
  // Predicated region
  $region30: #{_lambda_.19} parent=0 // pred_check
    %p28 = pneg %p27
  $region31: #{_lambda_.19} parent=0 // pred_check_branch
    %30 = sbr.rel (%p28) target = $region33
  $region32: #{_lambda_.19} parent=0 // pred_region
    %31 = vst [vmem:[#allocation2] sm:$0xff] 0.0
    %32 = vst [vmem:[#allocation2 + $0x8] sm:$0xff] 0.0
    %33 = vst [vmem:[#allocation2 + $0x10] sm:$0xff] 0.0
    %34 = vst [vmem:[#allocation2 + $0x18] sm:$0xff] 0.0
    %35 = vst [vmem:[#allocation2 + $0x20] sm:$0xff] 0.0
    %36 = vst [vmem:[#allocation2 + $0x28] sm:$0xff] 0.0
    %37 = vst [vmem:[#allocation2 + $0x30] sm:$0xff] 0.0
    %38 = vst [vmem:[#allocation2 + $0x38] sm:$0xff] 0.0
    %39 = vst [vmem:[#allocation2 + $0x40] sm:$0xff] 0.0
    %40 = vst [vmem:[#allocation2 + $0x48] sm:$0xff] 0.0
    %41 = vst [vmem:[#allocation2 + $0x50] sm:$0xff] 0.0
    %42 = vst [vmem:[#allocation2 + $0x58] sm:$0xff] 0.0
    %43 = vst [vmem:[#allocation2 + $0x60] sm:$0xff] 0.0
    %44 = vst [vmem:[#allocation2 + $0x68] sm:$0xff] 0.0
    %45 = vst [vmem:[#allocation2 + $0x70] sm:$0xff] 0.0
    %46 = vst [vmem:[#allocation2 + $0x78] sm:$0xff] 0.0
  $region33: #{_lambda_.19} parent=0 // pred_fallthru
    _
  %v47 = vld [vmem:[#allocation2] sm:$0xff]
  %v48 = vld [vmem:[#allocation2 + $0x8] sm:$0xff]
  %v49 = vld [vmem:[#allocation2 + $0x10] sm:$0xff]
  %v50 = vld [vmem:[#allocation2 + $0x18] sm:$0xff]
  %v51 = vld [vmem:[#allocation2 + $0x20] sm:$0xff]
  %v52 = vld [vmem:[#allocation2 + $0x28] sm:$0xff]
  %v53 = vld [vmem:[#allocation2 + $0x30] sm:$0xff]
  %v54 = vld [vmem:[#allocation2 + $0x38] sm:$0xff]
  %v55 = vld [vmem:[#allocation2 + $0x40] sm:$0xff]
  %v56 = vld [vmem:[#allocation2 + $0x48] sm:$0xff]
  %v57 = vld [vmem:[#allocation2 + $0x50] sm:$0xff]
  %v58 = vld [vmem:[#allocation2 + $0x58] sm:$0xff]
  %v59 = vld [vmem:[#allocation2 + $0x60] sm:$0xff]
  %v60 = vld [vmem:[#allocation2 + $0x68] sm:$0xff]
  %v61 = vld [vmem:[#allocation2 + $0x70] sm:$0xff]
  %v62 = vld [vmem:[#allocation2 + $0x78] sm:$0xff]
  %v63 = vld [vmem:[%s0] sm:$0xf]
  %v64 = vld [vmem:[%s0 + $0x4] sm:$0xf]
  %v65 = vld [vmem:[%s0 + $0x8] sm:$0xf]
  %v66 = vld [vmem:[%s0 + $0xc] sm:$0xf]
  %v67 = vld [vmem:[%s0 + $0x10] sm:$0xf]
  %v68 = vld [vmem:[%s0 + $0x14] sm:$0xf]
  %v69 = vld [vmem:[%s0 + $0x18] sm:$0xf]
  %v70 = vld [vmem:[%s0 + $0x1c] sm:$0xf]
  %v71 = vld [vmem:[%s0 + $0x20] sm:$0xf]
  %v72 = vld [vmem:[%s0 + $0x24] sm:$0xf]
  %v73 = vld [vmem:[%s0 + $0x28] sm:$0xf]
  %v74 = vld [vmem:[%s0 + $0x2c] sm:$0xf]
  %v75 = vld [vmem:[%s0 + $0x30] sm:$0xf]
  %v76 = vld [vmem:[%s0 + $0x34] sm:$0xf]
  %v77 = vld [vmem:[%s0 + $0x38] sm:$0xf]
  %v78 = vld [vmem:[%s0 + $0x3c] sm:$0xf]
  %v79 = vld [vmem:[%s1] sm:$0xf]
  %v80 = vld [vmem:[%s1 + $0x4] sm:$0xf]
  %v81 = vld [vmem:[%s1 + $0x8] sm:$0xf]
  %v82 = vld [vmem:[%s1 + $0xc] sm:$0xf]
  %v83 = vld [vmem:[%s1 + $0x10] sm:$0xf]
  %v84 = vld [vmem:[%s1 + $0x14] sm:$0xf]
  %v85 = vld [vmem:[%s1 + $0x18] sm:$0xf]
  %v86 = vld [vmem:[%s1 + $0x1c] sm:$0xf]
  %v87 = vld [vmem:[%s1 + $0x20] sm:$0xf]
  %v88 = vld [vmem:[%s1 + $0x24] sm:$0xf]
  %v89 = vld [vmem:[%s1 + $0x28] sm:$0xf]
  %v90 = vld [vmem:[%s1 + $0x2c] sm:$0xf]
  %v91 = vld [vmem:[%s1 + $0x30] sm:$0xf]
  %v92 = vld [vmem:[%s1 + $0x34] sm:$0xf]
  %v93 = vld [vmem:[%s1 + $0x38] sm:$0xf]
  %v94 = vld [vmem:[%s1 + $0x3c] sm:$0xf]
  %v111 = vunpack.c.l.b16 %v63
  %v112 = vunpack.c.l.b16 %v64
  %v113 = vunpack.c.l.b16 %v65
  %v114 = vunpack.c.l.b16 %v66
  %v115 = vunpack.c.l.b16 %v67
  %v116 = vunpack.c.l.b16 %v68
  %v117 = vunpack.c.l.b16 %v69
  %v118 = vunpack.c.l.b16 %v70
  %v119 = vunpack.c.l.b16 %v71
  %v120 = vunpack.c.l.b16 %v72
  %v121 = vunpack.c.l.b16 %v73
  %v122 = vunpack.c.l.b16 %v74
  %v123 = vunpack.c.l.b16 %v75
  %v124 = vunpack.c.l.b16 %v76
  %v125 = vunpack.c.l.b16 %v77
  %v126 = vunpack.c.l.b16 %v78
  %v127 = vpack.c.b16 %v112, %v111
  %v128 = vpack.c.b16 %v114, %v113
  %v129 = vpack.c.b16 %v116, %v115
  %v130 = vpack.c.b16 %v118, %v117
  %v131 = vpack.c.b16 %v120, %v119
  %v132 = vpack.c.b16 %v122, %v121
  %v133 = vpack.c.b16 %v124, %v123
  %v134 = vpack.c.b16 %v126, %v125
  %v159 = vunpack.c.l.b16 %v79
  %v160 = vunpack.c.l.b16 %v80
  %v161 = vunpack.c.l.b16 %v81
  %v162 = vunpack.c.l.b16 %v82
  %v163 = vunpack.c.l.b16 %v83
  %v164 = vunpack.c.l.b16 %v84
  %v165 = vunpack.c.l.b16 %v85
  %v166 = vunpack.c.l.b16 %v86
  %v167 = vunpack.c.l.b16 %v87
  %v168 = vunpack.c.l.b16 %v88
  %v169 = vunpack.c.l.b16 %v89
  %v170 = vunpack.c.l.b16 %v90
  %v171 = vunpack.c.l.b16 %v91
  %v172 = vunpack.c.l.b16 %v92
  %v173 = vunpack.c.l.b16 %v93
  %v174 = vunpack.c.l.b16 %v94
  %v175 = vpack.c.b16 %v160, %v159
  %v176 = vpack.c.b16 %v162, %v161
  %v177 = vpack.c.b16 %v164, %v163
  %v178 = vpack.c.b16 %v166, %v165
  %v179 = vpack.c.b16 %v168, %v167
  %v180 = vpack.c.b16 %v170, %v169
  %v181 = vpack.c.b16 %v172, %v171
  %v182 = vpack.c.b16 %v174, %v173
  %191 = vmatprep.subr.bf16.mxu0 0
  %192 = vmatpush1.bf16.msra.mxu0 %v175
  %193 = vmatprep.subr.bf16.mxu0 0
  %194 = vmatpush1.bf16.msra.mxu0 %v176
  %195 = vmatprep.subr.bf16.mxu0 0
  %196 = vmatpush1.bf16.msra.mxu0 %v177
  %197 = vmatprep.subr.bf16.mxu0 0
  %198 = vmatpush1.bf16.msra.mxu0 %v178
  %199 = vmatprep.subr.bf16.mxu0 0
  %200 = vmatpush1.bf16.msra.mxu0 %v179
  %201 = vmatprep.subr.bf16.mxu0 0
  %202 = vmatpush1.bf16.msra.mxu0 %v180
  %203 = vmatprep.subr.bf16.mxu0 0
  %204 = vmatpush1.bf16.msra.mxu0 %v181
  %205 = vmatprep.subr.bf16.mxu0 0
  %206 = vmatpush1.bf16.msra.mxu0 %v182
  %207 = vmatprep.subr.bf16.mxu0 0
  %208 = vmatpush1.bf16.msra.mxu0 0
  %209 = vmatprep.subr.bf16.mxu0 0
  %210 = vmatpush1.bf16.msra.mxu0 0
  %211 = vmatprep.subr.bf16.mxu0 0
  %212 = vmatpush1.bf16.msra.mxu0 0
  %213 = vmatprep.subr.bf16.mxu0 0
  %214 = vmatpush1.bf16.msra.mxu0 0
  %215 = vmatprep.subr.bf16.mxu0 0
  %216 = vmatpush1.bf16.msra.mxu0 0
  %217 = vmatprep.subr.bf16.mxu0 0
  %218 = vmatpush1.bf16.msra.mxu0 0
  %219 = vmatprep.subr.bf16.mxu0 0
  %220 = vmatpush1.bf16.msra.mxu0 0
  %221 = vmatprep.subr.bf16.mxu0 0
  %222 = vmatpush1.bf16.msra.mxu0 0
  %223 = vmatprep.mubr.bf16.mxu0 0
  %224 = vmatmul.mubr.bf16.gmra.mrb[0].mxu0 %v127
  %v225 = vpop.f32.mrb[0].mxu0
  %v226 = vadd.f32 0.0, %v225
  %v227 = vpop.f32.mrb[0].mxu0
  %v228 = vpop.f32.mrb[0].mxu0
  %v229 = vadd.f32 0.0, %v228
  %v230 = vpop.f32.mrb[0].mxu0
  %231 = vmatprep.mubr.bf16.mxu0 0
  %232 = vmatmul.mubr.bf16.gmra.mrb[0].mxu0 %v128
  %v233 = vpop.f32.mrb[0].mxu0
  %v234 = vadd.f32 0.0, %v233
  %v235 = vpop.f32.mrb[0].mxu0
  %v236 = vpop.f32.mrb[0].mxu0
  %v237 = vadd.f32 0.0, %v236
  %v238 = vpop.f32.mrb[0].mxu0
  %239 = vmatprep.mubr.bf16.mxu0 0
  %240 = vmatmul.mubr.bf16.gmra.mrb[0].mxu0 %v129
  %v241 = vpop.f32.mrb[0].mxu0
  %v242 = vadd.f32 0.0, %v241
  %v243 = vpop.f32.mrb[0].mxu0
  %v244 = vpop.f32.mrb[0].mxu0
  %v245 = vadd.f32 0.0, %v244
  %v246 = vpop.f32.mrb[0].mxu0
  %247 = vmatprep.mubr.bf16.mxu0 0
  %248 = vmatmul.mubr.bf16.gmra.mrb[0].mxu0 %v130
  %v249 = vpop.f32.mrb[0].mxu0
  %v250 = vadd.f32 0.0, %v249
  %v251 = vpop.f32.mrb[0].mxu0
  %v252 = vpop.f32.mrb[0].mxu0
  %v253 = vadd.f32 0.0, %v252
  %v254 = vpop.f32.mrb[0].mxu0
  %255 = vmatprep.mubr.bf16.mxu0 0
  %256 = vmatmul.mubr.bf16.gmra.mrb[0].mxu0 %v131
  %v257 = vpop.f32.mrb[0].mxu0
  %v258 = vadd.f32 0.0, %v257
  %v259 = vpop.f32.mrb[0].mxu0
  %v260 = vpop.f32.mrb[0].mxu0
  %v261 = vadd.f32 0.0, %v260
  %v262 = vpop.f32.mrb[0].mxu0
  %263 = vmatprep.mubr.bf16.mxu0 0
  %264 = vmatmul.mubr.bf16.gmra.mrb[0].mxu0 %v132
  %v265 = vpop.f32.mrb[0].mxu0
  %v266 = vadd.f32 0.0, %v265
  %v267 = vpop.f32.mrb[0].mxu0
  %v268 = vpop.f32.mrb[0].mxu0
  %v269 = vadd.f32 0.0, %v268
  %v270 = vpop.f32.mrb[0].mxu0
  %271 = vmatprep.mubr.bf16.mxu0 0
  %272 = vmatmul.mubr.bf16.gmra.mrb[0].mxu0 %v133
  %v273 = vpop.f32.mrb[0].mxu0
  %v274 = vadd.f32 0.0, %v273
  %v275 = vpop.f32.mrb[0].mxu0
  %v276 = vpop.f32.mrb[0].mxu0
  %v277 = vadd.f32 0.0, %v276
  %v278 = vpop.f32.mrb[0].mxu0
  %279 = vmatprep.mubr.bf16.mxu0 0
  %280 = vmatmul.mubr.bf16.gmra.mrb[0].mxu0 %v134
  %v281 = vpop.f32.mrb[0].mxu0
  %v282 = vadd.f32 0.0, %v281
  %v283 = vpop.f32.mrb[0].mxu0
  %v284 = vpop.f32.mrb[0].mxu0
  %v285 = vadd.f32 0.0, %v284
  %v286 = vpop.f32.mrb[0].mxu0
  %287 = vdwg.mxu0
  %v288 = vadd.f32 %v47, %v226
  %v289 = vadd.f32 %v48, %v229
  %v290 = vadd.f32 %v49, %v234
  %v291 = vadd.f32 %v50, %v237
  %v292 = vadd.f32 %v51, %v242
  %v293 = vadd.f32 %v52, %v245
  %v294 = vadd.f32 %v53, %v250
  %v295 = vadd.f32 %v54, %v253
  %v296 = vadd.f32 %v55, %v258
  %v297 = vadd.f32 %v56, %v261
  %v298 = vadd.f32 %v57, %v266
  %v299 = vadd.f32 %v58, %v269
  %v300 = vadd.f32 %v59, %v274
  %v301 = vadd.f32 %v60, %v277
  %v302 = vadd.f32 %v61, %v282
  %v303 = vadd.f32 %v62, %v285
  %304 = vst [vmem:[#allocation2] sm:$0xff] %v288
  %305 = vst [vmem:[#allocation2 + $0x8] sm:$0xff] %v289
  %306 = vst [vmem:[#allocation2 + $0x10] sm:$0xff] %v290
  %307 = vst [vmem:[#allocation2 + $0x18] sm:$0xff] %v291
  %308 = vst [vmem:[#allocation2 + $0x20] sm:$0xff] %v292
  %309 = vst [vmem:[#allocation2 + $0x28] sm:$0xff] %v293
  %310 = vst [vmem:[#allocation2 + $0x30] sm:$0xff] %v294
  %311 = vst [vmem:[#allocation2 + $0x38] sm:$0xff] %v295
  %312 = vst [vmem:[#allocation2 + $0x40] sm:$0xff] %v296
  %313 = vst [vmem:[#allocation2 + $0x48] sm:$0xff] %v297
  %314 = vst [vmem:[#allocation2 + $0x50] sm:$0xff] %v298
  %315 = vst [vmem:[#allocation2 + $0x58] sm:$0xff] %v299
  %316 = vst [vmem:[#allocation2 + $0x60] sm:$0xff] %v300
  %317 = vst [vmem:[#allocation2 + $0x68] sm:$0xff] %v301
  %318 = vst [vmem:[#allocation2 + $0x70] sm:$0xff] %v302
  %319 = vst [vmem:[#allocation2 + $0x78] sm:$0xff] %v303
  // Predicated region
  $region34: #{_lambda_.19} parent=0 // pred_check
    %p320 = pneg %p27
  $region35: #{_lambda_.19} parent=0 // pred_check_branch
    %322 = sbr.rel (%p320) target = $region37
  $region36: #{_lambda_.19} parent=0 // pred_region
    %v323 = vld [vmem:[#allocation2] sm:$0xff]
    %v324 = vld [vmem:[#allocation2 + $0x8] sm:$0xff]
    %v325 = vld [vmem:[#allocation2 + $0x10] sm:$0xff]
    %v326 = vld [vmem:[#allocation2 + $0x18] sm:$0xff]
    %v327 = vld [vmem:[#allocation2 + $0x20] sm:$0xff]
    %v328 = vld [vmem:[#allocation2 + $0x28] sm:$0xff]
    %v329 = vld [vmem:[#allocation2 + $0x30] sm:$0xff]
    %v330 = vld [vmem:[#allocation2 + $0x38] sm:$0xff]
    %v331 = vld [vmem:[#allocation2 + $0x40] sm:$0xff]
    %v332 = vld [vmem:[#allocation2 + $0x48] sm:$0xff]
    %v333 = vld [vmem:[#allocation2 + $0x50] sm:$0xff]
    %v334 = vld [vmem:[#allocation2 + $0x58] sm:$0xff]
    %v335 = vld [vmem:[#allocation2 + $0x60] sm:$0xff]
    %v336 = vld [vmem:[#allocation2 + $0x68] sm:$0xff]
    %v337 = vld [vmem:[#allocation2 + $0x70] sm:$0xff]
    %v338 = vld [vmem:[#allocation2 + $0x78] sm:$0xff]
    %v339 = vld [vmem:[%s2] sm:$0x1]
    %v341 = vlaneseq
    %v342 = vshrl.u32 %v341, 7
    %v343 = vsub.s32 0, %v342
    %v344 = vrot.slane %v339, %v343
    %v346 = vmul.f32 %v323, %v344
    %v347 = vmul.f32 %v324, %v344
    %v348 = vmul.f32 %v325, %v344
    %v349 = vmul.f32 %v326, %v344
    %v350 = vmul.f32 %v327, %v344
    %v351 = vmul.f32 %v328, %v344
    %v352 = vmul.f32 %v329, %v344
    %v353 = vmul.f32 %v330, %v344
    %v354 = vmul.f32 %v331, %v344
    %v355 = vmul.f32 %v332, %v344
    %v356 = vmul.f32 %v333, %v344
    %v357 = vmul.f32 %v334, %v344
    %v358 = vmul.f32 %v335, %v344
    %v359 = vmul.f32 %v336, %v344
    %v360 = vmul.f32 %v337, %v344
    %v361 = vmul.f32 %v338, %v344
    %v362 = vld [vmem:[%s3] sm:$0x1]
    %v364 = vlaneseq
    %v365 = vshrl.u32 %v364, 7
    %v366 = vsub.s32 0, %v365
    %v367 = vrot.slane %v362, %v366
    %v369 = vadd.f32 %v346, %v367
    %v370 = vadd.f32 %v347, %v367
    %v371 = vadd.f32 %v348, %v367
    %v372 = vadd.f32 %v349, %v367
    %v373 = vadd.f32 %v350, %v367
    %v374 = vadd.f32 %v351, %v367
    %v375 = vadd.f32 %v352, %v367
    %v376 = vadd.f32 %v353, %v367
    %v377 = vadd.f32 %v354, %v367
    %v378 = vadd.f32 %v355, %v367
    %v379 = vadd.f32 %v356, %v367
    %v380 = vadd.f32 %v357, %v367
    %v381 = vadd.f32 %v358, %v367
    %v382 = vadd.f32 %v359, %v367
    %v383 = vadd.f32 %v360, %v367
    %v384 = vadd.f32 %v361, %v367
    %v385 = vld [vmem:[%s6] sm:$0x1]
    %v386 = vxor.u32 %v369, 2147483648
    %v387 = vxor.u32 %v370, 2147483648
    %v388 = vxor.u32 %v371, 2147483648
    %v389 = vxor.u32 %v372, 2147483648
    %v390 = vxor.u32 %v373, 2147483648
    %v391 = vxor.u32 %v374, 2147483648
    %v392 = vxor.u32 %v375, 2147483648
    %v393 = vxor.u32 %v376, 2147483648
    %v394 = vxor.u32 %v377, 2147483648
    %v395 = vxor.u32 %v378, 2147483648
    %v396 = vxor.u32 %v379, 2147483648
    %v397 = vxor.u32 %v380, 2147483648
    %v398 = vxor.u32 %v381, 2147483648
    %v399 = vxor.u32 %v382, 2147483648
    %v400 = vxor.u32 %v383, 2147483648
    %v401 = vxor.u32 %v384, 2147483648
    %v402 = vmul.f32 %v386, 1.442695
    %v403 = vpow.pop %v402
    %v404 = vmul.f32 %v387, 1.442695
    %v405 = vpow.pop %v404
    %v406 = vmul.f32 %v388, 1.442695
    %v407 = vpow.pop %v406
    %v408 = vmul.f32 %v389, 1.442695
    %v409 = vpow.pop %v408
    %v410 = vmul.f32 %v390, 1.442695
    %v411 = vpow.pop %v410
    %v412 = vmul.f32 %v391, 1.442695
    %v413 = vpow.pop %v412
    %v414 = vmul.f32 %v392, 1.442695
    %v415 = vpow.pop %v414
    %v416 = vmul.f32 %v393, 1.442695
    %v417 = vpow.pop %v416
    %v418 = vmul.f32 %v394, 1.442695
    %v419 = vpow.pop %v418
    %v420 = vmul.f32 %v395, 1.442695
    %v421 = vpow.pop %v420
    %v422 = vmul.f32 %v396, 1.442695
    %v423 = vpow.pop %v422
    %v424 = vmul.f32 %v397, 1.442695
    %v425 = vpow.pop %v424
    %v426 = vmul.f32 %v398, 1.442695
    %v427 = vpow.pop %v426
    %v428 = vmul.f32 %v399, 1.442695
    %v429 = vpow.pop %v428
    %v430 = vmul.f32 %v400, 1.442695
    %v431 = vpow.pop %v430
    %v432 = vmul.f32 %v401, 1.442695
    %v433 = vpow.pop %v432
    %v434 = vadd.f32 %v403, 1.0
    %v435 = vadd.f32 %v405, 1.0
    %v436 = vadd.f32 %v407, 1.0
    %v437 = vadd.f32 %v409, 1.0
    %v438 = vadd.f32 %v411, 1.0
    %v439 = vadd.f32 %v413, 1.0
    %v440 = vadd.f32 %v415, 1.0
    %v441 = vadd.f32 %v417, 1.0
    %v442 = vadd.f32 %v419, 1.0
    %v443 = vadd.f32 %v421, 1.0
    %v444 = vadd.f32 %v423, 1.0
    %v445 = vadd.f32 %v425, 1.0
    %v446 = vadd.f32 %v427, 1.0
    %v447 = vadd.f32 %v429, 1.0
    %v448 = vadd.f32 %v431, 1.0
    %v449 = vadd.f32 %v433, 1.0
    %v450 = vrcp.pop %v434
    %v451 = vmul.f32 1.0, %v450
    %v452 = vrcp.pop %v435
    %v453 = vmul.f32 1.0, %v452
    %v454 = vrcp.pop %v436
    %v455 = vmul.f32 1.0, %v454
    %v456 = vrcp.pop %v437
    %v457 = vmul.f32 1.0, %v456
    %v458 = vrcp.pop %v438
    %v459 = vmul.f32 1.0, %v458
    %v460 = vrcp.pop %v439
    %v461 = vmul.f32 1.0, %v460
    %v462 = vrcp.pop %v440
    %v463 = vmul.f32 1.0, %v462
    %v464 = vrcp.pop %v441
    %v465 = vmul.f32 1.0, %v464
    %v466 = vrcp.pop %v442
    %v467 = vmul.f32 1.0, %v466
    %v468 = vrcp.pop %v443
    %v469 = vmul.f32 1.0, %v468
    %v470 = vrcp.pop %v444
    %v471 = vmul.f32 1.0, %v470
    %v472 = vrcp.pop %v445
    %v473 = vmul.f32 1.0, %v472
    %v474 = vrcp.pop %v446
    %v475 = vmul.f32 1.0, %v474
    %v476 = vrcp.pop %v447
    %v477 = vmul.f32 1.0, %v476
    %v478 = vrcp.pop %v448
    %v479 = vmul.f32 1.0, %v478
    %v480 = vrcp.pop %v449
    %v481 = vmul.f32 1.0, %v480
    %v482 = vld [vmem:[%s4] sm:$0xff]
    %v483 = vld [vmem:[%s4 + $0x8] sm:$0xff]
    %v484 = vld [vmem:[%s4 + $0x10] sm:$0xff]
    %v485 = vld [vmem:[%s4 + $0x18] sm:$0xff]
    %v486 = vld [vmem:[%s4 + $0x20] sm:$0xff]
    %v487 = vld [vmem:[%s4 + $0x28] sm:$0xff]
    %v488 = vld [vmem:[%s4 + $0x30] sm:$0xff]
    %v489 = vld [vmem:[%s4 + $0x38] sm:$0xff]
    %v490 = vld [vmem:[%s4 + $0x40] sm:$0xff]
    %v491 = vld [vmem:[%s4 + $0x48] sm:$0xff]
    %v492 = vld [vmem:[%s4 + $0x50] sm:$0xff]
    %v493 = vld [vmem:[%s4 + $0x58] sm:$0xff]
    %v494 = vld [vmem:[%s4 + $0x60] sm:$0xff]
    %v495 = vld [vmem:[%s4 + $0x68] sm:$0xff]
    %v496 = vld [vmem:[%s4 + $0x70] sm:$0xff]
    %v497 = vld [vmem:[%s4 + $0x78] sm:$0xff]
    %v498 = vadd.f32 %v451, %v482
    %v499 = vadd.f32 %v453, %v483
    %v500 = vadd.f32 %v455, %v484
    %v501 = vadd.f32 %v457, %v485
    %v502 = vadd.f32 %v459, %v486
    %v503 = vadd.f32 %v461, %v487
    %v504 = vadd.f32 %v463, %v488
    %v505 = vadd.f32 %v465, %v489
    %v506 = vadd.f32 %v467, %v490
    %v507 = vadd.f32 %v469, %v491
    %v508 = vadd.f32 %v471, %v492
    %v509 = vadd.f32 %v473, %v493
    %v510 = vadd.f32 %v475, %v494
    %v511 = vadd.f32 %v477, %v495
    %v512 = vadd.f32 %v479, %v496
    %v513 = vadd.f32 %v481, %v497
    %v514 = vmul.f32 %v498, 2.0
    %v515 = vmul.f32 %v499, 2.0
    %v516 = vmul.f32 %v500, 2.0
    %v517 = vmul.f32 %v501, 2.0
    %v518 = vmul.f32 %v502, 2.0
    %v519 = vmul.f32 %v503, 2.0
    %v520 = vmul.f32 %v504, 2.0
    %v521 = vmul.f32 %v505, 2.0
    %v522 = vmul.f32 %v506, 2.0
    %v523 = vmul.f32 %v507, 2.0
    %v524 = vmul.f32 %v508, 2.0
    %v525 = vmul.f32 %v509, 2.0
    %v526 = vmul.f32 %v510, 2.0
    %v527 = vmul.f32 %v511, 2.0
    %v528 = vmul.f32 %v512, 2.0
    %v529 = vmul.f32 %v513, 2.0
    %v530 = vmul.f32 %v369, 1.442695
    %v531 = vpow.pop %v530
    %v532 = vmul.f32 %v370, 1.442695
    %v533 = vpow.pop %v532
    %v534 = vmul.f32 %v371, 1.442695
    %v535 = vpow.pop %v534
    %v536 = vmul.f32 %v372, 1.442695
    %v537 = vpow.pop %v536
    %v538 = vmul.f32 %v373, 1.442695
    %v539 = vpow.pop %v538
    %v540 = vmul.f32 %v374, 1.442695
    %v541 = vpow.pop %v540
    %v542 = vmul.f32 %v375, 1.442695
    %v543 = vpow.pop %v542
    %v544 = vmul.f32 %v376, 1.442695
    %v545 = vpow.pop %v544
    %v546 = vmul.f32 %v377, 1.442695
    %v547 = vpow.pop %v546
    %v548 = vmul.f32 %v378, 1.442695
    %v549 = vpow.pop %v548
    %v550 = vmul.f32 %v379, 1.442695
    %v551 = vpow.pop %v550
    %v552 = vmul.f32 %v380, 1.442695
    %v553 = vpow.pop %v552
    %v554 = vmul.f32 %v381, 1.442695
    %v555 = vpow.pop %v554
    %v556 = vmul.f32 %v382, 1.442695
    %v557 = vpow.pop %v556
    %v558 = vmul.f32 %v383, 1.442695
    %v559 = vpow.pop %v558
    %v560 = vmul.f32 %v384, 1.442695
    %v561 = vpow.pop %v560
    %v562 = vld [vmem:[%s5] sm:$0x1]
    %v564 = vlaneseq
    %v565 = vshrl.u32 %v564, 7
    %v566 = vsub.s32 0, %v565
    %v567 = vrot.slane %v562, %v566
    %v569 = vmul.f32 %v531, %v567
    %v570 = vmul.f32 %v533, %v567
    %v571 = vmul.f32 %v535, %v567
    %v572 = vmul.f32 %v537, %v567
    %v573 = vmul.f32 %v539, %v567
    %v574 = vmul.f32 %v541, %v567
    %v575 = vmul.f32 %v543, %v567
    %v576 = vmul.f32 %v545, %v567
    %v577 = vmul.f32 %v547, %v567
    %v578 = vmul.f32 %v549, %v567
    %v579 = vmul.f32 %v551, %v567
    %v580 = vmul.f32 %v553, %v567
    %v581 = vmul.f32 %v555, %v567
    %v582 = vmul.f32 %v557, %v567
    %v583 = vmul.f32 %v559, %v567
    %v584 = vmul.f32 %v561, %v567
    %v585 = vmul.f32 %v569, 2.0
    %v586 = vmul.f32 %v570, 2.0
    %v587 = vmul.f32 %v571, 2.0
    %v588 = vmul.f32 %v572, 2.0
    %v589 = vmul.f32 %v573, 2.0
    %v590 = vmul.f32 %v574, 2.0
    %v591 = vmul.f32 %v575, 2.0
    %v592 = vmul.f32 %v576, 2.0
    %v593 = vmul.f32 %v577, 2.0
    %v594 = vmul.f32 %v578, 2.0
    %v595 = vmul.f32 %v579, 2.0
    %v596 = vmul.f32 %v580, 2.0
    %v597 = vmul.f32 %v581, 2.0
    %v598 = vmul.f32 %v582, 2.0
    %v599 = vmul.f32 %v583, 2.0
    %v600 = vmul.f32 %v584, 2.0
    %vm601 = vcmp.eq.f32.partialorder %v385, 1.0
    %vm602 = vcmp.eq.f32.partialorder %v385, 2.0
    %v603 = vsel %vm602, 1, 0
    %v604 = vlaneseq
    %v605 = vshrl.u32 %v604, 7
    %v606 = vsub.s32 0, %v605
    %v607 = vrot.slane %v603, %v606
    %vm608 = vcmp.eq.s32.totalorder %v607, 1
    %v609 = vsel %vm608, %v585, %v451
    %v610 = vsel %vm608, %v586, %v453
    %v611 = vsel %vm608, %v587, %v455
    %v612 = vsel %vm608, %v588, %v457
    %v613 = vsel %vm608, %v589, %v459
    %v614 = vsel %vm608, %v590, %v461
    %v615 = vsel %vm608, %v591, %v463
    %v616 = vsel %vm608, %v592, %v465
    %v617 = vsel %vm608, %v593, %v467
    %v618 = vsel %vm608, %v594, %v469
    %v619 = vsel %vm608, %v595, %v471
    %v620 = vsel %vm608, %v596, %v473
    %v621 = vsel %vm608, %v597, %v475
    %v622 = vsel %vm608, %v598, %v477
    %v623 = vsel %vm608, %v599, %v479
    %v624 = vsel %vm608, %v600, %v481
    %v625 = vsel %vm601, 1, 0
    %v626 = vlaneseq
    %v627 = vshrl.u32 %v626, 7
    %v628 = vsub.s32 0, %v627
    %v629 = vrot.slane %v625, %v628
    %vm630 = vcmp.eq.s32.totalorder %v629, 1
    %v631 = vsel %vm630, %v514, %v609
    %v632 = vsel %vm630, %v515, %v610
    %v633 = vsel %vm630, %v516, %v611
    %v634 = vsel %vm630, %v517, %v612
    %v635 = vsel %vm630, %v518, %v613
    %v636 = vsel %vm630, %v519, %v614
    %v637 = vsel %vm630, %v520, %v615
    %v638 = vsel %vm630, %v521, %v616
    %v639 = vsel %vm630, %v522, %v617
    %v640 = vsel %vm630, %v523, %v618
    %v641 = vsel %vm630, %v524, %v619
    %v642 = vsel %vm630, %v525, %v620
    %v643 = vsel %vm630, %v526, %v621
    %v644 = vsel %vm630, %v527, %v622
    %v645 = vsel %vm630, %v528, %v623
    %v646 = vsel %vm630, %v529, %v624
    %647 = vst [vmem:[%s7] sm:$0xff] %v631
    %648 = vst [vmem:[%s7 + $0x8] sm:$0xff] %v632
    %649 = vst [vmem:[%s7 + $0x10] sm:$0xff] %v633
    %650 = vst [vmem:[%s7 + $0x18] sm:$0xff] %v634
    %651 = vst [vmem:[%s7 + $0x20] sm:$0xff] %v635
    %652 = vst [vmem:[%s7 + $0x28] sm:$0xff] %v636
    %653 = vst [vmem:[%s7 + $0x30] sm:$0xff] %v637
    %654 = vst [vmem:[%s7 + $0x38] sm:$0xff] %v638
    %655 = vst [vmem:[%s7 + $0x40] sm:$0xff] %v639
    %656 = vst [vmem:[%s7 + $0x48] sm:$0xff] %v640
    %657 = vst [vmem:[%s7 + $0x50] sm:$0xff] %v641
    %658 = vst [vmem:[%s7 + $0x58] sm:$0xff] %v642
    %659 = vst [vmem:[%s7 + $0x60] sm:$0xff] %v643
    %660 = vst [vmem:[%s7 + $0x68] sm:$0xff] %v644
    %661 = vst [vmem:[%s7 + $0x70] sm:$0xff] %v645
    %662 = vst [vmem:[%s7 + $0x78] sm:$0xff] %v646
  $region37: #{_lambda_.19} parent=0 // pred_fallthru
    _
  // Predicated region
  $region38: #{_lambda_.19} parent=0 // pred_check
    _
  $region39: #{_lambda_.19} parent=0 // pred_check_branch
    %664 = sbr.rel (0) target = $region41
  $region40: #{_lambda_.19} parent=0 // pred_region
    _
  $region41: #{_lambda_.19} parent=0 // pred_fallthru
    _
  // Predicated region
  $region42: #{_lambda_.19} parent=0 // pred_check
    _
  $region43: #{_lambda_.19} parent=0 // pred_check_branch
    %666 = sbr.rel (0) target = $region45
  $region44: #{_lambda_.19} parent=0 // pred_region
    _
  $region45: #{_lambda_.19} parent=0 // pred_fallthru
    _

// kernel: _lambda_.15
$region0: #{_lambda_.15}
  #allocation0 [shape = 'u32[]', space=smem, size = 0x4, offset = 0x4, fixed_abs, tag = 'smem constant byte address 0x4 - core index']
  #allocation1 [shape = 'u32[144,128]{1,0:T(1,128)}', space=vmem, size = 0x12000, scoped, tag = 'internal scratch']
  #allocation2 [shape = 'f32[32,128]{1,0:T(8,128)}', space=vmem, size = 0x4000, scoped, tag = 'scratch operand']
  %s0 = inlined_call_operand.vmem [shape: bf16[32,128], index: 0, kind: input, shape index: {}]
  %s1 = inlined_call_operand.vmem [shape: bf16[128,128], index: 1, kind: input, shape index: {}]
  %s2 = inlined_call_operand.vmem [shape: f32[1,128], index: 2, kind: input, shape index: {}]
  %s3 = inlined_call_operand.vmem [shape: f32[1,128], index: 3, kind: input, shape index: {}]
  %s4 = inlined_call_operand.vmem [shape: f32[32,128], index: 4, kind: input, shape index: {}]
  %s5 = inlined_call_operand.vmem [shape: f32[1,128], index: 5, kind: input, shape index: {}]
  %s6 = inlined_call_operand.vmem [shape: f32[1,128], index: 6, kind: input, shape index: {}]
  %s7 = inlined_call_operand.vmem [shape: f32[32,128], index: 7, kind: output, shape index: {}]
  %s8 = sld [smem:[#allocation0]]
  $region46: #{_lambda_.15} parent=0
    _
  %s10 = ssub.s32 1, %s8
  %s11 = scalar_select 0, %s10, %s8
  // Predicated region
  $region2: #{_lambda_.15} parent=0 // pred_check
    _
  $region3: #{_lambda_.15} parent=0 // pred_check_branch
    %13 = sbr.rel (0) target = $region5
  $region4: #{_lambda_.15} parent=0 // pred_region
    _
  $region5: #{_lambda_.15} parent=0 // pred_fallthru
    _
  // Predicated region
  $region6: #{_lambda_.15} parent=0 // pred_check
    _
  $region7: #{_lambda_.15} parent=0 // pred_check_branch
    %15 = sbr.rel (0) target = $region9
  $region8: #{_lambda_.15} parent=0 // pred_region
    _
  $region9: #{_lambda_.15} parent=0 // pred_fallthru
    _
  // Predicated region
  $region10: #{_lambda_.15} parent=0 // pred_check
    _
  $region11: #{_lambda_.15} parent=0 // pred_check_branch
    %17 = sbr.rel (0) target = $region13
  $region12: #{_lambda_.15} parent=0 // pred_region
    _
  $region13: #{_lambda_.15} parent=0 // pred_fallthru
    _
  // Predicated region
  $region14: #{_lambda_.15} parent=0 // pred_check
    _
  $region15: #{_lambda_.15} parent=0 // pred_check_branch
    %19 = sbr.rel (0) target = $region17
  $region16: #{_lambda_.15} parent=0 // pred_region
    _
  $region17: #{_lambda_.15} parent=0 // pred_fallthru
    _
  // Predicated region
  $region18: #{_lambda_.15} parent=0 // pred_check
    _
  $region19: #{_lambda_.15} parent=0 // pred_check_branch
    %21 = sbr.rel (0) target = $region21
  $region20: #{_lambda_.15} parent=0 // pred_region
    _
  $region21: #{_lambda_.15} parent=0 // pred_fallthru
    _
  // Predicated region
  $region22: #{_lambda_.15} parent=0 // pred_check
    _
  $region23: #{_lambda_.15} parent=0 // pred_check_branch
    %23 = sbr.rel (0) target = $region25
  $region24: #{_lambda_.15} parent=0 // pred_region
    _
  $region25: #{_lambda_.15} parent=0 // pred_fallthru
    _
  // Predicated region
  $region26: #{_lambda_.15} parent=0 // pred_check
    _
  $region27: #{_lambda_.15} parent=0 // pred_check_branch
    %25 = sbr.rel (0) target = $region29
  $region28: #{_lambda_.15} parent=0 // pred_region
    _
  $region29: #{_lambda_.15} parent=0 // pred_fallthru
    _
  %p27 = scmp.eq.s32.totalorder 0, 0
  // Predicated region
  $region30: #{_lambda_.15} parent=0 // pred_check
    %p28 = pneg %p27
  $region31: #{_lambda_.15} parent=0 // pred_check_branch
    %30 = sbr.rel (%p28) target = $region33
  $region32: #{_lambda_.15} parent=0 // pred_region
    %31 = vst [vmem:[#allocation2] sm:$0xff] 0.0
    %32 = vst [vmem:[#allocation2 + $0x8] sm:$0xff] 0.0
    %33 = vst [vmem:[#allocation2 + $0x10] sm:$0xff] 0.0
    %34 = vst [vmem:[#allocation2 + $0x18] sm:$0xff] 0.0
  $region33: #{_lambda_.15} parent=0 // pred_fallthru
    _
  %v35 = vld [vmem:[#allocation2] sm:$0xff]
  %v36 = vld [vmem:[#allocation2 + $0x8] sm:$0xff]
  %v37 = vld [vmem:[#allocation2 + $0x10] sm:$0xff]
  %v38 = vld [vmem:[#allocation2 + $0x18] sm:$0xff]
  %v39 = vld [vmem:[%s0] sm:$0xf]
  %v40 = vld [vmem:[%s0 + $0x4] sm:$0xf]
  %v41 = vld [vmem:[%s0 + $0x8] sm:$0xf]
  %v42 = vld [vmem:[%s0 + $0xc] sm:$0xf]
  %v43 = vld [vmem:[%s1] sm:$0xf]
  %v44 = vld [vmem:[%s1 + $0x4] sm:$0xf]
  %v45 = vld [vmem:[%s1 + $0x8] sm:$0xf]
  %v46 = vld [vmem:[%s1 + $0xc] sm:$0xf]
  %v47 = vld [vmem:[%s1 + $0x10] sm:$0xf]
  %v48 = vld [vmem:[%s1 + $0x14] sm:$0xf]
  %v49 = vld [vmem:[%s1 + $0x18] sm:$0xf]
  %v50 = vld [vmem:[%s1 + $0x1c] sm:$0xf]
  %v51 = vld [vmem:[%s1 + $0x20] sm:$0xf]
  %v52 = vld [vmem:[%s1 + $0x24] sm:$0xf]
  %v53 = vld [vmem:[%s1 + $0x28] sm:$0xf]
  %v54 = vld [vmem:[%s1 + $0x2c] sm:$0xf]
  %v55 = vld [vmem:[%s1 + $0x30] sm:$0xf]
  %v56 = vld [vmem:[%s1 + $0x34] sm:$0xf]
  %v57 = vld [vmem:[%s1 + $0x38] sm:$0xf]
  %v58 = vld [vmem:[%s1 + $0x3c] sm:$0xf]
  %v63 = vunpack.c.l.b16 %v39
  %v64 = vunpack.c.l.b16 %v40
  %v65 = vunpack.c.l.b16 %v41
  %v66 = vunpack.c.l.b16 %v42
  %v67 = vpack.c.b16 %v64, %v63
  %v68 = vpack.c.b16 %v66, %v65
  %v87 = vunpack.c.l.b16 %v43
  %v88 = vunpack.c.l.b16 %v44
  %v89 = vunpack.c.l.b16 %v45
  %v90 = vunpack.c.l.b16 %v46
  %v91 = vunpack.c.l.b16 %v47
  %v92 = vunpack.c.l.b16 %v48
  %v93 = vunpack.c.l.b16 %v49
  %v94 = vunpack.c.l.b16 %v50
  %v95 = vunpack.c.l.b16 %v51
  %v96 = vunpack.c.l.b16 %v52
  %v97 = vunpack.c.l.b16 %v53
  %v98 = vunpack.c.l.b16 %v54
  %v99 = vunpack.c.l.b16 %v55
  %v100 = vunpack.c.l.b16 %v56
  %v101 = vunpack.c.l.b16 %v57
  %v102 = vunpack.c.l.b16 %v58
  %v103 = vpack.c.b16 %v88, %v87
  %v104 = vpack.c.b16 %v90, %v89
  %v105 = vpack.c.b16 %v92, %v91
  %v106 = vpack.c.b16 %v94, %v93
  %v107 = vpack.c.b16 %v96, %v95
  %v108 = vpack.c.b16 %v98, %v97
  %v109 = vpack.c.b16 %v100, %v99
  %v110 = vpack.c.b16 %v102, %v101
  %119 = vmatprep.subr.bf16.mxu0 0
  %120 = vmatpush1.bf16.msra.mxu0 %v103
  %121 = vmatprep.subr.bf16.mxu0 0
  %122 = vmatpush1.bf16.msra.mxu0 %v104
  %123 = vmatprep.subr.bf16.mxu0 0
  %124 = vmatpush1.bf16.msra.mxu0 %v105
  %125 = vmatprep.subr.bf16.mxu0 0
  %126 = vmatpush1.bf16.msra.mxu0 %v106
  %127 = vmatprep.subr.bf16.mxu0 0
  %128 = vmatpush1.bf16.msra.mxu0 %v107
  %129 = vmatprep.subr.bf16.mxu0 0
  %130 = vmatpush1.bf16.msra.mxu0 %v108
  %131 = vmatprep.subr.bf16.mxu0 0
  %132 = vmatpush1.bf16.msra.mxu0 %v109
  %133 = vmatprep.subr.bf16.mxu0 0
  %134 = vmatpush1.bf16.msra.mxu0 %v110
  %135 = vmatprep.subr.bf16.mxu0 0
  %136 = vmatpush1.bf16.msra.mxu0 0
  %137 = vmatprep.subr.bf16.mxu0 0
  %138 = vmatpush1.bf16.msra.mxu0 0
  %139 = vmatprep.subr.bf16.mxu0 0
  %140 = vmatpush1.bf16.msra.mxu0 0
  %141 = vmatprep.subr.bf16.mxu0 0
  %142 = vmatpush1.bf16.msra.mxu0 0
  %143 = vmatprep.subr.bf16.mxu0 0
  %144 = vmatpush1.bf16.msra.mxu0 0
  %145 = vmatprep.subr.bf16.mxu0 0
  %146 = vmatpush1.bf16.msra.mxu0 0
  %147 = vmatprep.subr.bf16.mxu0 0
  %148 = vmatpush1.bf16.msra.mxu0 0
  %149 = vmatprep.subr.bf16.mxu0 0
  %150 = vmatpush1.bf16.msra.mxu0 0
  %151 = vmatprep.mubr.bf16.mxu0 0
  %152 = vmatmul.mubr.bf16.gmra.mrb[0].mxu0 %v67
  %v153 = vpop.f32.mrb[0].mxu0
  %v154 = vadd.f32 0.0, %v153
  %v155 = vpop.f32.mrb[0].mxu0
  %v156 = vpop.f32.mrb[0].mxu0
  %v157 = vadd.f32 0.0, %v156
  %v158 = vpop.f32.mrb[0].mxu0
  %159 = vmatprep.mubr.bf16.mxu0 0
  %160 = vmatmul.mubr.bf16.gmra.mrb[0].mxu0 %v68
  %v161 = vpop.f32.mrb[0].mxu0
  %v162 = vadd.f32 0.0, %v161
  %v163 = vpop.f32.mrb[0].mxu0
  %v164 = vpop.f32.mrb[0].mxu0
  %v165 = vadd.f32 0.0, %v164
  %v166 = vpop.f32.mrb[0].mxu0
  %167 = vdwg.mxu0
  %v168 = vadd.f32 %v35, %v154
  %v169 = vadd.f32 %v36, %v157
  %v170 = vadd.f32 %v37, %v162
  %v171 = vadd.f32 %v38, %v165
  %172 = vst [vmem:[#allocation2] sm:$0xff] %v168
  %173 = vst [vmem:[#allocation2 + $0x8] sm:$0xff] %v169
  %174 = vst [vmem:[#allocation2 + $0x10] sm:$0xff] %v170
  %175 = vst [vmem:[#allocation2 + $0x18] sm:$0xff] %v171
  // Predicated region
  $region34: #{_lambda_.15} parent=0 // pred_check
    %p176 = pneg %p27
  $region35: #{_lambda_.15} parent=0 // pred_check_branch
    %178 = sbr.rel (%p176) target = $region37
  $region36: #{_lambda_.15} parent=0 // pred_region
    %v179 = vld [vmem:[#allocation2] sm:$0xff]
    %v180 = vld [vmem:[#allocation2 + $0x8] sm:$0xff]
    %v181 = vld [vmem:[#allocation2 + $0x10] sm:$0xff]
    %v182 = vld [vmem:[#allocation2 + $0x18] sm:$0xff]
    %v183 = vld [vmem:[%s2] sm:$0x1]
    %v185 = vlaneseq
    %v186 = vshrl.u32 %v185, 7
    %v187 = vsub.s32 0, %v186
    %v188 = vrot.slane %v183, %v187
    %v190 = vmul.f32 %v179, %v188
    %v191 = vmul.f32 %v180, %v188
    %v192 = vmul.f32 %v181, %v188
    %v193 = vmul.f32 %v182, %v188
    %v194 = vld [vmem:[%s3] sm:$0x1]
    %v196 = vlaneseq
    %v197 = vshrl.u32 %v196, 7
    %v198 = vsub.s32 0, %v197
    %v199 = vrot.slane %v194, %v198
    %v201 = vadd.f32 %v190, %v199
    %v202 = vadd.f32 %v191, %v199
    %v203 = vadd.f32 %v192, %v199
    %v204 = vadd.f32 %v193, %v199
    %v205 = vld [vmem:[%s6] sm:$0x1]
    %v206 = vxor.u32 %v201, 2147483648
    %v207 = vxor.u32 %v202, 2147483648
    %v208 = vxor.u32 %v203, 2147483648
    %v209 = vxor.u32 %v204, 2147483648
    %v210 = vmul.f32 %v206, 1.442695
    %v211 = vpow.pop %v210
    %v212 = vmul.f32 %v207, 1.442695
    %v213 = vpow.pop %v212
    %v214 = vmul.f32 %v208, 1.442695
    %v215 = vpow.pop %v214
    %v216 = vmul.f32 %v209, 1.442695
    %v217 = vpow.pop %v216
    %v218 = vadd.f32 %v211, 1.0
    %v219 = vadd.f32 %v213, 1.0
    %v220 = vadd.f32 %v215, 1.0
    %v221 = vadd.f32 %v217, 1.0
    %v222 = vrcp.pop %v218
    %v223 = vmul.f32 1.0, %v222
    %v224 = vrcp.pop %v219
    %v225 = vmul.f32 1.0, %v224
    %v226 = vrcp.pop %v220
    %v227 = vmul.f32 1.0, %v226
    %v228 = vrcp.pop %v221
    %v229 = vmul.f32 1.0, %v228
    %v230 = vld [vmem:[%s4] sm:$0xff]
    %v231 = vld [vmem:[%s4 + $0x8] sm:$0xff]
    %v232 = vld [vmem:[%s4 + $0x10] sm:$0xff]
    %v233 = vld [vmem:[%s4 + $0x18] sm:$0xff]
    %v234 = vadd.f32 %v223, %v230
    %v235 = vadd.f32 %v225, %v231
    %v236 = vadd.f32 %v227, %v232
    %v237 = vadd.f32 %v229, %v233
    %v238 = vmul.f32 %v234, 4.0
    %v239 = vmul.f32 %v235, 4.0
    %v240 = vmul.f32 %v236, 4.0
    %v241 = vmul.f32 %v237, 4.0
    %v242 = vmul.f32 %v201, 1.442695
    %v243 = vpow.pop %v242
    %v244 = vmul.f32 %v202, 1.442695
    %v245 = vpow.pop %v244
    %v246 = vmul.f32 %v203, 1.442695
    %v247 = vpow.pop %v246
    %v248 = vmul.f32 %v204, 1.442695
    %v249 = vpow.pop %v248
    %v250 = vld [vmem:[%s5] sm:$0x1]
    %v252 = vlaneseq
    %v253 = vshrl.u32 %v252, 7
    %v254 = vsub.s32 0, %v253
    %v255 = vrot.slane %v250, %v254
    %v257 = vmul.f32 %v243, %v255
    %v258 = vmul.f32 %v245, %v255
    %v259 = vmul.f32 %v247, %v255
    %v260 = vmul.f32 %v249, %v255
    %v261 = vmul.f32 %v257, 4.0
    %v262 = vmul.f32 %v258, 4.0
    %v263 = vmul.f32 %v259, 4.0
    %v264 = vmul.f32 %v260, 4.0
    %vm265 = vcmp.eq.f32.partialorder %v205, 1.0
    %vm266 = vcmp.eq.f32.partialorder %v205, 2.0
    %v267 = vsel %vm266, 1, 0
    %v268 = vlaneseq
    %v269 = vshrl.u32 %v268, 7
    %v270 = vsub.s32 0, %v269
    %v271 = vrot.slane %v267, %v270
    %vm272 = vcmp.eq.s32.totalorder %v271, 1
    %v273 = vsel %vm272, %v261, %v223
    %v274 = vsel %vm272, %v262, %v225
    %v275 = vsel %vm272, %v263, %v227
    %v276 = vsel %vm272, %v264, %v229
    %v277 = vsel %vm265, 1, 0
    %v278 = vlaneseq
    %v279 = vshrl.u32 %v278, 7
    %v280 = vsub.s32 0, %v279
    %v281 = vrot.slane %v277, %v280
    %vm282 = vcmp.eq.s32.totalorder %v281, 1
    %v283 = vsel %vm282, %v238, %v273
    %v284 = vsel %vm282, %v239, %v274
    %v285 = vsel %vm282, %v240, %v275
    %v286 = vsel %vm282, %v241, %v276
    %287 = vst [vmem:[%s7] sm:$0xff] %v283
    %288 = vst [vmem:[%s7 + $0x8] sm:$0xff] %v284
    %289 = vst [vmem:[%s7 + $0x10] sm:$0xff] %v285
    %290 = vst [vmem:[%s7 + $0x18] sm:$0xff] %v286
  $region37: #{_lambda_.15} parent=0 // pred_fallthru
    _
  // Predicated region
  $region38: #{_lambda_.15} parent=0 // pred_check
    _
  $region39: #{_lambda_.15} parent=0 // pred_check_branch
    %292 = sbr.rel (0) target = $region41
  $region40: #{_lambda_.15} parent=0 // pred_region
    _
  $region41: #{_lambda_.15} parent=0 // pred_fallthru
    _
  // Predicated region
  $region42: #{_lambda_.15} parent=0 // pred_check
    _
  $region43: #{_lambda_.15} parent=0 // pred_check_branch
    %294 = sbr.rel (0) target = $region45
  $region44: #{_lambda_.15} parent=0 // pred_region
    _
  $region45: #{_lambda_.15} parent=0 // pred_fallthru
    _

</llo_original>
